<compile_context>
chip_gen: v7x
topology: tpu7x:2x2x1
jax: 0.10.0
libtpu: 0.0.40
codegen_flags: <defaults>
</compile_context>

<pallas_src>
import functools

import jax
import jax.numpy as jnp
from jax import lax
from jax.experimental import pallas as pl
from jax.experimental.pallas import tpu as pltpu


def _name_gen_kernel(ids_ref, h0_ref, c0_ref, emb_ref, wih_ref, whh_ref, b_ref,
                     wfc_ref, bfc_ref,
                     out_ref, hN_ref, cN_ref,
                     gx_ref, hall_ref,
                     *, seq_len, batch_p, hidden_size):
    """Single grid step: embedding gather + full LSTM recurrence + FC."""
    S, B, H = seq_len, batch_p, hidden_size
    V = emb_ref.shape[0]
    SB = S * B

    # ---- Fused embedding gather: one-hot @ table on the MXU ----------------
    ids = ids_ref[...]                                         # (S*B, 1) int32
    col = lax.broadcasted_iota(jnp.int32, (SB, V), 1)
    onehot = (col == ids).astype(jnp.bfloat16)                 # (S*B, V)
    x_emb = jnp.dot(onehot, emb_ref[...],
                    preferred_element_type=jnp.float32).astype(jnp.bfloat16)

    # ---- Hoisted input projection for ALL timesteps (non-recurrent) --------
    # gates_x = x @ W_ih^T + (b_ih + b_hh)   -> (S*B, 4H), stored in VMEM.
    gx_ref[...] = (jnp.dot(x_emb, wih_ref[...],
                           preferred_element_type=jnp.float32) + b_ref[...])

    # ---- Serial recurrence: only h_prev @ W_hh^T is on the critical path ----
    def step(t, carry):
        h_prev, c_prev = carry                                 # f32 (B, H)
        row = pl.multiple_of(t * B, 8)                         # B padded to 8
        # Re-load W_hh from VMEM each step (cheap vld) instead of pinning it
        # in vregs across the fully unrolled loop.
        gates = gx_ref[pl.ds(row, B), :] + jnp.dot(
            h_prev.astype(whh_ref.dtype), whh_ref[...],
            preferred_element_type=jnp.float32)

        # Gate columns were permuted offline to [i, f, o, g]:
        # one contiguous sigmoid over 3H lanes, tanh over the last H.
        sg = jax.nn.sigmoid(gates[:, :3 * H])
        i_g = sg[:, 0 * H:1 * H]
        f_g = sg[:, 1 * H:2 * H]
        o_g = sg[:, 2 * H:3 * H]
        g_g = jnp.tanh(gates[:, 3 * H:4 * H])

        c_new = f_g * c_prev + i_g * g_g
        h_new = o_g * jnp.tanh(c_new)

        hall_ref[pl.ds(row, B), :] = h_new                     # aligned store
        return h_new, c_new

    h_last, c_last = lax.fori_loop(
        0, S, step, (h0_ref[...], c0_ref[...]), unroll=True)

    # ---- Batched FC epilogue (lane-dense 128-multiple output), one store ---
    logits = (jnp.dot(hall_ref[...].astype(wfc_ref.dtype), wfc_ref[...],
                      preferred_element_type=jnp.float32) + bfc_ref[...])
    out_ref[...] = logits.astype(out_ref.dtype)

    # Final recurrent state, written exactly once.
    hN_ref[...] = h_last.astype(hN_ref.dtype)
    cN_ref[...] = c_last.astype(cN_ref.dtype)


def lstm_fc_pallas(ids2d, h0, c0, emb, w_ih_t, w_hh_t, b, w_fc_t, b_fc,
                   *, seq_len, batch_p):
    """ids2d: (S*Bp, 1) time-major padded token ids (int32).

    Returns (logits (S*Bp, Vp) f32, hN (Bp, H) f32, cN (Bp, H) f32).
    """
    SB = ids2d.shape[0]
    V, E = emb.shape
    H = h0.shape[-1]
    VP = w_fc_t.shape[-1]

    kernel = functools.partial(_name_gen_kernel, seq_len=seq_len,
                               batch_p=batch_p, hidden_size=H)

    grid_spec = pltpu.PrefetchScalarGridSpec(
        num_scalar_prefetch=0,
        grid=(1,),
        in_specs=[
            pl.BlockSpec((SB, 1), lambda i: (0, 0)),         # token ids
            pl.BlockSpec((batch_p, H), lambda i: (0, 0)),    # h0 (padded)
            pl.BlockSpec((batch_p, H), lambda i: (0, 0)),    # c0 (padded)
            pl.BlockSpec((V, E), lambda i: (0, 0)),          # embedding table
            pl.BlockSpec((E, 4 * H), lambda i: (0, 0)),      # W_ih^T (bf16)
            pl.BlockSpec((H, 4 * H), lambda i: (0, 0)),      # W_hh^T (bf16)
            pl.BlockSpec((1, 4 * H), lambda i: (0, 0)),      # b_ih + b_hh
            pl.BlockSpec((H, VP), lambda i: (0, 0)),         # W_fc^T (padded)
            pl.BlockSpec((1, VP), lambda i: (0, 0)),         # b_fc   (padded)
        ],
        out_specs=[
            pl.BlockSpec((SB, VP), lambda i: (0, 0)),        # all logits
            pl.BlockSpec((batch_p, H), lambda i: (0, 0)),    # final hidden
            pl.BlockSpec((batch_p, H), lambda i: (0, 0)),    # final cell
        ],
        scratch_shapes=[
            pltpu.VMEM((SB, 4 * H), jnp.float32),            # hoisted x-gates
            pltpu.VMEM((SB, H), jnp.float32),                # all hidden states
        ],
    )

    out_shapes = (
        jax.ShapeDtypeStruct((SB, VP), jnp.float32),
        jax.ShapeDtypeStruct((batch_p, H), jnp.float32),
        jax.ShapeDtypeStruct((batch_p, H), jnp.float32),
    )

    return pl.pallas_call(
        kernel,
        grid_spec=grid_spec,
        out_shape=out_shapes,
        compiler_params=pltpu.CompilerParams(
            dimension_semantics=("arbitrary",),
            # All inputs + scratch + outputs total well under 2 MiB even with
            # default double-buffering; 16 MiB leaves ample headroom and fits
            # v7x's smaller 64 MiB (32 MiB scoped) VMEM budget.
            vmem_limit_bytes=16 * 1024 * 1024,
        ),
    )(ids2d, h0, c0, emb, w_ih_t, w_hh_t, b, w_fc_t, b_fc)


class NameGeneratorPallas:
    """JAX/Pallas port of the PyTorch NameGenerator (num_layers=1)."""

    def __init__(self, vocab_size, hidden_size, embedding_dim, num_layers=1, seed=0):
        assert num_layers == 1, "kernel implements the single-layer LSTM case"
        self.vocab_size = vocab_size
        self.hidden_size = hidden_size
        self.embedding_dim = embedding_dim
        self.num_layers = num_layers
        self.vocab_pad = ((vocab_size + 127) // 128) * 128   # lane-dense logits

        k = jax.random.PRNGKey(seed)
        ks = jax.random.split(k, 7)
        H, E, V, VP = hidden_size, embedding_dim, vocab_size, self.vocab_pad
        scale = 0.1
        # Deterministic synthetic parameters (PyTorch param shapes).
        emb = scale * jax.random.normal(ks[0], (V, E), jnp.float32)
        w_ih = scale * jax.random.normal(ks[1], (4 * H, E), jnp.float32)   # lstm.weight_ih_l0
        w_hh = scale * jax.random.normal(ks[2], (4 * H, H), jnp.float32)   # lstm.weight_hh_l0
        b_ih = scale * jax.random.normal(ks[3], (4 * H,), jnp.float32)
        b_hh = scale * jax.random.normal(ks[4], (4 * H,), jnp.float32)
        w_fc = scale * jax.random.normal(ks[5], (V, H), jnp.float32)       # fc.weight
        b_fc = scale * jax.random.normal(ks[6], (V,), jnp.float32)         # fc.bias

        # Offline gate-row permutation: PyTorch order [i, f, g, o] -> [i, f, o, g]
        # so the kernel issues one contiguous sigmoid over the first 3H columns.
        perm = jnp.concatenate([jnp.arange(0, H), jnp.arange(H, 2 * H),
                                jnp.arange(3 * H, 4 * H), jnp.arange(2 * H, 3 * H)])
        w_ih = w_ih[perm]
        w_hh = w_hh[perm]
        bias = (b_ih + b_hh)[perm]

        # bf16 matmul operands (f32 accumulation in the kernel); f32 biases.
        self.embedding = emb.astype(jnp.bfloat16)                    # (V, E)
        self.w_ih_t = jnp.asarray(w_ih.T).astype(jnp.bfloat16)       # (E, 4H)
        self.w_hh_t = jnp.asarray(w_hh.T).astype(jnp.bfloat16)       # (H, 4H)
        self.b = bias.reshape(1, 4 * H)                              # (1, 4H) f32
        # FC weights zero-padded to a 128-lane multiple for unmasked stores.
        w_fc_t = jnp.zeros((H, VP), jnp.float32).at[:, :V].set(w_fc.T)
        self.w_fc_t = w_fc_t.astype(jnp.bfloat16)                    # (H, VP)
        self.b_fc = jnp.zeros((1, VP), jnp.float32).at[0, :V].set(b_fc)

    def init_hidden(self, batch_size):
        z = jnp.zeros((self.num_layers, batch_size, self.hidden_size), jnp.float32)
        return z, z

    def __call__(self, x, hidden, cell):
        # x: (B, S) int32 token ids; hidden/cell: (1, B, H)
        B, S = x.shape
        V, VP = self.vocab_size, self.vocab_pad
        BP = ((B + 7) // 8) * 8   # pad batch to 8 sublanes (aligned recurrence)

        # Time-major, batch-padded token ids; only this tiny int array moves
        # through the wrapper — the embedded tensor never leaves the kernel.
        ids_tm = jnp.transpose(x).astype(jnp.int32)                  # (S, B)
        ids_tm = jnp.pad(ids_tm, ((0, 0), (0, BP - B)))              # (S, BP)
        ids2d = ids_tm.reshape(S * BP, 1)

        h0 = jnp.pad(hidden[0].astype(jnp.float32), ((0, BP - B), (0, 0)))
        c0 = jnp.pad(cell[0].astype(jnp.float32), ((0, BP - B), (0, 0)))

        out2d, hNp, cNp = lstm_fc_pallas(
            ids2d, h0, c0,
            self.embedding, self.w_ih_t, self.w_hh_t, self.b,
            self.w_fc_t, self.b_fc,
            seq_len=S, batch_p=BP)

        out = out2d.reshape(S, BP, VP)[:, :B, :V]                    # drop pads
        out = jnp.transpose(out, (1, 0, 2))                          # (B, S, V)
        return out, hNp[:B][None], cNp[:B][None]


if __name__ == "__main__":
    # Small shapes: batch=2, seq=8, vocab=32, embedding_dim=64, hidden=128.
    vocab_size, hidden_size, embedding_dim = 32, 128, 64
    batch, seq = 2, 8

    model = NameGeneratorPallas(vocab_size, hidden_size, embedding_dim,
                                num_layers=1, seed=0)

    key = jax.random.PRNGKey(0)
    x = jax.random.randint(key, (batch, seq), 0, vocab_size, dtype=jnp.int32)
    hidden, cell = model.init_hidden(batch)

    out, hN, cN = model(x, hidden, cell)
    jax.block_until_ready((out, hN, cN))

    assert out.shape == (batch, seq, vocab_size)
    assert hN.shape == (1, batch, hidden_size)
    assert cN.shape == (1, batch, hidden_size)
    assert bool(jnp.all(jnp.isfinite(out)))
    print("KERNEL_OK")
</pallas_src>

<mosaic_0001>
module attributes {stable_mosaic.version = 11 : i64} {
  func.func @_name_gen_kernel(%arg0: i32, %arg1: memref<64x1xi32, #tpu.memory_space<vmem>>, %arg2: memref<8x128xf32, #tpu.memory_space<vmem>>, %arg3: memref<8x128xf32, #tpu.memory_space<vmem>>, %arg4: memref<32x64xbf16, #tpu.memory_space<vmem>>, %arg5: memref<64x512xbf16, #tpu.memory_space<vmem>>, %arg6: memref<128x512xbf16, #tpu.memory_space<vmem>>, %arg7: memref<1x512xf32, #tpu.memory_space<vmem>>, %arg8: memref<128x128xbf16, #tpu.memory_space<vmem>>, %arg9: memref<1x128xf32, #tpu.memory_space<vmem>>, %arg10: memref<64x128xf32, #tpu.memory_space<vmem>>, %arg11: memref<8x128xf32, #tpu.memory_space<vmem>>, %arg12: memref<8x128xf32, #tpu.memory_space<vmem>>, %arg13: memref<64x512xf32, #tpu.memory_space<vmem>>, %arg14: memref<64x128xf32, #tpu.memory_space<vmem>>) attributes {dimension_semantics = [#tpu.dimension_semantics<arbitrary>], iteration_bounds = array<i64: 1>, scalar_prefetch = 0 : i64, scratch_operands = 2 : i64, tpu.core_type = #tpu.core_type<tc>, window_params = [{pipeline_mode = #tpu.pipeline_mode<synchronous>, transform_indices = @transform_0, window_bounds = array<i64: 64, 1>}, {pipeline_mode = #tpu.pipeline_mode<synchronous>, transform_indices = @transform_1, window_bounds = array<i64: 8, 128>}, {pipeline_mode = #tpu.pipeline_mode<synchronous>, transform_indices = @transform_2, window_bounds = array<i64: 8, 128>}, {pipeline_mode = #tpu.pipeline_mode<synchronous>, transform_indices = @transform_3, window_bounds = array<i64: 32, 64>}, {pipeline_mode = #tpu.pipeline_mode<synchronous>, transform_indices = @transform_4, window_bounds = array<i64: 64, 512>}, {pipeline_mode = #tpu.pipeline_mode<synchronous>, transform_indices = @transform_5, window_bounds = array<i64: 128, 512>}, {pipeline_mode = #tpu.pipeline_mode<synchronous>, transform_indices = @transform_6, window_bounds = array<i64: 1, 512>}, {pipeline_mode = #tpu.pipeline_mode<synchronous>, transform_indices = @transform_7, window_bounds = array<i64: 128, 128>}, {pipeline_mode = #tpu.pipeline_mode<synchronous>, transform_indices = @transform_8, window_bounds = array<i64: 1, 128>}, {pipeline_mode = #tpu.pipeline_mode<synchronous>, transform_indices = @transform_9, window_bounds = array<i64: 64, 128>}, {pipeline_mode = #tpu.pipeline_mode<synchronous>, transform_indices = @transform_10, window_bounds = array<i64: 8, 128>}, {pipeline_mode = #tpu.pipeline_mode<synchronous>, transform_indices = @transform_11, window_bounds = array<i64: 8, 128>}]} {
    %c0 = arith.constant 0 : index
    %c0_0 = arith.constant 0 : index
    %0 = vector.load %arg1[%c0, %c0_0] : memref<64x1xi32, #tpu.memory_space<vmem>>, vector<64x1xi32>
    %1 = tpu.iota {dimensions = array<i32: 1>} : vector<64x32xi32>
    %2 = vector.broadcast %0 : vector<64x1xi32> to vector<64x32xi32>
    %3 = arith.cmpi eq, %1, %2 : vector<64x32xi32>
    %4 = arith.extui %3 : vector<64x32xi1> to vector<64x32xi32>
    %5 = arith.sitofp %4 : vector<64x32xi32> to vector<64x32xf32>
    %6 = arith.truncf %5 : vector<64x32xf32> to vector<64x32xbf16>
    %c0_1 = arith.constant 0 : index
    %c0_2 = arith.constant 0 : index
    %7 = vector.load %arg4[%c0_1, %c0_2] : memref<32x64xbf16, #tpu.memory_space<vmem>>, vector<32x64xbf16>
    %cst = arith.constant dense<0.000000e+00> : vector<64x64xf32>
    %8 = tpu.matmul %6, %7, %cst {dimension_numbers = #tpu.dot_dimension_numbers<[1], [0], [0], [1], [0, 0, 1, 1], [], []>} : vector<64x32xbf16>, vector<32x64xbf16>, vector<64x64xf32> -> vector<64x64xf32>
    %9 = arith.truncf %8 : vector<64x64xf32> to vector<64x64xbf16>
    %c0_3 = arith.constant 0 : index
    %c0_4 = arith.constant 0 : index
    %10 = vector.load %arg5[%c0_3, %c0_4] : memref<64x512xbf16, #tpu.memory_space<vmem>>, vector<64x512xbf16>
    %cst_5 = arith.constant dense<0.000000e+00> : vector<64x512xf32>
    %11 = tpu.matmul %9, %10, %cst_5 {dimension_numbers = #tpu.dot_dimension_numbers<[1], [0], [0], [1], [0, 0, 1, 1], [], []>} : vector<64x64xbf16>, vector<64x512xbf16>, vector<64x512xf32> -> vector<64x512xf32>
    %c0_6 = arith.constant 0 : index
    %c0_7 = arith.constant 0 : index
    %12 = vector.load %arg7[%c0_6, %c0_7] : memref<1x512xf32, #tpu.memory_space<vmem>>, vector<1x512xf32>
    %13 = vector.broadcast %12 : vector<1x512xf32> to vector<64x512xf32>
    %14 = arith.addf %11, %13 : vector<64x512xf32>
    %c0_8 = arith.constant 0 : index
    %c0_9 = arith.constant 0 : index
    %15 = vector.load %arg13[%c0_8, %c0_9] : memref<64x512xf32, #tpu.memory_space<vmem>>, vector<64x512xf32>
    tpu.vector_store %arg13[%c0_8, %c0_9], %14 {strides = array<i32>} : memref<64x512xf32, #tpu.memory_space<vmem>>, vector<64x512xf32>,
    %c0_10 = arith.constant 0 : index
    %c0_11 = arith.constant 0 : index
    %16 = vector.load %arg2[%c0_10, %c0_11] : memref<8x128xf32, #tpu.memory_space<vmem>>, vector<8x128xf32>
    %c0_12 = arith.constant 0 : index
    %c0_13 = arith.constant 0 : index
    %17 = vector.load %arg3[%c0_12, %c0_13] : memref<8x128xf32, #tpu.memory_space<vmem>>, vector<8x128xf32>
    %c0_i32 = arith.constant 0 : i32
    %c8_i32 = arith.constant 8 : i32
    %18 = arith.muli %c0_i32, %c8_i32 : i32
    %19 = tpu.assume_multiple %18, 8 : i32
    %20 = arith.index_cast %19 : i32 to index
    %c0_14 = arith.constant 0 : index
    %21 = vector.load %arg13[%20, %c0_14] : memref<64x512xf32, #tpu.memory_space<vmem>>, vector<8x512xf32>
    %22 = arith.truncf %16 : vector<8x128xf32> to vector<8x128xbf16>
    %c0_15 = arith.constant 0 : index
    %c0_16 = arith.constant 0 : index
    %23 = vector.load %arg6[%c0_15, %c0_16] : memref<128x512xbf16, #tpu.memory_space<vmem>>, vector<128x512xbf16>
    %cst_17 = arith.constant dense<0.000000e+00> : vector<8x512xf32>
    %24 = tpu.matmul %22, %23, %cst_17 {dimension_numbers = #tpu.dot_dimension_numbers<[1], [0], [0], [1], [0, 0, 1, 1], [], []>} : vector<8x128xbf16>, vector<128x512xbf16>, vector<8x512xf32> -> vector<8x512xf32>
    %25 = arith.addf %21, %24 : vector<8x512xf32>
    %26 = vector.extract_strided_slice %25 {offsets = [0, 0], sizes = [8, 384], strides = [1, 1]} : vector<8x512xf32> to vector<8x384xf32>
    %27 = arith.negf %26 : vector<8x384xf32>
    %28 = math.exp %27 : vector<8x384xf32>
    %cst_18 = arith.constant 1.000000e+00 : f32
    %29 = vector.broadcast %cst_18 : f32 to vector<8x384xf32>
    %30 = arith.addf %29, %28 : vector<8x384xf32>
    %31 = arith.divf %29, %30 : vector<8x384xf32>
    %32 = vector.extract_strided_slice %31 {offsets = [0, 0], sizes = [8, 128], strides = [1, 1]} : vector<8x384xf32> to vector<8x128xf32>
    %33 = vector.extract_strided_slice %31 {offsets = [0, 128], sizes = [8, 128], strides = [1, 1]} : vector<8x384xf32> to vector<8x128xf32>
    %34 = vector.extract_strided_slice %31 {offsets = [0, 256], sizes = [8, 128], strides = [1, 1]} : vector<8x384xf32> to vector<8x128xf32>
    %35 = vector.extract_strided_slice %25 {offsets = [0, 384], sizes = [8, 128], strides = [1, 1]} : vector<8x512xf32> to vector<8x128xf32>
    %36 = math.tanh %35 : vector<8x128xf32>
    %37 = arith.mulf %33, %17 : vector<8x128xf32>
    %38 = arith.mulf %32, %36 : vector<8x128xf32>
    %39 = arith.addf %37, %38 : vector<8x128xf32>
    %40 = math.tanh %39 : vector<8x128xf32>
    %41 = arith.mulf %34, %40 : vector<8x128xf32>
    %42 = arith.index_cast %19 : i32 to index
    %c0_19 = arith.constant 0 : index
    %43 = vector.load %arg14[%42, %c0_19] : memref<64x128xf32, #tpu.memory_space<vmem>>, vector<8x128xf32>
    tpu.vector_store %arg14[%42, %c0_19], %41 {strides = array<i32>} : memref<64x128xf32, #tpu.memory_space<vmem>>, vector<8x128xf32>,
    %c1_i32 = arith.constant 1 : i32
    %c8_i32_20 = arith.constant 8 : i32
    %44 = arith.muli %c1_i32, %c8_i32_20 : i32
    %45 = tpu.assume_multiple %44, 8 : i32
    %46 = arith.index_cast %45 : i32 to index
    %c0_21 = arith.constant 0 : index
    %47 = vector.load %arg13[%46, %c0_21] : memref<64x512xf32, #tpu.memory_space<vmem>>, vector<8x512xf32>
    %48 = arith.truncf %41 : vector<8x128xf32> to vector<8x128xbf16>
    %c0_22 = arith.constant 0 : index
    %c0_23 = arith.constant 0 : index
    %49 = vector.load %arg6[%c0_22, %c0_23] : memref<128x512xbf16, #tpu.memory_space<vmem>>, vector<128x512xbf16>
    %cst_24 = arith.constant dense<0.000000e+00> : vector<8x512xf32>
    %50 = tpu.matmul %48, %49, %cst_24 {dimension_numbers = #tpu.dot_dimension_numbers<[1], [0], [0], [1], [0, 0, 1, 1], [], []>} : vector<8x128xbf16>, vector<128x512xbf16>, vector<8x512xf32> -> vector<8x512xf32>
    %51 = arith.addf %47, %50 : vector<8x512xf32>
    %52 = vector.extract_strided_slice %51 {offsets = [0, 0], sizes = [8, 384], strides = [1, 1]} : vector<8x512xf32> to vector<8x384xf32>
    %53 = arith.negf %52 : vector<8x384xf32>
    %54 = math.exp %53 : vector<8x384xf32>
    %cst_25 = arith.constant 1.000000e+00 : f32
    %55 = vector.broadcast %cst_25 : f32 to vector<8x384xf32>
    %56 = arith.addf %55, %54 : vector<8x384xf32>
    %57 = arith.divf %55, %56 : vector<8x384xf32>
    %58 = vector.extract_strided_slice %57 {offsets = [0, 0], sizes = [8, 128], strides = [1, 1]} : vector<8x384xf32> to vector<8x128xf32>
    %59 = vector.extract_strided_slice %57 {offsets = [0, 128], sizes = [8, 128], strides = [1, 1]} : vector<8x384xf32> to vector<8x128xf32>
    %60 = vector.extract_strided_slice %57 {offsets = [0, 256], sizes = [8, 128], strides = [1, 1]} : vector<8x384xf32> to vector<8x128xf32>
    %61 = vector.extract_strided_slice %51 {offsets = [0, 384], sizes = [8, 128], strides = [1, 1]} : vector<8x512xf32> to vector<8x128xf32>
    %62 = math.tanh %61 : vector<8x128xf32>
    %63 = arith.mulf %59, %39 : vector<8x128xf32>
    %64 = arith.mulf %58, %62 : vector<8x128xf32>
    %65 = arith.addf %63, %64 : vector<8x128xf32>
    %66 = math.tanh %65 : vector<8x128xf32>
    %67 = arith.mulf %60, %66 : vector<8x128xf32>
    %68 = arith.index_cast %45 : i32 to index
    %c0_26 = arith.constant 0 : index
    %69 = vector.load %arg14[%68, %c0_26] : memref<64x128xf32, #tpu.memory_space<vmem>>, vector<8x128xf32>
    tpu.vector_store %arg14[%68, %c0_26], %67 {strides = array<i32>} : memref<64x128xf32, #tpu.memory_space<vmem>>, vector<8x128xf32>,
    %c2_i32 = arith.constant 2 : i32
    %c8_i32_27 = arith.constant 8 : i32
    %70 = arith.muli %c2_i32, %c8_i32_27 : i32
    %71 = tpu.assume_multiple %70, 8 : i32
    %72 = arith.index_cast %71 : i32 to index
    %c0_28 = arith.constant 0 : index
    %73 = vector.load %arg13[%72, %c0_28] : memref<64x512xf32, #tpu.memory_space<vmem>>, vector<8x512xf32>
    %74 = arith.truncf %67 : vector<8x128xf32> to vector<8x128xbf16>
    %c0_29 = arith.constant 0 : index
    %c0_30 = arith.constant 0 : index
    %75 = vector.load %arg6[%c0_29, %c0_30] : memref<128x512xbf16, #tpu.memory_space<vmem>>, vector<128x512xbf16>
    %cst_31 = arith.constant dense<0.000000e+00> : vector<8x512xf32>
    %76 = tpu.matmul %74, %75, %cst_31 {dimension_numbers = #tpu.dot_dimension_numbers<[1], [0], [0], [1], [0, 0, 1, 1], [], []>} : vector<8x128xbf16>, vector<128x512xbf16>, vector<8x512xf32> -> vector<8x512xf32>
    %77 = arith.addf %73, %76 : vector<8x512xf32>
    %78 = vector.extract_strided_slice %77 {offsets = [0, 0], sizes = [8, 384], strides = [1, 1]} : vector<8x512xf32> to vector<8x384xf32>
    %79 = arith.negf %78 : vector<8x384xf32>
    %80 = math.exp %79 : vector<8x384xf32>
    %cst_32 = arith.constant 1.000000e+00 : f32
    %81 = vector.broadcast %cst_32 : f32 to vector<8x384xf32>
    %82 = arith.addf %81, %80 : vector<8x384xf32>
    %83 = arith.divf %81, %82 : vector<8x384xf32>
    %84 = vector.extract_strided_slice %83 {offsets = [0, 0], sizes = [8, 128], strides = [1, 1]} : vector<8x384xf32> to vector<8x128xf32>
    %85 = vector.extract_strided_slice %83 {offsets = [0, 128], sizes = [8, 128], strides = [1, 1]} : vector<8x384xf32> to vector<8x128xf32>
    %86 = vector.extract_strided_slice %83 {offsets = [0, 256], sizes = [8, 128], strides = [1, 1]} : vector<8x384xf32> to vector<8x128xf32>
    %87 = vector.extract_strided_slice %77 {offsets = [0, 384], sizes = [8, 128], strides = [1, 1]} : vector<8x512xf32> to vector<8x128xf32>
    %88 = math.tanh %87 : vector<8x128xf32>
    %89 = arith.mulf %85, %65 : vector<8x128xf32>
    %90 = arith.mulf %84, %88 : vector<8x128xf32>
    %91 = arith.addf %89, %90 : vector<8x128xf32>
    %92 = math.tanh %91 : vector<8x128xf32>
    %93 = arith.mulf %86, %92 : vector<8x128xf32>
    %94 = arith.index_cast %71 : i32 to index
    %c0_33 = arith.constant 0 : index
    %95 = vector.load %arg14[%94, %c0_33] : memref<64x128xf32, #tpu.memory_space<vmem>>, vector<8x128xf32>
    tpu.vector_store %arg14[%94, %c0_33], %93 {strides = array<i32>} : memref<64x128xf32, #tpu.memory_space<vmem>>, vector<8x128xf32>,
    %c3_i32 = arith.constant 3 : i32
    %c8_i32_34 = arith.constant 8 : i32
    %96 = arith.muli %c3_i32, %c8_i32_34 : i32
    %97 = tpu.assume_multiple %96, 8 : i32
    %98 = arith.index_cast %97 : i32 to index
    %c0_35 = arith.constant 0 : index
    %99 = vector.load %arg13[%98, %c0_35] : memref<64x512xf32, #tpu.memory_space<vmem>>, vector<8x512xf32>
    %100 = arith.truncf %93 : vector<8x128xf32> to vector<8x128xbf16>
    %c0_36 = arith.constant 0 : index
    %c0_37 = arith.constant 0 : index
    %101 = vector.load %arg6[%c0_36, %c0_37] : memref<128x512xbf16, #tpu.memory_space<vmem>>, vector<128x512xbf16>
    %cst_38 = arith.constant dense<0.000000e+00> : vector<8x512xf32>
    %102 = tpu.matmul %100, %101, %cst_38 {dimension_numbers = #tpu.dot_dimension_numbers<[1], [0], [0], [1], [0, 0, 1, 1], [], []>} : vector<8x128xbf16>, vector<128x512xbf16>, vector<8x512xf32> -> vector<8x512xf32>
    %103 = arith.addf %99, %102 : vector<8x512xf32>
    %104 = vector.extract_strided_slice %103 {offsets = [0, 0], sizes = [8, 384], strides = [1, 1]} : vector<8x512xf32> to vector<8x384xf32>
    %105 = arith.negf %104 : vector<8x384xf32>
    %106 = math.exp %105 : vector<8x384xf32>
    %cst_39 = arith.constant 1.000000e+00 : f32
    %107 = vector.broadcast %cst_39 : f32 to vector<8x384xf32>
    %108 = arith.addf %107, %106 : vector<8x384xf32>
    %109 = arith.divf %107, %108 : vector<8x384xf32>
    %110 = vector.extract_strided_slice %109 {offsets = [0, 0], sizes = [8, 128], strides = [1, 1]} : vector<8x384xf32> to vector<8x128xf32>
    %111 = vector.extract_strided_slice %109 {offsets = [0, 128], sizes = [8, 128], strides = [1, 1]} : vector<8x384xf32> to vector<8x128xf32>
    %112 = vector.extract_strided_slice %109 {offsets = [0, 256], sizes = [8, 128], strides = [1, 1]} : vector<8x384xf32> to vector<8x128xf32>
    %113 = vector.extract_strided_slice %103 {offsets = [0, 384], sizes = [8, 128], strides = [1, 1]} : vector<8x512xf32> to vector<8x128xf32>
    %114 = math.tanh %113 : vector<8x128xf32>
    %115 = arith.mulf %111, %91 : vector<8x128xf32>
    %116 = arith.mulf %110, %114 : vector<8x128xf32>
    %117 = arith.addf %115, %116 : vector<8x128xf32>
    %118 = math.tanh %117 : vector<8x128xf32>
    %119 = arith.mulf %112, %118 : vector<8x128xf32>
    %120 = arith.index_cast %97 : i32 to index
    %c0_40 = arith.constant 0 : index
    %121 = vector.load %arg14[%120, %c0_40] : memref<64x128xf32, #tpu.memory_space<vmem>>, vector<8x128xf32>
    tpu.vector_store %arg14[%120, %c0_40], %119 {strides = array<i32>} : memref<64x128xf32, #tpu.memory_space<vmem>>, vector<8x128xf32>,
    %c4_i32 = arith.constant 4 : i32
    %c8_i32_41 = arith.constant 8 : i32
    %122 = arith.muli %c4_i32, %c8_i32_41 : i32
    %123 = tpu.assume_multiple %122, 8 : i32
    %124 = arith.index_cast %123 : i32 to index
    %c0_42 = arith.constant 0 : index
    %125 = vector.load %arg13[%124, %c0_42] : memref<64x512xf32, #tpu.memory_space<vmem>>, vector<8x512xf32>
    %126 = arith.truncf %119 : vector<8x128xf32> to vector<8x128xbf16>
    %c0_43 = arith.constant 0 : index
    %c0_44 = arith.constant 0 : index
    %127 = vector.load %arg6[%c0_43, %c0_44] : memref<128x512xbf16, #tpu.memory_space<vmem>>, vector<128x512xbf16>
    %cst_45 = arith.constant dense<0.000000e+00> : vector<8x512xf32>
    %128 = tpu.matmul %126, %127, %cst_45 {dimension_numbers = #tpu.dot_dimension_numbers<[1], [0], [0], [1], [0, 0, 1, 1], [], []>} : vector<8x128xbf16>, vector<128x512xbf16>, vector<8x512xf32> -> vector<8x512xf32>
    %129 = arith.addf %125, %128 : vector<8x512xf32>
    %130 = vector.extract_strided_slice %129 {offsets = [0, 0], sizes = [8, 384], strides = [1, 1]} : vector<8x512xf32> to vector<8x384xf32>
    %131 = arith.negf %130 : vector<8x384xf32>
    %132 = math.exp %131 : vector<8x384xf32>
    %cst_46 = arith.constant 1.000000e+00 : f32
    %133 = vector.broadcast %cst_46 : f32 to vector<8x384xf32>
    %134 = arith.addf %133, %132 : vector<8x384xf32>
    %135 = arith.divf %133, %134 : vector<8x384xf32>
    %136 = vector.extract_strided_slice %135 {offsets = [0, 0], sizes = [8, 128], strides = [1, 1]} : vector<8x384xf32> to vector<8x128xf32>
    %137 = vector.extract_strided_slice %135 {offsets = [0, 128], sizes = [8, 128], strides = [1, 1]} : vector<8x384xf32> to vector<8x128xf32>
    %138 = vector.extract_strided_slice %135 {offsets = [0, 256], sizes = [8, 128], strides = [1, 1]} : vector<8x384xf32> to vector<8x128xf32>
    %139 = vector.extract_strided_slice %129 {offsets = [0, 384], sizes = [8, 128], strides = [1, 1]} : vector<8x512xf32> to vector<8x128xf32>
    %140 = math.tanh %139 : vector<8x128xf32>
    %141 = arith.mulf %137, %117 : vector<8x128xf32>
    %142 = arith.mulf %136, %140 : vector<8x128xf32>
    %143 = arith.addf %141, %142 : vector<8x128xf32>
    %144 = math.tanh %143 : vector<8x128xf32>
    %145 = arith.mulf %138, %144 : vector<8x128xf32>
    %146 = arith.index_cast %123 : i32 to index
    %c0_47 = arith.constant 0 : index
    %147 = vector.load %arg14[%146, %c0_47] : memref<64x128xf32, #tpu.memory_space<vmem>>, vector<8x128xf32>
    tpu.vector_store %arg14[%146, %c0_47], %145 {strides = array<i32>} : memref<64x128xf32, #tpu.memory_space<vmem>>, vector<8x128xf32>,
    %c5_i32 = arith.constant 5 : i32
    %c8_i32_48 = arith.constant 8 : i32
    %148 = arith.muli %c5_i32, %c8_i32_48 : i32
    %149 = tpu.assume_multiple %148, 8 : i32
    %150 = arith.index_cast %149 : i32 to index
    %c0_49 = arith.constant 0 : index
    %151 = vector.load %arg13[%150, %c0_49] : memref<64x512xf32, #tpu.memory_space<vmem>>, vector<8x512xf32>
    %152 = arith.truncf %145 : vector<8x128xf32> to vector<8x128xbf16>
    %c0_50 = arith.constant 0 : index
    %c0_51 = arith.constant 0 : index
    %153 = vector.load %arg6[%c0_50, %c0_51] : memref<128x512xbf16, #tpu.memory_space<vmem>>, vector<128x512xbf16>
    %cst_52 = arith.constant dense<0.000000e+00> : vector<8x512xf32>
    %154 = tpu.matmul %152, %153, %cst_52 {dimension_numbers = #tpu.dot_dimension_numbers<[1], [0], [0], [1], [0, 0, 1, 1], [], []>} : vector<8x128xbf16>, vector<128x512xbf16>, vector<8x512xf32> -> vector<8x512xf32>
    %155 = arith.addf %151, %154 : vector<8x512xf32>
    %156 = vector.extract_strided_slice %155 {offsets = [0, 0], sizes = [8, 384], strides = [1, 1]} : vector<8x512xf32> to vector<8x384xf32>
    %157 = arith.negf %156 : vector<8x384xf32>
    %158 = math.exp %157 : vector<8x384xf32>
    %cst_53 = arith.constant 1.000000e+00 : f32
    %159 = vector.broadcast %cst_53 : f32 to vector<8x384xf32>
    %160 = arith.addf %159, %158 : vector<8x384xf32>
    %161 = arith.divf %159, %160 : vector<8x384xf32>
    %162 = vector.extract_strided_slice %161 {offsets = [0, 0], sizes = [8, 128], strides = [1, 1]} : vector<8x384xf32> to vector<8x128xf32>
    %163 = vector.extract_strided_slice %161 {offsets = [0, 128], sizes = [8, 128], strides = [1, 1]} : vector<8x384xf32> to vector<8x128xf32>
    %164 = vector.extract_strided_slice %161 {offsets = [0, 256], sizes = [8, 128], strides = [1, 1]} : vector<8x384xf32> to vector<8x128xf32>
    %165 = vector.extract_strided_slice %155 {offsets = [0, 384], sizes = [8, 128], strides = [1, 1]} : vector<8x512xf32> to vector<8x128xf32>
    %166 = math.tanh %165 : vector<8x128xf32>
    %167 = arith.mulf %163, %143 : vector<8x128xf32>
    %168 = arith.mulf %162, %166 : vector<8x128xf32>
    %169 = arith.addf %167, %168 : vector<8x128xf32>
    %170 = math.tanh %169 : vector<8x128xf32>
    %171 = arith.mulf %164, %170 : vector<8x128xf32>
    %172 = arith.index_cast %149 : i32 to index
    %c0_54 = arith.constant 0 : index
    %173 = vector.load %arg14[%172, %c0_54] : memref<64x128xf32, #tpu.memory_space<vmem>>, vector<8x128xf32>
    tpu.vector_store %arg14[%172, %c0_54], %171 {strides = array<i32>} : memref<64x128xf32, #tpu.memory_space<vmem>>, vector<8x128xf32>,
    %c6_i32 = arith.constant 6 : i32
    %c8_i32_55 = arith.constant 8 : i32
    %174 = arith.muli %c6_i32, %c8_i32_55 : i32
    %175 = tpu.assume_multiple %174, 8 : i32
    %176 = arith.index_cast %175 : i32 to index
    %c0_56 = arith.constant 0 : index
    %177 = vector.load %arg13[%176, %c0_56] : memref<64x512xf32, #tpu.memory_space<vmem>>, vector<8x512xf32>
    %178 = arith.truncf %171 : vector<8x128xf32> to vector<8x128xbf16>
    %c0_57 = arith.constant 0 : index
    %c0_58 = arith.constant 0 : index
    %179 = vector.load %arg6[%c0_57, %c0_58] : memref<128x512xbf16, #tpu.memory_space<vmem>>, vector<128x512xbf16>
    %cst_59 = arith.constant dense<0.000000e+00> : vector<8x512xf32>
    %180 = tpu.matmul %178, %179, %cst_59 {dimension_numbers = #tpu.dot_dimension_numbers<[1], [0], [0], [1], [0, 0, 1, 1], [], []>} : vector<8x128xbf16>, vector<128x512xbf16>, vector<8x512xf32> -> vector<8x512xf32>
    %181 = arith.addf %177, %180 : vector<8x512xf32>
    %182 = vector.extract_strided_slice %181 {offsets = [0, 0], sizes = [8, 384], strides = [1, 1]} : vector<8x512xf32> to vector<8x384xf32>
    %183 = arith.negf %182 : vector<8x384xf32>
    %184 = math.exp %183 : vector<8x384xf32>
    %cst_60 = arith.constant 1.000000e+00 : f32
    %185 = vector.broadcast %cst_60 : f32 to vector<8x384xf32>
    %186 = arith.addf %185, %184 : vector<8x384xf32>
    %187 = arith.divf %185, %186 : vector<8x384xf32>
    %188 = vector.extract_strided_slice %187 {offsets = [0, 0], sizes = [8, 128], strides = [1, 1]} : vector<8x384xf32> to vector<8x128xf32>
    %189 = vector.extract_strided_slice %187 {offsets = [0, 128], sizes = [8, 128], strides = [1, 1]} : vector<8x384xf32> to vector<8x128xf32>
    %190 = vector.extract_strided_slice %187 {offsets = [0, 256], sizes = [8, 128], strides = [1, 1]} : vector<8x384xf32> to vector<8x128xf32>
    %191 = vector.extract_strided_slice %181 {offsets = [0, 384], sizes = [8, 128], strides = [1, 1]} : vector<8x512xf32> to vector<8x128xf32>
    %192 = math.tanh %191 : vector<8x128xf32>
    %193 = arith.mulf %189, %169 : vector<8x128xf32>
    %194 = arith.mulf %188, %192 : vector<8x128xf32>
    %195 = arith.addf %193, %194 : vector<8x128xf32>
    %196 = math.tanh %195 : vector<8x128xf32>
    %197 = arith.mulf %190, %196 : vector<8x128xf32>
    %198 = arith.index_cast %175 : i32 to index
    %c0_61 = arith.constant 0 : index
    %199 = vector.load %arg14[%198, %c0_61] : memref<64x128xf32, #tpu.memory_space<vmem>>, vector<8x128xf32>
    tpu.vector_store %arg14[%198, %c0_61], %197 {strides = array<i32>} : memref<64x128xf32, #tpu.memory_space<vmem>>, vector<8x128xf32>,
    %c7_i32 = arith.constant 7 : i32
    %c8_i32_62 = arith.constant 8 : i32
    %200 = arith.muli %c7_i32, %c8_i32_62 : i32
    %201 = tpu.assume_multiple %200, 8 : i32
    %202 = arith.index_cast %201 : i32 to index
    %c0_63 = arith.constant 0 : index
    %203 = vector.load %arg13[%202, %c0_63] : memref<64x512xf32, #tpu.memory_space<vmem>>, vector<8x512xf32>
    %204 = arith.truncf %197 : vector<8x128xf32> to vector<8x128xbf16>
    %c0_64 = arith.constant 0 : index
    %c0_65 = arith.constant 0 : index
    %205 = vector.load %arg6[%c0_64, %c0_65] : memref<128x512xbf16, #tpu.memory_space<vmem>>, vector<128x512xbf16>
    %cst_66 = arith.constant dense<0.000000e+00> : vector<8x512xf32>
    %206 = tpu.matmul %204, %205, %cst_66 {dimension_numbers = #tpu.dot_dimension_numbers<[1], [0], [0], [1], [0, 0, 1, 1], [], []>} : vector<8x128xbf16>, vector<128x512xbf16>, vector<8x512xf32> -> vector<8x512xf32>
    %207 = arith.addf %203, %206 : vector<8x512xf32>
    %208 = vector.extract_strided_slice %207 {offsets = [0, 0], sizes = [8, 384], strides = [1, 1]} : vector<8x512xf32> to vector<8x384xf32>
    %209 = arith.negf %208 : vector<8x384xf32>
    %210 = math.exp %209 : vector<8x384xf32>
    %cst_67 = arith.constant 1.000000e+00 : f32
    %211 = vector.broadcast %cst_67 : f32 to vector<8x384xf32>
    %212 = arith.addf %211, %210 : vector<8x384xf32>
    %213 = arith.divf %211, %212 : vector<8x384xf32>
    %214 = vector.extract_strided_slice %213 {offsets = [0, 0], sizes = [8, 128], strides = [1, 1]} : vector<8x384xf32> to vector<8x128xf32>
    %215 = vector.extract_strided_slice %213 {offsets = [0, 128], sizes = [8, 128], strides = [1, 1]} : vector<8x384xf32> to vector<8x128xf32>
    %216 = vector.extract_strided_slice %213 {offsets = [0, 256], sizes = [8, 128], strides = [1, 1]} : vector<8x384xf32> to vector<8x128xf32>
    %217 = vector.extract_strided_slice %207 {offsets = [0, 384], sizes = [8, 128], strides = [1, 1]} : vector<8x512xf32> to vector<8x128xf32>
    %218 = math.tanh %217 : vector<8x128xf32>
    %219 = arith.mulf %215, %195 : vector<8x128xf32>
    %220 = arith.mulf %214, %218 : vector<8x128xf32>
    %221 = arith.addf %219, %220 : vector<8x128xf32>
    %222 = math.tanh %221 : vector<8x128xf32>
    %223 = arith.mulf %216, %222 : vector<8x128xf32>
    %224 = arith.index_cast %201 : i32 to index
    %c0_68 = arith.constant 0 : index
    %225 = vector.load %arg14[%224, %c0_68] : memref<64x128xf32, #tpu.memory_space<vmem>>, vector<8x128xf32>
    tpu.vector_store %arg14[%224, %c0_68], %223 {strides = array<i32>} : memref<64x128xf32, #tpu.memory_space<vmem>>, vector<8x128xf32>,
    %c8_i32_69 = arith.constant 8 : i32
    %c0_70 = arith.constant 0 : index
    %c0_71 = arith.constant 0 : index
    %226 = vector.load %arg14[%c0_70, %c0_71] : memref<64x128xf32, #tpu.memory_space<vmem>>, vector<64x128xf32>
    %227 = arith.truncf %226 : vector<64x128xf32> to vector<64x128xbf16>
    %c0_72 = arith.constant 0 : index
    %c0_73 = arith.constant 0 : index
    %228 = vector.load %arg8[%c0_72, %c0_73] : memref<128x128xbf16, #tpu.memory_space<vmem>>, vector<128x128xbf16>
    %cst_74 = arith.constant dense<0.000000e+00> : vector<64x128xf32>
    %229 = tpu.matmul %227, %228, %cst_74 {dimension_numbers = #tpu.dot_dimension_numbers<[1], [0], [0], [1], [0, 0, 1, 1], [], []>} : vector<64x128xbf16>, vector<128x128xbf16>, vector<64x128xf32> -> vector<64x128xf32>
    %c0_75 = arith.constant 0 : index
    %c0_76 = arith.constant 0 : index
    %230 = vector.load %arg9[%c0_75, %c0_76] : memref<1x128xf32, #tpu.memory_space<vmem>>, vector<1x128xf32>
    %231 = vector.broadcast %230 : vector<1x128xf32> to vector<64x128xf32>
    %232 = arith.addf %229, %231 : vector<64x128xf32>
    %c0_77 = arith.constant 0 : index
    %c0_78 = arith.constant 0 : index
    %233 = vector.load %arg10[%c0_77, %c0_78] : memref<64x128xf32, #tpu.memory_space<vmem>>, vector<64x128xf32>
    tpu.vector_store %arg10[%c0_77, %c0_78], %232 {strides = array<i32>} : memref<64x128xf32, #tpu.memory_space<vmem>>, vector<64x128xf32>,
    %c0_79 = arith.constant 0 : index
    %c0_80 = arith.constant 0 : index
    %234 = vector.load %arg11[%c0_79, %c0_80] : memref<8x128xf32, #tpu.memory_space<vmem>>, vector<8x128xf32>
    tpu.vector_store %arg11[%c0_79, %c0_80], %223 {strides = array<i32>} : memref<8x128xf32, #tpu.memory_space<vmem>>, vector<8x128xf32>,
    %c0_81 = arith.constant 0 : index
    %c0_82 = arith.constant 0 : index
    %235 = vector.load %arg12[%c0_81, %c0_82] : memref<8x128xf32, #tpu.memory_space<vmem>>, vector<8x128xf32>
    tpu.vector_store %arg12[%c0_81, %c0_82], %221 {strides = array<i32>} : memref<8x128xf32, #tpu.memory_space<vmem>>, vector<8x128xf32>,
    return
  }
  func.func @transform_0(%arg0: i32) -> (i32, i32) {
    %c0_i32 = arith.constant 0 : i32
    %c0_i32_0 = arith.constant 0 : i32
    %c0_i32_1 = arith.constant 0 : i32
    return %c0_i32, %c0_i32_0 : i32, i32
  }
  func.func @transform_1(%arg0: i32) -> (i32, i32) {
    %c0_i32 = arith.constant 0 : i32
    %c0_i32_0 = arith.constant 0 : i32
    %c0_i32_1 = arith.constant 0 : i32
    return %c0_i32, %c0_i32_0 : i32, i32
  }
  func.func @transform_2(%arg0: i32) -> (i32, i32) {
    %c0_i32 = arith.constant 0 : i32
    %c0_i32_0 = arith.constant 0 : i32
    %c0_i32_1 = arith.constant 0 : i32
    return %c0_i32, %c0_i32_0 : i32, i32
  }
  func.func @transform_3(%arg0: i32) -> (i32, i32) {
    %c0_i32 = arith.constant 0 : i32
    %c0_i32_0 = arith.constant 0 : i32
    %c0_i32_1 = arith.constant 0 : i32
    return %c0_i32, %c0_i32_0 : i32, i32
  }
  func.func @transform_4(%arg0: i32) -> (i32, i32) {
    %c0_i32 = arith.constant 0 : i32
    %c0_i32_0 = arith.constant 0 : i32
    %c0_i32_1 = arith.constant 0 : i32
    return %c0_i32, %c0_i32_0 : i32, i32
  }
  func.func @transform_5(%arg0: i32) -> (i32, i32) {
    %c0_i32 = arith.constant 0 : i32
    %c0_i32_0 = arith.constant 0 : i32
    %c0_i32_1 = arith.constant 0 : i32
    return %c0_i32, %c0_i32_0 : i32, i32
  }
  func.func @transform_6(%arg0: i32) -> (i32, i32) {
    %c0_i32 = arith.constant 0 : i32
    %c0_i32_0 = arith.constant 0 : i32
    %c0_i32_1 = arith.constant 0 : i32
    return %c0_i32, %c0_i32_0 : i32, i32
  }
  func.func @transform_7(%arg0: i32) -> (i32, i32) {
    %c0_i32 = arith.constant 0 : i32
    %c0_i32_0 = arith.constant 0 : i32
    %c0_i32_1 = arith.constant 0 : i32
    return %c0_i32, %c0_i32_0 : i32, i32
  }
  func.func @transform_8(%arg0: i32) -> (i32, i32) {
    %c0_i32 = arith.constant 0 : i32
    %c0_i32_0 = arith.constant 0 : i32
    %c0_i32_1 = arith.constant 0 : i32
    return %c0_i32, %c0_i32_0 : i32, i32
  }
  func.func @transform_9(%arg0: i32) -> (i32, i32) {
    %c0_i32 = arith.constant 0 : i32
    %c0_i32_0 = arith.constant 0 : i32
    %c0_i32_1 = arith.constant 0 : i32
    return %c0_i32, %c0_i32_0 : i32, i32
  }
  func.func @transform_10(%arg0: i32) -> (i32, i32) {
    %c0_i32 = arith.constant 0 : i32
    %c0_i32_0 = arith.constant 0 : i32
    %c0_i32_1 = arith.constant 0 : i32
    return %c0_i32, %c0_i32_0 : i32, i32
  }
  func.func @transform_11(%arg0: i32) -> (i32, i32) {
    %c0_i32 = arith.constant 0 : i32
    %c0_i32_0 = arith.constant 0 : i32
    %c0_i32_1 = arith.constant 0 : i32
    return %c0_i32, %c0_i32_0 : i32, i32
  }
}

</mosaic_0001>

<llo_original>
// kernel: tpu_custom_call.1
$region0: #{tpu_custom_call.1}
  #allocation0 [shape = 'u32[]', space=smem, size = 0x4, offset = 0x4, fixed_abs, tag = 'smem constant byte address 0x4 - core index']
  #allocation1 [shape = 'u32[144,128]{1,0:T(1,128)}', space=vmem, size = 0x12000, scoped, tag = 'internal scratch']
  #allocation2 [shape = 'f32[64,512]{1,0:T(8,128)}', space=vmem, size = 0x20000, scoped, tag = 'scratch operand']
  #allocation3 [shape = 'f32[64,128]{1,0:T(8,128)}', space=vmem, size = 0x8000, scoped, tag = 'scratch operand']
  %s0 = inlined_call_operand.vmem [shape: s32[64,1], index: 0, kind: input, shape index: {}]
  %s1 = inlined_call_operand.vmem [shape: f32[8,128], index: 1, kind: input, shape index: {}]
  %s2 = inlined_call_operand.hbm [shape: f32[8,128], index: 2, kind: input, shape index: {}]
  %s3 = inlined_call_operand.vmem [shape: bf16[32,64], index: 3, kind: input, shape index: {}]
  %s4 = inlined_call_operand.hbm [shape: bf16[64,512], index: 4, kind: input, shape index: {}]
  %s5 = inlined_call_operand.hbm [shape: bf16[128,512], index: 5, kind: input, shape index: {}]
  %s6 = inlined_call_operand.hbm [shape: f32[1,512], index: 6, kind: input, shape index: {}]
  %s7 = inlined_call_operand.vmem [shape: bf16[128,128], index: 7, kind: input, shape index: {}]
  %s8 = inlined_call_operand.vmem [shape: f32[1,128], index: 8, kind: input, shape index: {}]
  %s9 = inlined_call_operand.hbm [shape: f32[64,128], index: 9, kind: output, shape index: {0}]
  %s10 = inlined_call_operand.hbm [shape: f32[8,128], index: 10, kind: output, shape index: {1}]
  %s11 = inlined_call_operand.hbm [shape: f32[8,128], index: 11, kind: output, shape index: {2}]
  %12 = xla_tuple %s9, %s10, %s11
  %s13 = sld [smem:[#allocation0]]
  $region78: #{tpu_custom_call.1} parent=0
    _
  %s15 = ssub.s32 1, %s13
  %s16 = scalar_select 0, %s15, %s13
  $region1: #{tpu_custom_call.1} parent=0
    #allocation4 [shape = 'u8[4096]{0}', space=vmem, size = 0x1000, scoped, tag = 'input window, operand 2, single buffered']
    #allocation5 [shape = 's32[1]{0}', space=sflag, size = 0x4, scoped, tag = 'scoped memory for tpu_custom_call.1']
    #allocation6 [shape = 's32[1]{0}', space=sflag, size = 0x4, scoped, tag = 'scoped memory for tpu_custom_call.1']
    #allocation7 [shape = 'u8[65536]{0}', space=vmem, size = 0x10000, scoped, tag = 'input window, operand 4, single buffered']
    #allocation8 [shape = 's32[1]{0}', space=sflag, size = 0x4, scoped, tag = 'scoped memory for tpu_custom_call.1']
    #allocation9 [shape = 'u8[131072]{0}', space=vmem, size = 0x20000, scoped, tag = 'input window, operand 5, single buffered']
    #allocation10 [shape = 'u8[2048]{0}', space=vmem, size = 0x800, scoped, tag = 'input window, operand 6, single buffered']
    #allocation11 [shape = 's32[1]{0}', space=sflag, size = 0x4, scoped, tag = 'scoped memory for tpu_custom_call.1']
    #allocation12 [shape = 'u8[32768]{0}', space=vmem, size = 0x8000, scoped, tag = 'output window, operand 0, single buffered']
    #allocation13 [shape = 'u8[4096]{0}', space=vmem, size = 0x1000, scoped, tag = 'output window, operand 1, single buffered']
    #allocation14 [shape = 's32[1]{0}', space=sflag, size = 0x4, scoped, tag = 'scoped memory for tpu_custom_call.1']
    #allocation15 [shape = 'u8[4096]{0}', space=vmem, size = 0x1000, scoped, tag = 'output window, operand 2, single buffered']
    %17 = vsyncpa [#allocation5], 0
    %18 = vsyncpa [#allocation8], 0
    %19 = vsyncpa [#allocation11], 0
    %20 = vsyncpa [#allocation6], 0
    %21 = vsyncpa [#allocation14], 0
    // Predicated region
    $region2: #{tpu_custom_call.1} parent=1 // pred_check
      _
    $region3: #{tpu_custom_call.1} parent=1 // pred_check_branch
      %23 = sbr.rel (0) target = $region5
    $region4: #{tpu_custom_call.1} parent=1 // pred_region
      _
    $region5: #{tpu_custom_call.1} parent=1 // pred_fallthru
      _
    // Predicated region
    $region6: #{tpu_custom_call.1} parent=1 // pred_check
      _
    $region7: #{tpu_custom_call.1} parent=1 // pred_check_branch
      %25 = sbr.rel (0) target = $region9
    $region8: #{tpu_custom_call.1} parent=1 // pred_region
      _
    $region9: #{tpu_custom_call.1} parent=1 // pred_fallthru
      _
    // Predicated region
    $region10: #{tpu_custom_call.1} parent=1 // pred_check
      _
    $region11: #{tpu_custom_call.1} parent=1 // pred_check_branch
      %27 = sbr.rel (0) target = $region13
    $region12: #{tpu_custom_call.1} parent=1 // pred_region
      %s29 = ssub.s32 128, 128
      %30 = vsyncadd [#allocation5], %s29
      %s32 = sshll.u32 [#allocation4], 4
      %s33 = int_to_ptr.vmem [resolvable:$true] %s32
      %35 = dma.hbm_to_vmem [thread:$0]  %s2, 128, %s33, [#allocation5]
    $region13: #{tpu_custom_call.1} parent=1 // pred_fallthru
      _
    // Predicated region
    $region14: #{tpu_custom_call.1} parent=1 // pred_check
      _
    $region15: #{tpu_custom_call.1} parent=1 // pred_check_branch
      %37 = sbr.rel (0) target = $region17
    $region16: #{tpu_custom_call.1} parent=1 // pred_region
      _
    $region17: #{tpu_custom_call.1} parent=1 // pred_fallthru
      _
    // Predicated region
    $region18: #{tpu_custom_call.1} parent=1 // pred_check
      _
    $region19: #{tpu_custom_call.1} parent=1 // pred_check_branch
      %39 = sbr.rel (0) target = $region21
    $region20: #{tpu_custom_call.1} parent=1 // pred_region
      %s41 = ssub.s32 2048, 2048
      %42 = vsyncadd [#allocation8], %s41
      %s43 = sshll.u32 [#allocation7], 4
      %s44 = int_to_ptr.vmem [resolvable:$true] %s43
      %49 = dma.hbm_to_vmem [thread:$0]  %s4, 2048, %s44, [#allocation8], 256, 256, 16
    $region21: #{tpu_custom_call.1} parent=1 // pred_fallthru
      _
    // Predicated region
    $region22: #{tpu_custom_call.1} parent=1 // pred_check
      _
    $region23: #{tpu_custom_call.1} parent=1 // pred_check_branch
      %51 = sbr.rel (0) target = $region25
    $region24: #{tpu_custom_call.1} parent=1 // pred_region
      %s53 = ssub.s32 4096, 4096
      %54 = vsyncadd [#allocation8], %s53
      %s55 = sshll.u32 [#allocation9], 4
      %s56 = int_to_ptr.vmem [resolvable:$true] %s55
      %61 = dma.hbm_to_vmem [thread:$0]  %s5, 4096, %s56, [#allocation8], 256, 256, 16
    $region25: #{tpu_custom_call.1} parent=1 // pred_fallthru
      _
    // Predicated region
    $region26: #{tpu_custom_call.1} parent=1 // pred_check
      _
    $region27: #{tpu_custom_call.1} parent=1 // pred_check_branch
      %63 = sbr.rel (0) target = $region29
    $region28: #{tpu_custom_call.1} parent=1 // pred_region
      %s65 = ssub.s32 64, 64
      %66 = vsyncadd [#allocation11], %s65
      %s68 = sshll.u32 [#allocation10], 4
      %s69 = int_to_ptr.vmem [resolvable:$true] %s68
      %71 = dma.hbm_to_vmem [thread:$0]  %s6, 64, %s69, [#allocation11]
    $region29: #{tpu_custom_call.1} parent=1 // pred_fallthru
      _
    // Predicated region
    $region30: #{tpu_custom_call.1} parent=1 // pred_check
      _
    $region31: #{tpu_custom_call.1} parent=1 // pred_check_branch
      %73 = sbr.rel (0) target = $region33
    $region32: #{tpu_custom_call.1} parent=1 // pred_region
      _
    $region33: #{tpu_custom_call.1} parent=1 // pred_fallthru
      _
    // Predicated region
    $region34: #{tpu_custom_call.1} parent=1 // pred_check
      _
    $region35: #{tpu_custom_call.1} parent=1 // pred_check_branch
      %75 = sbr.rel (0) target = $region37
    $region36: #{tpu_custom_call.1} parent=1 // pred_region
      _
    $region37: #{tpu_custom_call.1} parent=1 // pred_fallthru
      _
    // Predicated region
    $region38: #{tpu_custom_call.1} parent=1 // pred_check
      _
    $region39: #{tpu_custom_call.1} parent=1 // pred_check_branch
      %77 = sbr.rel (0) target = $region41
    $region40: #{tpu_custom_call.1} parent=1 // pred_region
      %78 = dma.done [#allocation5], 128
    $region41: #{tpu_custom_call.1} parent=1 // pred_fallthru
      _
    // Predicated region
    $region42: #{tpu_custom_call.1} parent=1 // pred_check
      _
    $region43: #{tpu_custom_call.1} parent=1 // pred_check_branch
      %80 = sbr.rel (0) target = $region45
    $region44: #{tpu_custom_call.1} parent=1 // pred_region
      %81 = dma.done [#allocation8], 2048
    $region45: #{tpu_custom_call.1} parent=1 // pred_fallthru
      _
    // Predicated region
    $region46: #{tpu_custom_call.1} parent=1 // pred_check
      _
    $region47: #{tpu_custom_call.1} parent=1 // pred_check_branch
      %83 = sbr.rel (0) target = $region49
    $region48: #{tpu_custom_call.1} parent=1 // pred_region
      %84 = dma.done [#allocation8], 4096
    $region49: #{tpu_custom_call.1} parent=1 // pred_fallthru
      _
    // Predicated region
    $region50: #{tpu_custom_call.1} parent=1 // pred_check
      _
    $region51: #{tpu_custom_call.1} parent=1 // pred_check_branch
      %86 = sbr.rel (0) target = $region53
    $region52: #{tpu_custom_call.1} parent=1 // pred_region
      %87 = dma.done [#allocation11], 64
    $region53: #{tpu_custom_call.1} parent=1 // pred_fallthru
      _
    %v89 = vld [vmem:[%s0] sm:$0xff]
    %v90 = vld [vmem:[%s0 + $0x8] sm:$0xff]
    %v91 = vld [vmem:[%s0 + $0x10] sm:$0xff]
    %v92 = vld [vmem:[%s0 + $0x18] sm:$0xff]
    %v93 = vld [vmem:[%s0 + $0x20] sm:$0xff]
    %v94 = vld [vmem:[%s0 + $0x28] sm:$0xff]
    %v95 = vld [vmem:[%s0 + $0x30] sm:$0xff]
    %v96 = vld [vmem:[%s0 + $0x38] sm:$0xff]
    %v97 = vlaneseq
    %v98 = vand.u32 %v97, 127
    %99 = vset.pattern.permute.xlu0 0
    %100 = vperm.xlu0 %99, %v89
    %v101 = vpop.permute.xlu0 %100
    %102 = vset.pattern.permute.xlu0 0
    %103 = vperm.xlu0 %102, %v90
    %v104 = vpop.permute.xlu0 %103
    %105 = vset.pattern.permute.xlu0 0
    %106 = vperm.xlu0 %105, %v91
    %v107 = vpop.permute.xlu0 %106
    %108 = vset.pattern.permute.xlu0 0
    %109 = vperm.xlu0 %108, %v92
    %v110 = vpop.permute.xlu0 %109
    %111 = vset.pattern.permute.xlu0 0
    %112 = vperm.xlu0 %111, %v93
    %v113 = vpop.permute.xlu0 %112
    %114 = vset.pattern.permute.xlu0 0
    %115 = vperm.xlu0 %114, %v94
    %v116 = vpop.permute.xlu0 %115
    %117 = vset.pattern.permute.xlu0 0
    %118 = vperm.xlu0 %117, %v95
    %v119 = vpop.permute.xlu0 %118
    %120 = vset.pattern.permute.xlu0 0
    %121 = vperm.xlu0 %120, %v96
    %v122 = vpop.permute.xlu0 %121
    %vm123 = vcmp.eq.s32.totalorder %v98, %v101
    %vm124 = vcmp.eq.s32.totalorder %v98, %v104
    %vm125 = vcmp.eq.s32.totalorder %v98, %v107
    %vm126 = vcmp.eq.s32.totalorder %v98, %v110
    %vm127 = vcmp.eq.s32.totalorder %v98, %v113
    %vm128 = vcmp.eq.s32.totalorder %v98, %v116
    %vm129 = vcmp.eq.s32.totalorder %v98, %v119
    %vm130 = vcmp.eq.s32.totalorder %v98, %v122
    %v131 = vsel %vm123, 1, 0
    %v132 = vsel %vm124, 1, 0
    %v133 = vsel %vm125, 1, 0
    %v134 = vsel %vm126, 1, 0
    %v135 = vsel %vm127, 1, 0
    %v136 = vsel %vm128, 1, 0
    %v137 = vsel %vm129, 1, 0
    %v138 = vsel %vm130, 1, 0
    %v139 = vcvt.s32.f32 %v131
    %v140 = vcvt.s32.f32 %v132
    %v141 = vcvt.s32.f32 %v133
    %v142 = vcvt.s32.f32 %v134
    %v143 = vcvt.s32.f32 %v135
    %v144 = vcvt.s32.f32 %v136
    %v145 = vcvt.s32.f32 %v137
    %v146 = vcvt.s32.f32 %v138
    %v147 = vpack.c.bf16 %v140, %v139
    %v148 = vpack.c.bf16 %v142, %v141
    %v149 = vpack.c.bf16 %v144, %v143
    %v150 = vpack.c.bf16 %v146, %v145
    %v151 = vld [vmem:[%s3] sm:$0xf]
    %v152 = vld [vmem:[%s3 + $0x4] sm:$0xf]
    %v153 = vld [vmem:[%s3 + $0x8] sm:$0xf]
    %v154 = vld [vmem:[%s3 + $0xc] sm:$0xf]
    %v159 = vunpack.c.l.b16 %v151
    %v160 = vunpack.c.l.b16 %v152
    %v161 = vunpack.c.l.b16 %v153
    %v162 = vunpack.c.l.b16 %v154
    %v163 = vpack.c.b16 %v160, %v159
    %v164 = vpack.c.b16 %v162, %v161
    %vm167 = vcmask 261120
    %v169 = vsel %vm167, %v147, 0
    %v172 = vsel %vm167, %v148, 0
    %v175 = vsel %vm167, %v149, 0
    %v178 = vsel %vm167, %v150, 0
    %180 = vmatprep.subr.bf16.mxu0 0
    %181 = vmatpush1.bf16.msra.mxu0 %v163
    %182 = vmatprep.subr.bf16.mxu0 0
    %183 = vmatpush1.bf16.msra.mxu0 %v164
    %184 = vmatprep.subr.bf16.mxu0 0
    %185 = vmatpush1.bf16.msra.mxu0 0
    %186 = vmatprep.subr.bf16.mxu0 0
    %187 = vmatpush1.bf16.msra.mxu0 0
    %188 = vmatprep.subr.bf16.mxu0 0
    %189 = vmatpush1.bf16.msra.mxu0 0
    %190 = vmatprep.subr.bf16.mxu0 0
    %191 = vmatpush1.bf16.msra.mxu0 0
    %192 = vmatprep.subr.bf16.mxu0 0
    %193 = vmatpush1.bf16.msra.mxu0 0
    %194 = vmatprep.subr.bf16.mxu0 0
    %195 = vmatpush1.bf16.msra.mxu0 0
    %196 = vmatprep.subr.bf16.mxu0 0
    %197 = vmatpush1.bf16.msra.mxu0 0
    %198 = vmatprep.subr.bf16.mxu0 0
    %199 = vmatpush1.bf16.msra.mxu0 0
    %200 = vmatprep.subr.bf16.mxu0 0
    %201 = vmatpush1.bf16.msra.mxu0 0
    %202 = vmatprep.subr.bf16.mxu0 0
    %203 = vmatpush1.bf16.msra.mxu0 0
    %204 = vmatprep.subr.bf16.mxu0 0
    %205 = vmatpush1.bf16.msra.mxu0 0
    %206 = vmatprep.subr.bf16.mxu0 0
    %207 = vmatpush1.bf16.msra.mxu0 0
    %208 = vmatprep.subr.bf16.mxu0 0
    %209 = vmatpush1.bf16.msra.mxu0 0
    %210 = vmatprep.subr.bf16.mxu0 0
    %211 = vmatpush1.bf16.msra.mxu0 0
    %212 = vmatprep.mubr.bf16.mxu0 0
    %213 = vmatmul.mubr.bf16.gmra.mrb[0].mxu0 %v169
    %v214 = vpop.f32.mrb[0].mxu0
    %v215 = vadd.f32 0.0, %v214
    %v216 = vpop.f32.mrb[0].mxu0
    %v217 = vpop.f32.mrb[0].mxu0
    %v218 = vadd.f32 0.0, %v217
    %v219 = vpop.f32.mrb[0].mxu0
    %220 = vmatprep.mubr.bf16.mxu0 0
    %221 = vmatmul.mubr.bf16.gmra.mrb[0].mxu0 %v172
    %v222 = vpop.f32.mrb[0].mxu0
    %v223 = vadd.f32 0.0, %v222
    %v224 = vpop.f32.mrb[0].mxu0
    %v225 = vpop.f32.mrb[0].mxu0
    %v226 = vadd.f32 0.0, %v225
    %v227 = vpop.f32.mrb[0].mxu0
    %228 = vmatprep.mubr.bf16.mxu0 0
    %229 = vmatmul.mubr.bf16.gmra.mrb[0].mxu0 %v175
    %v230 = vpop.f32.mrb[0].mxu0
    %v231 = vadd.f32 0.0, %v230
    %v232 = vpop.f32.mrb[0].mxu0
    %v233 = vpop.f32.mrb[0].mxu0
    %v234 = vadd.f32 0.0, %v233
    %v235 = vpop.f32.mrb[0].mxu0
    %236 = vmatprep.mubr.bf16.mxu0 0
    %237 = vmatmul.mubr.bf16.gmra.mrb[0].mxu0 %v178
    %v238 = vpop.f32.mrb[0].mxu0
    %v239 = vadd.f32 0.0, %v238
    %v240 = vpop.f32.mrb[0].mxu0
    %v241 = vpop.f32.mrb[0].mxu0
    %v242 = vadd.f32 0.0, %v241
    %v243 = vpop.f32.mrb[0].mxu0
    %244 = vdwg.mxu0
    %v245 = vpack.c.bf16 %v218, %v215
    %v246 = vpack.c.bf16 %v226, %v223
    %v247 = vpack.c.bf16 %v234, %v231
    %v248 = vpack.c.bf16 %v242, %v239
    %v249 = vld [vmem:[#allocation7] sm:$0xff]
    %v250 = vld [vmem:[#allocation7 + $0x8] sm:$0xff]
    %v251 = vld [vmem:[#allocation7 + $0x10] sm:$0xff]
    %v252 = vld [vmem:[#allocation7 + $0x18] sm:$0xff]
    %v253 = vld [vmem:[#allocation7 + $0x20] sm:$0xff]
    %v254 = vld [vmem:[#allocation7 + $0x28] sm:$0xff]
    %v255 = vld [vmem:[#allocation7 + $0x30] sm:$0xff]
    %v256 = vld [vmem:[#allocation7 + $0x38] sm:$0xff]
    %v257 = vld [vmem:[#allocation7 + $0x40] sm:$0xff]
    %v258 = vld [vmem:[#allocation7 + $0x48] sm:$0xff]
    %v259 = vld [vmem:[#allocation7 + $0x50] sm:$0xff]
    %v260 = vld [vmem:[#allocation7 + $0x58] sm:$0xff]
    %v261 = vld [vmem:[#allocation7 + $0x60] sm:$0xff]
    %v262 = vld [vmem:[#allocation7 + $0x68] sm:$0xff]
    %v263 = vld [vmem:[#allocation7 + $0x70] sm:$0xff]
    %v264 = vld [vmem:[#allocation7 + $0x78] sm:$0xff]
    %v265 = vld [vmem:[#allocation10] sm:$0xf]
    %v267 = vlaneseq
    %v268 = vshrl.u32 %v267, 7
    %v269 = vsub.s32 0, %v268
    %v270 = vrot.slane %v265, %v269
    %v271 = vlaneseq
    %v272 = vshrl.u32 %v271, 7
    %v273 = vsub.s32 1, %v272
    %v274 = vrot.slane %v265, %v273
    %v275 = vlaneseq
    %v276 = vshrl.u32 %v275, 7
    %v277 = vsub.s32 2, %v276
    %v278 = vrot.slane %v265, %v277
    %v279 = vlaneseq
    %v280 = vshrl.u32 %v279, 7
    %v281 = vsub.s32 3, %v280
    %v282 = vrot.slane %v265, %v281
    %v303 = vunpack.c.l.b16 %v249
    %v304 = vunpack.c.h.b16 %v249
    %v305 = vunpack.c.l.b16 %v250
    %v306 = vunpack.c.h.b16 %v250
    %v307 = vunpack.c.l.b16 %v251
    %v308 = vunpack.c.h.b16 %v251
    %v309 = vunpack.c.l.b16 %v252
    %v310 = vunpack.c.h.b16 %v252
    %v311 = vunpack.c.l.b16 %v253
    %v312 = vunpack.c.h.b16 %v253
    %v313 = vunpack.c.l.b16 %v254
    %v314 = vunpack.c.h.b16 %v254
    %v315 = vunpack.c.l.b16 %v255
    %v316 = vunpack.c.h.b16 %v255
    %v317 = vunpack.c.l.b16 %v256
    %v318 = vunpack.c.h.b16 %v256
    %v319 = vunpack.c.l.b16 %v257
    %v320 = vunpack.c.h.b16 %v257
    %v321 = vunpack.c.l.b16 %v258
    %v322 = vunpack.c.h.b16 %v258
    %v323 = vunpack.c.l.b16 %v259
    %v324 = vunpack.c.h.b16 %v259
    %v325 = vunpack.c.l.b16 %v260
    %v326 = vunpack.c.h.b16 %v260
    %v327 = vunpack.c.l.b16 %v261
    %v328 = vunpack.c.h.b16 %v261
    %v329 = vunpack.c.l.b16 %v262
    %v330 = vunpack.c.h.b16 %v262
    %v331 = vunpack.c.l.b16 %v263
    %v332 = vunpack.c.h.b16 %v263
    %v333 = vunpack.c.l.b16 %v264
    %v334 = vunpack.c.h.b16 %v264
    %v335 = vpack.c.b16 %v307, %v303
    %v336 = vpack.c.b16 %v308, %v304
    %v337 = vpack.c.b16 %v309, %v305
    %v338 = vpack.c.b16 %v310, %v306
    %v339 = vpack.c.b16 %v315, %v311
    %v340 = vpack.c.b16 %v316, %v312
    %v341 = vpack.c.b16 %v317, %v313
    %v342 = vpack.c.b16 %v318, %v314
    %v343 = vpack.c.b16 %v323, %v319
    %v344 = vpack.c.b16 %v324, %v320
    %v345 = vpack.c.b16 %v325, %v321
    %v346 = vpack.c.b16 %v326, %v322
    %v347 = vpack.c.b16 %v331, %v327
    %v348 = vpack.c.b16 %v332, %v328
    %v349 = vpack.c.b16 %v333, %v329
    %v350 = vpack.c.b16 %v334, %v330
    %vm367 = vcmask 523264
    %v369 = vsel %vm367, %v245, 0
    %v372 = vsel %vm367, %v246, 0
    %v375 = vsel %vm367, %v247, 0
    %v378 = vsel %vm367, %v248, 0
    %380 = vmatprep.subr.bf16.mxu0 %v336
    %381 = vmatpush1.bf16.msra.mxu0 %v335
    %382 = vmatprep.subr.bf16.mxu0 %v340
    %383 = vmatpush1.bf16.msra.mxu0 %v339
    %384 = vmatprep.subr.bf16.mxu0 %v344
    %385 = vmatpush1.bf16.msra.mxu0 %v343
    %386 = vmatprep.subr.bf16.mxu0 %v348
    %387 = vmatpush1.bf16.msra.mxu0 %v347
    %388 = vmatprep.subr.bf16.mxu0 0
    %389 = vmatpush1.bf16.msra.mxu0 0
    %390 = vmatprep.subr.bf16.mxu0 0
    %391 = vmatpush1.bf16.msra.mxu0 0
    %392 = vmatprep.subr.bf16.mxu0 0
    %393 = vmatpush1.bf16.msra.mxu0 0
    %394 = vmatprep.subr.bf16.mxu0 0
    %395 = vmatpush1.bf16.msra.mxu0 0
    %396 = vmatprep.subr.bf16.mxu0 0
    %397 = vmatpush1.bf16.msra.mxu0 0
    %398 = vmatprep.subr.bf16.mxu0 0
    %399 = vmatpush1.bf16.msra.mxu0 0
    %400 = vmatprep.subr.bf16.mxu0 0
    %401 = vmatpush1.bf16.msra.mxu0 0
    %402 = vmatprep.subr.bf16.mxu0 0
    %403 = vmatpush1.bf16.msra.mxu0 0
    %404 = vmatprep.subr.bf16.mxu0 0
    %405 = vmatpush1.bf16.msra.mxu0 0
    %406 = vmatprep.subr.bf16.mxu0 0
    %407 = vmatpush1.bf16.msra.mxu0 0
    %408 = vmatprep.subr.bf16.mxu0 0
    %409 = vmatpush1.bf16.msra.mxu0 0
    %410 = vmatprep.subr.bf16.mxu0 0
    %411 = vmatpush1.bf16.msra.mxu0 0
    %412 = vmatprep.mubr.bf16.mxu0 0
    %413 = vmatmul.mubr.bf16.gmra.mrb[0].mxu0 %v369
    %v414 = vpop.f32.mrb[0].mxu0
    %v415 = vadd.f32 %v270, %v414
    %v416 = vpop.f32.mrb[0].mxu0
    %v417 = vadd.f32 %v274, %v416
    %v418 = vpop.f32.mrb[0].mxu0
    %v419 = vadd.f32 %v270, %v418
    %v420 = vpop.f32.mrb[0].mxu0
    %v421 = vadd.f32 %v274, %v420
    %422 = vmatprep.mubr.bf16.mxu0 0
    %423 = vmatmul.mubr.bf16.gmra.mrb[0].mxu0 %v372
    %v424 = vpop.f32.mrb[0].mxu0
    %v425 = vadd.f32 %v270, %v424
    %v426 = vpop.f32.mrb[0].mxu0
    %v427 = vadd.f32 %v274, %v426
    %v428 = vpop.f32.mrb[0].mxu0
    %v429 = vadd.f32 %v270, %v428
    %v430 = vpop.f32.mrb[0].mxu0
    %v431 = vadd.f32 %v274, %v430
    %432 = vmatprep.mubr.bf16.mxu0 0
    %433 = vmatmul.mubr.bf16.gmra.mrb[0].mxu0 %v375
    %v434 = vpop.f32.mrb[0].mxu0
    %v435 = vadd.f32 %v270, %v434
    %v436 = vpop.f32.mrb[0].mxu0
    %v437 = vadd.f32 %v274, %v436
    %v438 = vpop.f32.mrb[0].mxu0
    %v439 = vadd.f32 %v270, %v438
    %v440 = vpop.f32.mrb[0].mxu0
    %v441 = vadd.f32 %v274, %v440
    %442 = vmatprep.mubr.bf16.mxu0 0
    %443 = vmatmul.mubr.bf16.gmra.mrb[0].mxu0 %v378
    %v444 = vpop.f32.mrb[0].mxu0
    %v445 = vadd.f32 %v270, %v444
    %v446 = vpop.f32.mrb[0].mxu0
    %v447 = vadd.f32 %v274, %v446
    %v448 = vpop.f32.mrb[0].mxu0
    %v449 = vadd.f32 %v270, %v448
    %v450 = vpop.f32.mrb[0].mxu0
    %v451 = vadd.f32 %v274, %v450
    %452 = vdwg.mxu0
    %453 = vmatprep.subr.bf16.mxu0 %v338
    %454 = vmatpush1.bf16.msra.mxu0 %v337
    %455 = vmatprep.subr.bf16.mxu0 %v342
    %456 = vmatpush1.bf16.msra.mxu0 %v341
    %457 = vmatprep.subr.bf16.mxu0 %v346
    %458 = vmatpush1.bf16.msra.mxu0 %v345
    %459 = vmatprep.subr.bf16.mxu0 %v350
    %460 = vmatpush1.bf16.msra.mxu0 %v349
    %461 = vmatprep.subr.bf16.mxu0 0
    %462 = vmatpush1.bf16.msra.mxu0 0
    %463 = vmatprep.subr.bf16.mxu0 0
    %464 = vmatpush1.bf16.msra.mxu0 0
    %465 = vmatprep.subr.bf16.mxu0 0
    %466 = vmatpush1.bf16.msra.mxu0 0
    %467 = vmatprep.subr.bf16.mxu0 0
    %468 = vmatpush1.bf16.msra.mxu0 0
    %469 = vmatprep.subr.bf16.mxu0 0
    %470 = vmatpush1.bf16.msra.mxu0 0
    %471 = vmatprep.subr.bf16.mxu0 0
    %472 = vmatpush1.bf16.msra.mxu0 0
    %473 = vmatprep.subr.bf16.mxu0 0
    %474 = vmatpush1.bf16.msra.mxu0 0
    %475 = vmatprep.subr.bf16.mxu0 0
    %476 = vmatpush1.bf16.msra.mxu0 0
    %477 = vmatprep.subr.bf16.mxu0 0
    %478 = vmatpush1.bf16.msra.mxu0 0
    %479 = vmatprep.subr.bf16.mxu0 0
    %480 = vmatpush1.bf16.msra.mxu0 0
    %481 = vmatprep.subr.bf16.mxu0 0
    %482 = vmatpush1.bf16.msra.mxu0 0
    %483 = vmatprep.subr.bf16.mxu0 0
    %484 = vmatpush1.bf16.msra.mxu0 0
    %485 = vmatprep.mubr.bf16.mxu0 0
    %486 = vmatmul.mubr.bf16.gmra.mrb[0].mxu0 %v369
    %v487 = vpop.f32.mrb[0].mxu0
    %v488 = vadd.f32 %v278, %v487
    %v489 = vpop.f32.mrb[0].mxu0
    %v490 = vadd.f32 %v282, %v489
    %v491 = vpop.f32.mrb[0].mxu0
    %v492 = vadd.f32 %v278, %v491
    %v493 = vpop.f32.mrb[0].mxu0
    %v494 = vadd.f32 %v282, %v493
    %495 = vmatprep.mubr.bf16.mxu0 0
    %496 = vmatmul.mubr.bf16.gmra.mrb[0].mxu0 %v372
    %v497 = vpop.f32.mrb[0].mxu0
    %v498 = vadd.f32 %v278, %v497
    %v499 = vpop.f32.mrb[0].mxu0
    %v500 = vadd.f32 %v282, %v499
    %v501 = vpop.f32.mrb[0].mxu0
    %v502 = vadd.f32 %v278, %v501
    %v503 = vpop.f32.mrb[0].mxu0
    %v504 = vadd.f32 %v282, %v503
    %505 = vmatprep.mubr.bf16.mxu0 0
    %506 = vmatmul.mubr.bf16.gmra.mrb[0].mxu0 %v375
    %v507 = vpop.f32.mrb[0].mxu0
    %v508 = vadd.f32 %v278, %v507
    %v509 = vpop.f32.mrb[0].mxu0
    %v510 = vadd.f32 %v282, %v509
    %v511 = vpop.f32.mrb[0].mxu0
    %v512 = vadd.f32 %v278, %v511
    %v513 = vpop.f32.mrb[0].mxu0
    %v514 = vadd.f32 %v282, %v513
    %515 = vmatprep.mubr.bf16.mxu0 0
    %516 = vmatmul.mubr.bf16.gmra.mrb[0].mxu0 %v378
    %v517 = vpop.f32.mrb[0].mxu0
    %v518 = vadd.f32 %v278, %v517
    %v519 = vpop.f32.mrb[0].mxu0
    %v520 = vadd.f32 %v282, %v519
    %v521 = vpop.f32.mrb[0].mxu0
    %v522 = vadd.f32 %v278, %v521
    %v523 = vpop.f32.mrb[0].mxu0
    %v524 = vadd.f32 %v282, %v523
    %525 = vdwg.mxu0
    %526 = vst [vmem:[#allocation2] sm:$0xff] %v415
    %527 = vst [vmem:[#allocation2 + $0x8] sm:$0xff] %v417
    %528 = vst [vmem:[#allocation2 + $0x10] sm:$0xff] %v488
    %529 = vst [vmem:[#allocation2 + $0x18] sm:$0xff] %v490
    %530 = vst [vmem:[#allocation2 + $0x20] sm:$0xff] %v419
    %531 = vst [vmem:[#allocation2 + $0x28] sm:$0xff] %v421
    %532 = vst [vmem:[#allocation2 + $0x30] sm:$0xff] %v492
    %533 = vst [vmem:[#allocation2 + $0x38] sm:$0xff] %v494
    %534 = vst [vmem:[#allocation2 + $0x40] sm:$0xff] %v425
    %535 = vst [vmem:[#allocation2 + $0x48] sm:$0xff] %v427
    %536 = vst [vmem:[#allocation2 + $0x50] sm:$0xff] %v498
    %537 = vst [vmem:[#allocation2 + $0x58] sm:$0xff] %v500
    %538 = vst [vmem:[#allocation2 + $0x60] sm:$0xff] %v429
    %539 = vst [vmem:[#allocation2 + $0x68] sm:$0xff] %v431
    %540 = vst [vmem:[#allocation2 + $0x70] sm:$0xff] %v502
    %541 = vst [vmem:[#allocation2 + $0x78] sm:$0xff] %v504
    %542 = vst [vmem:[#allocation2 + $0x80] sm:$0xff] %v435
    %543 = vst [vmem:[#allocation2 + $0x88] sm:$0xff] %v437
    %544 = vst [vmem:[#allocation2 + $0x90] sm:$0xff] %v508
    %545 = vst [vmem:[#allocation2 + $0x98] sm:$0xff] %v510
    %546 = vst [vmem:[#allocation2 + $0xa0] sm:$0xff] %v439
    %547 = vst [vmem:[#allocation2 + $0xa8] sm:$0xff] %v441
    %548 = vst [vmem:[#allocation2 + $0xb0] sm:$0xff] %v512
    %549 = vst [vmem:[#allocation2 + $0xb8] sm:$0xff] %v514
    %550 = vst [vmem:[#allocation2 + $0xc0] sm:$0xff] %v445
    %551 = vst [vmem:[#allocation2 + $0xc8] sm:$0xff] %v447
    %552 = vst [vmem:[#allocation2 + $0xd0] sm:$0xff] %v518
    %553 = vst [vmem:[#allocation2 + $0xd8] sm:$0xff] %v520
    %554 = vst [vmem:[#allocation2 + $0xe0] sm:$0xff] %v449
    %555 = vst [vmem:[#allocation2 + $0xe8] sm:$0xff] %v451
    %556 = vst [vmem:[#allocation2 + $0xf0] sm:$0xff] %v522
    %557 = vst [vmem:[#allocation2 + $0xf8] sm:$0xff] %v524
    %v558 = vld [vmem:[%s1] sm:$0xff]
    %v559 = vld [vmem:[#allocation4] sm:$0xff]
    %s560 = smul.u32 0, 4
    %s561 = smul.addr %s560, 8
    %s562 = scalar_lea.vmem [#allocation2], %s561
    %v563 = vld [vmem:[%s562] sm:$0xff]
    %v564 = vld [vmem:[%s562 + $0x8] sm:$0xff]
    %v565 = vld [vmem:[%s562 + $0x10] sm:$0xff]
    %v566 = vld [vmem:[%s562 + $0x18] sm:$0xff]
    %v567 = vpack.c.bf16 %v558, %v558
    %v568 = vld [vmem:[#allocation9] sm:$0xff]
    %v569 = vld [vmem:[#allocation9 + $0x8] sm:$0xff]
    %v570 = vld [vmem:[#allocation9 + $0x10] sm:$0xff]
    %v571 = vld [vmem:[#allocation9 + $0x18] sm:$0xff]
    %v572 = vld [vmem:[#allocation9 + $0x20] sm:$0xff]
    %v573 = vld [vmem:[#allocation9 + $0x28] sm:$0xff]
    %v574 = vld [vmem:[#allocation9 + $0x30] sm:$0xff]
    %v575 = vld [vmem:[#allocation9 + $0x38] sm:$0xff]
    %v576 = vld [vmem:[#allocation9 + $0x40] sm:$0xff]
    %v577 = vld [vmem:[#allocation9 + $0x48] sm:$0xff]
    %v578 = vld [vmem:[#allocation9 + $0x50] sm:$0xff]
    %v579 = vld [vmem:[#allocation9 + $0x58] sm:$0xff]
    %v580 = vld [vmem:[#allocation9 + $0x60] sm:$0xff]
    %v581 = vld [vmem:[#allocation9 + $0x68] sm:$0xff]
    %v582 = vld [vmem:[#allocation9 + $0x70] sm:$0xff]
    %v583 = vld [vmem:[#allocation9 + $0x78] sm:$0xff]
    %v584 = vld [vmem:[#allocation9 + $0x80] sm:$0xff]
    %v585 = vld [vmem:[#allocation9 + $0x88] sm:$0xff]
    %v586 = vld [vmem:[#allocation9 + $0x90] sm:$0xff]
    %v587 = vld [vmem:[#allocation9 + $0x98] sm:$0xff]
    %v588 = vld [vmem:[#allocation9 + $0xa0] sm:$0xff]
    %v589 = vld [vmem:[#allocation9 + $0xa8] sm:$0xff]
    %v590 = vld [vmem:[#allocation9 + $0xb0] sm:$0xff]
    %v591 = vld [vmem:[#allocation9 + $0xb8] sm:$0xff]
    %v592 = vld [vmem:[#allocation9 + $0xc0] sm:$0xff]
    %v593 = vld [vmem:[#allocation9 + $0xc8] sm:$0xff]
    %v594 = vld [vmem:[#allocation9 + $0xd0] sm:$0xff]
    %v595 = vld [vmem:[#allocation9 + $0xd8] sm:$0xff]
    %v596 = vld [vmem:[#allocation9 + $0xe0] sm:$0xff]
    %v597 = vld [vmem:[#allocation9 + $0xe8] sm:$0xff]
    %v598 = vld [vmem:[#allocation9 + $0xf0] sm:$0xff]
    %v599 = vld [vmem:[#allocation9 + $0xf8] sm:$0xff]
    %v632 = vunpack.c.l.b16 %v568
    %v633 = vunpack.c.h.b16 %v568
    %v634 = vunpack.c.l.b16 %v569
    %v635 = vunpack.c.h.b16 %v569
    %v636 = vunpack.c.l.b16 %v570
    %v637 = vunpack.c.h.b16 %v570
    %v638 = vunpack.c.l.b16 %v571
    %v639 = vunpack.c.h.b16 %v571
    %v640 = vunpack.c.l.b16 %v572
    %v641 = vunpack.c.h.b16 %v572
    %v642 = vunpack.c.l.b16 %v573
    %v643 = vunpack.c.h.b16 %v573
    %v644 = vunpack.c.l.b16 %v574
    %v645 = vunpack.c.h.b16 %v574
    %v646 = vunpack.c.l.b16 %v575
    %v647 = vunpack.c.h.b16 %v575
    %v648 = vunpack.c.l.b16 %v576
    %v649 = vunpack.c.h.b16 %v576
    %v650 = vunpack.c.l.b16 %v577
    %v651 = vunpack.c.h.b16 %v577
    %v652 = vunpack.c.l.b16 %v578
    %v653 = vunpack.c.h.b16 %v578
    %v654 = vunpack.c.l.b16 %v579
    %v655 = vunpack.c.h.b16 %v579
    %v656 = vunpack.c.l.b16 %v580
    %v657 = vunpack.c.h.b16 %v580
    %v658 = vunpack.c.l.b16 %v581
    %v659 = vunpack.c.h.b16 %v581
    %v660 = vunpack.c.l.b16 %v582
    %v661 = vunpack.c.h.b16 %v582
    %v662 = vunpack.c.l.b16 %v583
    %v663 = vunpack.c.h.b16 %v583
    %v664 = vunpack.c.l.b16 %v584
    %v665 = vunpack.c.h.b16 %v584
    %v666 = vunpack.c.l.b16 %v585
    %v667 = vunpack.c.h.b16 %v585
    %v668 = vunpack.c.l.b16 %v586
    %v669 = vunpack.c.h.b16 %v586
    %v670 = vunpack.c.l.b16 %v587
    %v671 = vunpack.c.h.b16 %v587
    %v672 = vunpack.c.l.b16 %v588
    %v673 = vunpack.c.h.b16 %v588
    %v674 = vunpack.c.l.b16 %v589
    %v675 = vunpack.c.h.b16 %v589
    %v676 = vunpack.c.l.b16 %v590
    %v677 = vunpack.c.h.b16 %v590
    %v678 = vunpack.c.l.b16 %v591
    %v679 = vunpack.c.h.b16 %v591
    %v680 = vunpack.c.l.b16 %v592
    %v681 = vunpack.c.h.b16 %v592
    %v682 = vunpack.c.l.b16 %v593
    %v683 = vunpack.c.h.b16 %v593
    %v684 = vunpack.c.l.b16 %v594
    %v685 = vunpack.c.h.b16 %v594
    %v686 = vunpack.c.l.b16 %v595
    %v687 = vunpack.c.h.b16 %v595
    %v688 = vunpack.c.l.b16 %v596
    %v689 = vunpack.c.h.b16 %v596
    %v690 = vunpack.c.l.b16 %v597
    %v691 = vunpack.c.h.b16 %v597
    %v692 = vunpack.c.l.b16 %v598
    %v693 = vunpack.c.h.b16 %v598
    %v694 = vunpack.c.l.b16 %v599
    %v695 = vunpack.c.h.b16 %v599
    %v696 = vpack.c.b16 %v636, %v632
    %v697 = vpack.c.b16 %v637, %v633
    %v698 = vpack.c.b16 %v638, %v634
    %v699 = vpack.c.b16 %v639, %v635
    %v700 = vpack.c.b16 %v644, %v640
    %v701 = vpack.c.b16 %v645, %v641
    %v702 = vpack.c.b16 %v646, %v642
    %v703 = vpack.c.b16 %v647, %v643
    %v704 = vpack.c.b16 %v652, %v648
    %v705 = vpack.c.b16 %v653, %v649
    %v706 = vpack.c.b16 %v654, %v650
    %v707 = vpack.c.b16 %v655, %v651
    %v708 = vpack.c.b16 %v660, %v656
    %v709 = vpack.c.b16 %v661, %v657
    %v710 = vpack.c.b16 %v662, %v658
    %v711 = vpack.c.b16 %v663, %v659
    %v712 = vpack.c.b16 %v668, %v664
    %v713 = vpack.c.b16 %v669, %v665
    %v714 = vpack.c.b16 %v670, %v666
    %v715 = vpack.c.b16 %v671, %v667
    %v716 = vpack.c.b16 %v676, %v672
    %v717 = vpack.c.b16 %v677, %v673
    %v718 = vpack.c.b16 %v678, %v674
    %v719 = vpack.c.b16 %v679, %v675
    %v720 = vpack.c.b16 %v684, %v680
    %v721 = vpack.c.b16 %v685, %v681
    %v722 = vpack.c.b16 %v686, %v682
    %v723 = vpack.c.b16 %v687, %v683
    %v724 = vpack.c.b16 %v692, %v688
    %v725 = vpack.c.b16 %v693, %v689
    %v726 = vpack.c.b16 %v694, %v690
    %v727 = vpack.c.b16 %v695, %v691
    %760 = vmatprep.subr.bf16.mxu0 %v697
    %761 = vmatpush1.bf16.msra.mxu0 %v696
    %762 = vmatprep.subr.bf16.mxu0 %v701
    %763 = vmatpush1.bf16.msra.mxu0 %v700
    %764 = vmatprep.subr.bf16.mxu0 %v705
    %765 = vmatpush1.bf16.msra.mxu0 %v704
    %766 = vmatprep.subr.bf16.mxu0 %v709
    %767 = vmatpush1.bf16.msra.mxu0 %v708
    %768 = vmatprep.subr.bf16.mxu0 %v713
    %769 = vmatpush1.bf16.msra.mxu0 %v712
    %770 = vmatprep.subr.bf16.mxu0 %v717
    %771 = vmatpush1.bf16.msra.mxu0 %v716
    %772 = vmatprep.subr.bf16.mxu0 %v721
    %773 = vmatpush1.bf16.msra.mxu0 %v720
    %774 = vmatprep.subr.bf16.mxu0 %v725
    %775 = vmatpush1.bf16.msra.mxu0 %v724
    %776 = vmatprep.subr.bf16.mxu0 0
    %777 = vmatpush1.bf16.msra.mxu0 0
    %778 = vmatprep.subr.bf16.mxu0 0
    %779 = vmatpush1.bf16.msra.mxu0 0
    %780 = vmatprep.subr.bf16.mxu0 0
    %781 = vmatpush1.bf16.msra.mxu0 0
    %782 = vmatprep.subr.bf16.mxu0 0
    %783 = vmatpush1.bf16.msra.mxu0 0
    %784 = vmatprep.subr.bf16.mxu0 0
    %785 = vmatpush1.bf16.msra.mxu0 0
    %786 = vmatprep.subr.bf16.mxu0 0
    %787 = vmatpush1.bf16.msra.mxu0 0
    %788 = vmatprep.subr.bf16.mxu0 0
    %789 = vmatpush1.bf16.msra.mxu0 0
    %790 = vmatprep.subr.bf16.mxu0 0
    %791 = vmatpush1.bf16.msra.mxu0 0
    %792 = vmatprep.mubr.bf16.mxu0 0
    %793 = vmatmul.mubr.bf16.gmra.mrb[0].mxu0 %v567
    %v794 = vpop.f32.mrb[0].mxu0
    %v795 = vadd.f32 0.0, %v794
    %v796 = vpop.f32.mrb[0].mxu0
    %v797 = vadd.f32 0.0, %v796
    %v798 = vpop.f32.mrb[0].mxu0
    %v799 = vpop.f32.mrb[0].mxu0
    %800 = vdwg.mxu0
    %801 = vmatprep.subr.bf16.mxu0 %v699
    %802 = vmatpush1.bf16.msra.mxu0 %v698
    %803 = vmatprep.subr.bf16.mxu0 %v703
    %804 = vmatpush1.bf16.msra.mxu0 %v702
    %805 = vmatprep.subr.bf16.mxu0 %v707
    %806 = vmatpush1.bf16.msra.mxu0 %v706
    %807 = vmatprep.subr.bf16.mxu0 %v711
    %808 = vmatpush1.bf16.msra.mxu0 %v710
    %809 = vmatprep.subr.bf16.mxu0 %v715
    %810 = vmatpush1.bf16.msra.mxu0 %v714
    %811 = vmatprep.subr.bf16.mxu0 %v719
    %812 = vmatpush1.bf16.msra.mxu0 %v718
    %813 = vmatprep.subr.bf16.mxu0 %v723
    %814 = vmatpush1.bf16.msra.mxu0 %v722
    %815 = vmatprep.subr.bf16.mxu0 %v727
    %816 = vmatpush1.bf16.msra.mxu0 %v726
    %817 = vmatprep.subr.bf16.mxu0 0
    %818 = vmatpush1.bf16.msra.mxu0 0
    %819 = vmatprep.subr.bf16.mxu0 0
    %820 = vmatpush1.bf16.msra.mxu0 0
    %821 = vmatprep.subr.bf16.mxu0 0
    %822 = vmatpush1.bf16.msra.mxu0 0
    %823 = vmatprep.subr.bf16.mxu0 0
    %824 = vmatpush1.bf16.msra.mxu0 0
    %825 = vmatprep.subr.bf16.mxu0 0
    %826 = vmatpush1.bf16.msra.mxu0 0
    %827 = vmatprep.subr.bf16.mxu0 0
    %828 = vmatpush1.bf16.msra.mxu0 0
    %829 = vmatprep.subr.bf16.mxu0 0
    %830 = vmatpush1.bf16.msra.mxu0 0
    %831 = vmatprep.subr.bf16.mxu0 0
    %832 = vmatpush1.bf16.msra.mxu0 0
    %833 = vmatprep.mubr.bf16.mxu0 0
    %834 = vmatmul.mubr.bf16.gmra.mrb[0].mxu0 %v567
    %v835 = vpop.f32.mrb[0].mxu0
    %v836 = vadd.f32 0.0, %v835
    %v837 = vpop.f32.mrb[0].mxu0
    %v838 = vadd.f32 0.0, %v837
    %v839 = vpop.f32.mrb[0].mxu0
    %v840 = vpop.f32.mrb[0].mxu0
    %841 = vdwg.mxu0
    %v842 = vadd.f32 %v563, %v795
    %v843 = vadd.f32 %v564, %v797
    %v844 = vadd.f32 %v565, %v836
    %v845 = vadd.f32 %v566, %v838
    %v846 = vxor.u32 %v842, 2147483648
    %v847 = vxor.u32 %v843, 2147483648
    %v848 = vxor.u32 %v844, 2147483648
    %v849 = vmul.f32 %v846, 1.442695
    %v850 = vpow.pop %v849
    %v851 = vmul.f32 %v847, 1.442695
    %v852 = vpow.pop %v851
    %v853 = vmul.f32 %v848, 1.442695
    %v854 = vpow.pop %v853
    %v855 = vadd.f32 %v850, 1.0
    %v856 = vadd.f32 %v852, 1.0
    %v857 = vadd.f32 %v854, 1.0
    %v858 = vrcp.pop %v855
    %v859 = vmul.f32 1.0, %v858
    %v860 = vrcp.pop %v856
    %v861 = vmul.f32 1.0, %v860
    %v862 = vrcp.pop %v857
    %v863 = vmul.f32 1.0, %v862
    %v864 = vtanh.pop %v845
    %v865 = vmul.f32 %v861, %v559
    %v866 = vmul.f32 %v859, %v864
    %v867 = vadd.f32 %v865, %v866
    %v868 = vtanh.pop %v867
    %v869 = vmul.f32 %v863, %v868
    %870 = vst [vmem:[#allocation3] sm:$0xff] %v869
    %s871 = smul.u32 1, 4
    %s872 = smul.addr %s871, 8
    %s873 = scalar_lea.vmem [#allocation2], %s872
    %v874 = vld [vmem:[%s873] sm:$0xff]
    %v875 = vld [vmem:[%s873 + $0x8] sm:$0xff]
    %v876 = vld [vmem:[%s873 + $0x10] sm:$0xff]
    %v877 = vld [vmem:[%s873 + $0x18] sm:$0xff]
    %v878 = vpack.c.bf16 %v869, %v869
    %v879 = vld [vmem:[#allocation9] sm:$0xff]
    %v880 = vld [vmem:[#allocation9 + $0x8] sm:$0xff]
    %v881 = vld [vmem:[#allocation9 + $0x10] sm:$0xff]
    %v882 = vld [vmem:[#allocation9 + $0x18] sm:$0xff]
    %v883 = vld [vmem:[#allocation9 + $0x20] sm:$0xff]
    %v884 = vld [vmem:[#allocation9 + $0x28] sm:$0xff]
    %v885 = vld [vmem:[#allocation9 + $0x30] sm:$0xff]
    %v886 = vld [vmem:[#allocation9 + $0x38] sm:$0xff]
    %v887 = vld [vmem:[#allocation9 + $0x40] sm:$0xff]
    %v888 = vld [vmem:[#allocation9 + $0x48] sm:$0xff]
    %v889 = vld [vmem:[#allocation9 + $0x50] sm:$0xff]
    %v890 = vld [vmem:[#allocation9 + $0x58] sm:$0xff]
    %v891 = vld [vmem:[#allocation9 + $0x60] sm:$0xff]
    %v892 = vld [vmem:[#allocation9 + $0x68] sm:$0xff]
    %v893 = vld [vmem:[#allocation9 + $0x70] sm:$0xff]
    %v894 = vld [vmem:[#allocation9 + $0x78] sm:$0xff]
    %v895 = vld [vmem:[#allocation9 + $0x80] sm:$0xff]
    %v896 = vld [vmem:[#allocation9 + $0x88] sm:$0xff]
    %v897 = vld [vmem:[#allocation9 + $0x90] sm:$0xff]
    %v898 = vld [vmem:[#allocation9 + $0x98] sm:$0xff]
    %v899 = vld [vmem:[#allocation9 + $0xa0] sm:$0xff]
    %v900 = vld [vmem:[#allocation9 + $0xa8] sm:$0xff]
    %v901 = vld [vmem:[#allocation9 + $0xb0] sm:$0xff]
    %v902 = vld [vmem:[#allocation9 + $0xb8] sm:$0xff]
    %v903 = vld [vmem:[#allocation9 + $0xc0] sm:$0xff]
    %v904 = vld [vmem:[#allocation9 + $0xc8] sm:$0xff]
    %v905 = vld [vmem:[#allocation9 + $0xd0] sm:$0xff]
    %v906 = vld [vmem:[#allocation9 + $0xd8] sm:$0xff]
    %v907 = vld [vmem:[#allocation9 + $0xe0] sm:$0xff]
    %v908 = vld [vmem:[#allocation9 + $0xe8] sm:$0xff]
    %v909 = vld [vmem:[#allocation9 + $0xf0] sm:$0xff]
    %v910 = vld [vmem:[#allocation9 + $0xf8] sm:$0xff]
    %v943 = vunpack.c.l.b16 %v879
    %v944 = vunpack.c.h.b16 %v879
    %v945 = vunpack.c.l.b16 %v880
    %v946 = vunpack.c.h.b16 %v880
    %v947 = vunpack.c.l.b16 %v881
    %v948 = vunpack.c.h.b16 %v881
    %v949 = vunpack.c.l.b16 %v882
    %v950 = vunpack.c.h.b16 %v882
    %v951 = vunpack.c.l.b16 %v883
    %v952 = vunpack.c.h.b16 %v883
    %v953 = vunpack.c.l.b16 %v884
    %v954 = vunpack.c.h.b16 %v884
    %v955 = vunpack.c.l.b16 %v885
    %v956 = vunpack.c.h.b16 %v885
    %v957 = vunpack.c.l.b16 %v886
    %v958 = vunpack.c.h.b16 %v886
    %v959 = vunpack.c.l.b16 %v887
    %v960 = vunpack.c.h.b16 %v887
    %v961 = vunpack.c.l.b16 %v888
    %v962 = vunpack.c.h.b16 %v888
    %v963 = vunpack.c.l.b16 %v889
    %v964 = vunpack.c.h.b16 %v889
    %v965 = vunpack.c.l.b16 %v890
    %v966 = vunpack.c.h.b16 %v890
    %v967 = vunpack.c.l.b16 %v891
    %v968 = vunpack.c.h.b16 %v891
    %v969 = vunpack.c.l.b16 %v892
    %v970 = vunpack.c.h.b16 %v892
    %v971 = vunpack.c.l.b16 %v893
    %v972 = vunpack.c.h.b16 %v893
    %v973 = vunpack.c.l.b16 %v894
    %v974 = vunpack.c.h.b16 %v894
    %v975 = vunpack.c.l.b16 %v895
    %v976 = vunpack.c.h.b16 %v895
    %v977 = vunpack.c.l.b16 %v896
    %v978 = vunpack.c.h.b16 %v896
    %v979 = vunpack.c.l.b16 %v897
    %v980 = vunpack.c.h.b16 %v897
    %v981 = vunpack.c.l.b16 %v898
    %v982 = vunpack.c.h.b16 %v898
    %v983 = vunpack.c.l.b16 %v899
    %v984 = vunpack.c.h.b16 %v899
    %v985 = vunpack.c.l.b16 %v900
    %v986 = vunpack.c.h.b16 %v900
    %v987 = vunpack.c.l.b16 %v901
    %v988 = vunpack.c.h.b16 %v901
    %v989 = vunpack.c.l.b16 %v902
    %v990 = vunpack.c.h.b16 %v902
    %v991 = vunpack.c.l.b16 %v903
    %v992 = vunpack.c.h.b16 %v903
    %v993 = vunpack.c.l.b16 %v904
    %v994 = vunpack.c.h.b16 %v904
    %v995 = vunpack.c.l.b16 %v905
    %v996 = vunpack.c.h.b16 %v905
    %v997 = vunpack.c.l.b16 %v906
    %v998 = vunpack.c.h.b16 %v906
    %v999 = vunpack.c.l.b16 %v907
    %v1000 = vunpack.c.h.b16 %v907
    %v1001 = vunpack.c.l.b16 %v908
    %v1002 = vunpack.c.h.b16 %v908
    %v1003 = vunpack.c.l.b16 %v909
    %v1004 = vunpack.c.h.b16 %v909
    %v1005 = vunpack.c.l.b16 %v910
    %v1006 = vunpack.c.h.b16 %v910
    %v1007 = vpack.c.b16 %v947, %v943
    %v1008 = vpack.c.b16 %v948, %v944
    %v1009 = vpack.c.b16 %v949, %v945
    %v1010 = vpack.c.b16 %v950, %v946
    %v1011 = vpack.c.b16 %v955, %v951
    %v1012 = vpack.c.b16 %v956, %v952
    %v1013 = vpack.c.b16 %v957, %v953
    %v1014 = vpack.c.b16 %v958, %v954
    %v1015 = vpack.c.b16 %v963, %v959
    %v1016 = vpack.c.b16 %v964, %v960
    %v1017 = vpack.c.b16 %v965, %v961
    %v1018 = vpack.c.b16 %v966, %v962
    %v1019 = vpack.c.b16 %v971, %v967
    %v1020 = vpack.c.b16 %v972, %v968
    %v1021 = vpack.c.b16 %v973, %v969
    %v1022 = vpack.c.b16 %v974, %v970
    %v1023 = vpack.c.b16 %v979, %v975
    %v1024 = vpack.c.b16 %v980, %v976
    %v1025 = vpack.c.b16 %v981, %v977
    %v1026 = vpack.c.b16 %v982, %v978
    %v1027 = vpack.c.b16 %v987, %v983
    %v1028 = vpack.c.b16 %v988, %v984
    %v1029 = vpack.c.b16 %v989, %v985
    %v1030 = vpack.c.b16 %v990, %v986
    %v1031 = vpack.c.b16 %v995, %v991
    %v1032 = vpack.c.b16 %v996, %v992
    %v1033 = vpack.c.b16 %v997, %v993
    %v1034 = vpack.c.b16 %v998, %v994
    %v1035 = vpack.c.b16 %v1003, %v999
    %v1036 = vpack.c.b16 %v1004, %v1000
    %v1037 = vpack.c.b16 %v1005, %v1001
    %v1038 = vpack.c.b16 %v1006, %v1002
    %1071 = vmatprep.subr.bf16.mxu0 %v1008
    %1072 = vmatpush1.bf16.msra.mxu0 %v1007
    %1073 = vmatprep.subr.bf16.mxu0 %v1012
    %1074 = vmatpush1.bf16.msra.mxu0 %v1011
    %1075 = vmatprep.subr.bf16.mxu0 %v1016
    %1076 = vmatpush1.bf16.msra.mxu0 %v1015
    %1077 = vmatprep.subr.bf16.mxu0 %v1020
    %1078 = vmatpush1.bf16.msra.mxu0 %v1019
    %1079 = vmatprep.subr.bf16.mxu0 %v1024
    %1080 = vmatpush1.bf16.msra.mxu0 %v1023
    %1081 = vmatprep.subr.bf16.mxu0 %v1028
    %1082 = vmatpush1.bf16.msra.mxu0 %v1027
    %1083 = vmatprep.subr.bf16.mxu0 %v1032
    %1084 = vmatpush1.bf16.msra.mxu0 %v1031
    %1085 = vmatprep.subr.bf16.mxu0 %v1036
    %1086 = vmatpush1.bf16.msra.mxu0 %v1035
    %1087 = vmatprep.subr.bf16.mxu0 0
    %1088 = vmatpush1.bf16.msra.mxu0 0
    %1089 = vmatprep.subr.bf16.mxu0 0
    %1090 = vmatpush1.bf16.msra.mxu0 0
    %1091 = vmatprep.subr.bf16.mxu0 0
    %1092 = vmatpush1.bf16.msra.mxu0 0
    %1093 = vmatprep.subr.bf16.mxu0 0
    %1094 = vmatpush1.bf16.msra.mxu0 0
    %1095 = vmatprep.subr.bf16.mxu0 0
    %1096 = vmatpush1.bf16.msra.mxu0 0
    %1097 = vmatprep.subr.bf16.mxu0 0
    %1098 = vmatpush1.bf16.msra.mxu0 0
    %1099 = vmatprep.subr.bf16.mxu0 0
    %1100 = vmatpush1.bf16.msra.mxu0 0
    %1101 = vmatprep.subr.bf16.mxu0 0
    %1102 = vmatpush1.bf16.msra.mxu0 0
    %1103 = vmatprep.mubr.bf16.mxu0 0
    %1104 = vmatmul.mubr.bf16.gmra.mrb[0].mxu0 %v878
    %v1105 = vpop.f32.mrb[0].mxu0
    %v1106 = vadd.f32 0.0, %v1105
    %v1107 = vpop.f32.mrb[0].mxu0
    %v1108 = vadd.f32 0.0, %v1107
    %v1109 = vpop.f32.mrb[0].mxu0
    %v1110 = vpop.f32.mrb[0].mxu0
    %1111 = vdwg.mxu0
    %1112 = vmatprep.subr.bf16.mxu0 %v1010
    %1113 = vmatpush1.bf16.msra.mxu0 %v1009
    %1114 = vmatprep.subr.bf16.mxu0 %v1014
    %1115 = vmatpush1.bf16.msra.mxu0 %v1013
    %1116 = vmatprep.subr.bf16.mxu0 %v1018
    %1117 = vmatpush1.bf16.msra.mxu0 %v1017
    %1118 = vmatprep.subr.bf16.mxu0 %v1022
    %1119 = vmatpush1.bf16.msra.mxu0 %v1021
    %1120 = vmatprep.subr.bf16.mxu0 %v1026
    %1121 = vmatpush1.bf16.msra.mxu0 %v1025
    %1122 = vmatprep.subr.bf16.mxu0 %v1030
    %1123 = vmatpush1.bf16.msra.mxu0 %v1029
    %1124 = vmatprep.subr.bf16.mxu0 %v1034
    %1125 = vmatpush1.bf16.msra.mxu0 %v1033
    %1126 = vmatprep.subr.bf16.mxu0 %v1038
    %1127 = vmatpush1.bf16.msra.mxu0 %v1037
    %1128 = vmatprep.subr.bf16.mxu0 0
    %1129 = vmatpush1.bf16.msra.mxu0 0
    %1130 = vmatprep.subr.bf16.mxu0 0
    %1131 = vmatpush1.bf16.msra.mxu0 0
    %1132 = vmatprep.subr.bf16.mxu0 0
    %1133 = vmatpush1.bf16.msra.mxu0 0
    %1134 = vmatprep.subr.bf16.mxu0 0
    %1135 = vmatpush1.bf16.msra.mxu0 0
    %1136 = vmatprep.subr.bf16.mxu0 0
    %1137 = vmatpush1.bf16.msra.mxu0 0
    %1138 = vmatprep.subr.bf16.mxu0 0
    %1139 = vmatpush1.bf16.msra.mxu0 0
    %1140 = vmatprep.subr.bf16.mxu0 0
    %1141 = vmatpush1.bf16.msra.mxu0 0
    %1142 = vmatprep.subr.bf16.mxu0 0
    %1143 = vmatpush1.bf16.msra.mxu0 0
    %1144 = vmatprep.mubr.bf16.mxu0 0
    %1145 = vmatmul.mubr.bf16.gmra.mrb[0].mxu0 %v878
    %v1146 = vpop.f32.mrb[0].mxu0
    %v1147 = vadd.f32 0.0, %v1146
    %v1148 = vpop.f32.mrb[0].mxu0
    %v1149 = vadd.f32 0.0, %v1148
    %v1150 = vpop.f32.mrb[0].mxu0
    %v1151 = vpop.f32.mrb[0].mxu0
    %1152 = vdwg.mxu0
    %v1153 = vadd.f32 %v874, %v1106
    %v1154 = vadd.f32 %v875, %v1108
    %v1155 = vadd.f32 %v876, %v1147
    %v1156 = vadd.f32 %v877, %v1149
    %v1157 = vxor.u32 %v1153, 2147483648
    %v1158 = vxor.u32 %v1154, 2147483648
    %v1159 = vxor.u32 %v1155, 2147483648
    %v1160 = vmul.f32 %v1157, 1.442695
    %v1161 = vpow.pop %v1160
    %v1162 = vmul.f32 %v1158, 1.442695
    %v1163 = vpow.pop %v1162
    %v1164 = vmul.f32 %v1159, 1.442695
    %v1165 = vpow.pop %v1164
    %v1166 = vadd.f32 %v1161, 1.0
    %v1167 = vadd.f32 %v1163, 1.0
    %v1168 = vadd.f32 %v1165, 1.0
    %v1169 = vrcp.pop %v1166
    %v1170 = vmul.f32 1.0, %v1169
    %v1171 = vrcp.pop %v1167
    %v1172 = vmul.f32 1.0, %v1171
    %v1173 = vrcp.pop %v1168
    %v1174 = vmul.f32 1.0, %v1173
    %v1175 = vtanh.pop %v1156
    %v1176 = vmul.f32 %v1172, %v867
    %v1177 = vmul.f32 %v1170, %v1175
    %v1178 = vadd.f32 %v1176, %v1177
    %v1179 = vtanh.pop %v1178
    %v1180 = vmul.f32 %v1174, %v1179
    %s1181 = scalar_lea.vmem [#allocation3], 8
    %1182 = vst [vmem:[%s1181] sm:$0xff] %v1180
    %s1183 = smul.u32 2, 4
    %s1184 = smul.addr %s1183, 8
    %s1185 = scalar_lea.vmem [#allocation2], %s1184
    %v1186 = vld [vmem:[%s1185] sm:$0xff]
    %v1187 = vld [vmem:[%s1185 + $0x8] sm:$0xff]
    %v1188 = vld [vmem:[%s1185 + $0x10] sm:$0xff]
    %v1189 = vld [vmem:[%s1185 + $0x18] sm:$0xff]
    %v1190 = vpack.c.bf16 %v1180, %v1180
    %v1191 = vld [vmem:[#allocation9] sm:$0xff]
    %v1192 = vld [vmem:[#allocation9 + $0x8] sm:$0xff]
    %v1193 = vld [vmem:[#allocation9 + $0x10] sm:$0xff]
    %v1194 = vld [vmem:[#allocation9 + $0x18] sm:$0xff]
    %v1195 = vld [vmem:[#allocation9 + $0x20] sm:$0xff]
    %v1196 = vld [vmem:[#allocation9 + $0x28] sm:$0xff]
    %v1197 = vld [vmem:[#allocation9 + $0x30] sm:$0xff]
    %v1198 = vld [vmem:[#allocation9 + $0x38] sm:$0xff]
    %v1199 = vld [vmem:[#allocation9 + $0x40] sm:$0xff]
    %v1200 = vld [vmem:[#allocation9 + $0x48] sm:$0xff]
    %v1201 = vld [vmem:[#allocation9 + $0x50] sm:$0xff]
    %v1202 = vld [vmem:[#allocation9 + $0x58] sm:$0xff]
    %v1203 = vld [vmem:[#allocation9 + $0x60] sm:$0xff]
    %v1204 = vld [vmem:[#allocation9 + $0x68] sm:$0xff]
    %v1205 = vld [vmem:[#allocation9 + $0x70] sm:$0xff]
    %v1206 = vld [vmem:[#allocation9 + $0x78] sm:$0xff]
    %v1207 = vld [vmem:[#allocation9 + $0x80] sm:$0xff]
    %v1208 = vld [vmem:[#allocation9 + $0x88] sm:$0xff]
    %v1209 = vld [vmem:[#allocation9 + $0x90] sm:$0xff]
    %v1210 = vld [vmem:[#allocation9 + $0x98] sm:$0xff]
    %v1211 = vld [vmem:[#allocation9 + $0xa0] sm:$0xff]
    %v1212 = vld [vmem:[#allocation9 + $0xa8] sm:$0xff]
    %v1213 = vld [vmem:[#allocation9 + $0xb0] sm:$0xff]
    %v1214 = vld [vmem:[#allocation9 + $0xb8] sm:$0xff]
    %v1215 = vld [vmem:[#allocation9 + $0xc0] sm:$0xff]
    %v1216 = vld [vmem:[#allocation9 + $0xc8] sm:$0xff]
    %v1217 = vld [vmem:[#allocation9 + $0xd0] sm:$0xff]
    %v1218 = vld [vmem:[#allocation9 + $0xd8] sm:$0xff]
    %v1219 = vld [vmem:[#allocation9 + $0xe0] sm:$0xff]
    %v1220 = vld [vmem:[#allocation9 + $0xe8] sm:$0xff]
    %v1221 = vld [vmem:[#allocation9 + $0xf0] sm:$0xff]
    %v1222 = vld [vmem:[#allocation9 + $0xf8] sm:$0xff]
    %v1255 = vunpack.c.l.b16 %v1191
    %v1256 = vunpack.c.h.b16 %v1191
    %v1257 = vunpack.c.l.b16 %v1192
    %v1258 = vunpack.c.h.b16 %v1192
    %v1259 = vunpack.c.l.b16 %v1193
    %v1260 = vunpack.c.h.b16 %v1193
    %v1261 = vunpack.c.l.b16 %v1194
    %v1262 = vunpack.c.h.b16 %v1194
    %v1263 = vunpack.c.l.b16 %v1195
    %v1264 = vunpack.c.h.b16 %v1195
    %v1265 = vunpack.c.l.b16 %v1196
    %v1266 = vunpack.c.h.b16 %v1196
    %v1267 = vunpack.c.l.b16 %v1197
    %v1268 = vunpack.c.h.b16 %v1197
    %v1269 = vunpack.c.l.b16 %v1198
    %v1270 = vunpack.c.h.b16 %v1198
    %v1271 = vunpack.c.l.b16 %v1199
    %v1272 = vunpack.c.h.b16 %v1199
    %v1273 = vunpack.c.l.b16 %v1200
    %v1274 = vunpack.c.h.b16 %v1200
    %v1275 = vunpack.c.l.b16 %v1201
    %v1276 = vunpack.c.h.b16 %v1201
    %v1277 = vunpack.c.l.b16 %v1202
    %v1278 = vunpack.c.h.b16 %v1202
    %v1279 = vunpack.c.l.b16 %v1203
    %v1280 = vunpack.c.h.b16 %v1203
    %v1281 = vunpack.c.l.b16 %v1204
    %v1282 = vunpack.c.h.b16 %v1204
    %v1283 = vunpack.c.l.b16 %v1205
    %v1284 = vunpack.c.h.b16 %v1205
    %v1285 = vunpack.c.l.b16 %v1206
    %v1286 = vunpack.c.h.b16 %v1206
    %v1287 = vunpack.c.l.b16 %v1207
    %v1288 = vunpack.c.h.b16 %v1207
    %v1289 = vunpack.c.l.b16 %v1208
    %v1290 = vunpack.c.h.b16 %v1208
    %v1291 = vunpack.c.l.b16 %v1209
    %v1292 = vunpack.c.h.b16 %v1209
    %v1293 = vunpack.c.l.b16 %v1210
    %v1294 = vunpack.c.h.b16 %v1210
    %v1295 = vunpack.c.l.b16 %v1211
    %v1296 = vunpack.c.h.b16 %v1211
    %v1297 = vunpack.c.l.b16 %v1212
    %v1298 = vunpack.c.h.b16 %v1212
    %v1299 = vunpack.c.l.b16 %v1213
    %v1300 = vunpack.c.h.b16 %v1213
    %v1301 = vunpack.c.l.b16 %v1214
    %v1302 = vunpack.c.h.b16 %v1214
    %v1303 = vunpack.c.l.b16 %v1215
    %v1304 = vunpack.c.h.b16 %v1215
    %v1305 = vunpack.c.l.b16 %v1216
    %v1306 = vunpack.c.h.b16 %v1216
    %v1307 = vunpack.c.l.b16 %v1217
    %v1308 = vunpack.c.h.b16 %v1217
    %v1309 = vunpack.c.l.b16 %v1218
    %v1310 = vunpack.c.h.b16 %v1218
    %v1311 = vunpack.c.l.b16 %v1219
    %v1312 = vunpack.c.h.b16 %v1219
    %v1313 = vunpack.c.l.b16 %v1220
    %v1314 = vunpack.c.h.b16 %v1220
    %v1315 = vunpack.c.l.b16 %v1221
    %v1316 = vunpack.c.h.b16 %v1221
    %v1317 = vunpack.c.l.b16 %v1222
    %v1318 = vunpack.c.h.b16 %v1222
    %v1319 = vpack.c.b16 %v1259, %v1255
    %v1320 = vpack.c.b16 %v1260, %v1256
    %v1321 = vpack.c.b16 %v1261, %v1257
    %v1322 = vpack.c.b16 %v1262, %v1258
    %v1323 = vpack.c.b16 %v1267, %v1263
    %v1324 = vpack.c.b16 %v1268, %v1264
    %v1325 = vpack.c.b16 %v1269, %v1265
    %v1326 = vpack.c.b16 %v1270, %v1266
    %v1327 = vpack.c.b16 %v1275, %v1271
    %v1328 = vpack.c.b16 %v1276, %v1272
    %v1329 = vpack.c.b16 %v1277, %v1273
    %v1330 = vpack.c.b16 %v1278, %v1274
    %v1331 = vpack.c.b16 %v1283, %v1279
    %v1332 = vpack.c.b16 %v1284, %v1280
    %v1333 = vpack.c.b16 %v1285, %v1281
    %v1334 = vpack.c.b16 %v1286, %v1282
    %v1335 = vpack.c.b16 %v1291, %v1287
    %v1336 = vpack.c.b16 %v1292, %v1288
    %v1337 = vpack.c.b16 %v1293, %v1289
    %v1338 = vpack.c.b16 %v1294, %v1290
    %v1339 = vpack.c.b16 %v1299, %v1295
    %v1340 = vpack.c.b16 %v1300, %v1296
    %v1341 = vpack.c.b16 %v1301, %v1297
    %v1342 = vpack.c.b16 %v1302, %v1298
    %v1343 = vpack.c.b16 %v1307, %v1303
    %v1344 = vpack.c.b16 %v1308, %v1304
    %v1345 = vpack.c.b16 %v1309, %v1305
    %v1346 = vpack.c.b16 %v1310, %v1306
    %v1347 = vpack.c.b16 %v1315, %v1311
    %v1348 = vpack.c.b16 %v1316, %v1312
    %v1349 = vpack.c.b16 %v1317, %v1313
    %v1350 = vpack.c.b16 %v1318, %v1314
    %1383 = vmatprep.subr.bf16.mxu0 %v1320
    %1384 = vmatpush1.bf16.msra.mxu0 %v1319
    %1385 = vmatprep.subr.bf16.mxu0 %v1324
    %1386 = vmatpush1.bf16.msra.mxu0 %v1323
    %1387 = vmatprep.subr.bf16.mxu0 %v1328
    %1388 = vmatpush1.bf16.msra.mxu0 %v1327
    %1389 = vmatprep.subr.bf16.mxu0 %v1332
    %1390 = vmatpush1.bf16.msra.mxu0 %v1331
    %1391 = vmatprep.subr.bf16.mxu0 %v1336
    %1392 = vmatpush1.bf16.msra.mxu0 %v1335
    %1393 = vmatprep.subr.bf16.mxu0 %v1340
    %1394 = vmatpush1.bf16.msra.mxu0 %v1339
    %1395 = vmatprep.subr.bf16.mxu0 %v1344
    %1396 = vmatpush1.bf16.msra.mxu0 %v1343
    %1397 = vmatprep.subr.bf16.mxu0 %v1348
    %1398 = vmatpush1.bf16.msra.mxu0 %v1347
    %1399 = vmatprep.subr.bf16.mxu0 0
    %1400 = vmatpush1.bf16.msra.mxu0 0
    %1401 = vmatprep.subr.bf16.mxu0 0
    %1402 = vmatpush1.bf16.msra.mxu0 0
    %1403 = vmatprep.subr.bf16.mxu0 0
    %1404 = vmatpush1.bf16.msra.mxu0 0
    %1405 = vmatprep.subr.bf16.mxu0 0
    %1406 = vmatpush1.bf16.msra.mxu0 0
    %1407 = vmatprep.subr.bf16.mxu0 0
    %1408 = vmatpush1.bf16.msra.mxu0 0
    %1409 = vmatprep.subr.bf16.mxu0 0
    %1410 = vmatpush1.bf16.msra.mxu0 0
    %1411 = vmatprep.subr.bf16.mxu0 0
    %1412 = vmatpush1.bf16.msra.mxu0 0
    %1413 = vmatprep.subr.bf16.mxu0 0
    %1414 = vmatpush1.bf16.msra.mxu0 0
    %1415 = vmatprep.mubr.bf16.mxu0 0
    %1416 = vmatmul.mubr.bf16.gmra.mrb[0].mxu0 %v1190
    %v1417 = vpop.f32.mrb[0].mxu0
    %v1418 = vadd.f32 0.0, %v1417
    %v1419 = vpop.f32.mrb[0].mxu0
    %v1420 = vadd.f32 0.0, %v1419
    %v1421 = vpop.f32.mrb[0].mxu0
    %v1422 = vpop.f32.mrb[0].mxu0
    %1423 = vdwg.mxu0
    %1424 = vmatprep.subr.bf16.mxu0 %v1322
    %1425 = vmatpush1.bf16.msra.mxu0 %v1321
    %1426 = vmatprep.subr.bf16.mxu0 %v1326
    %1427 = vmatpush1.bf16.msra.mxu0 %v1325
    %1428 = vmatprep.subr.bf16.mxu0 %v1330
    %1429 = vmatpush1.bf16.msra.mxu0 %v1329
    %1430 = vmatprep.subr.bf16.mxu0 %v1334
    %1431 = vmatpush1.bf16.msra.mxu0 %v1333
    %1432 = vmatprep.subr.bf16.mxu0 %v1338
    %1433 = vmatpush1.bf16.msra.mxu0 %v1337
    %1434 = vmatprep.subr.bf16.mxu0 %v1342
    %1435 = vmatpush1.bf16.msra.mxu0 %v1341
    %1436 = vmatprep.subr.bf16.mxu0 %v1346
    %1437 = vmatpush1.bf16.msra.mxu0 %v1345
    %1438 = vmatprep.subr.bf16.mxu0 %v1350
    %1439 = vmatpush1.bf16.msra.mxu0 %v1349
    %1440 = vmatprep.subr.bf16.mxu0 0
    %1441 = vmatpush1.bf16.msra.mxu0 0
    %1442 = vmatprep.subr.bf16.mxu0 0
    %1443 = vmatpush1.bf16.msra.mxu0 0
    %1444 = vmatprep.subr.bf16.mxu0 0
    %1445 = vmatpush1.bf16.msra.mxu0 0
    %1446 = vmatprep.subr.bf16.mxu0 0
    %1447 = vmatpush1.bf16.msra.mxu0 0
    %1448 = vmatprep.subr.bf16.mxu0 0
    %1449 = vmatpush1.bf16.msra.mxu0 0
    %1450 = vmatprep.subr.bf16.mxu0 0
    %1451 = vmatpush1.bf16.msra.mxu0 0
    %1452 = vmatprep.subr.bf16.mxu0 0
    %1453 = vmatpush1.bf16.msra.mxu0 0
    %1454 = vmatprep.subr.bf16.mxu0 0
    %1455 = vmatpush1.bf16.msra.mxu0 0
    %1456 = vmatprep.mubr.bf16.mxu0 0
    %1457 = vmatmul.mubr.bf16.gmra.mrb[0].mxu0 %v1190
    %v1458 = vpop.f32.mrb[0].mxu0
    %v1459 = vadd.f32 0.0, %v1458
    %v1460 = vpop.f32.mrb[0].mxu0
    %v1461 = vadd.f32 0.0, %v1460
    %v1462 = vpop.f32.mrb[0].mxu0
    %v1463 = vpop.f32.mrb[0].mxu0
    %1464 = vdwg.mxu0
    %v1465 = vadd.f32 %v1186, %v1418
    %v1466 = vadd.f32 %v1187, %v1420
    %v1467 = vadd.f32 %v1188, %v1459
    %v1468 = vadd.f32 %v1189, %v1461
    %v1469 = vxor.u32 %v1465, 2147483648
    %v1470 = vxor.u32 %v1466, 2147483648
    %v1471 = vxor.u32 %v1467, 2147483648
    %v1472 = vmul.f32 %v1469, 1.442695
    %v1473 = vpow.pop %v1472
    %v1474 = vmul.f32 %v1470, 1.442695
    %v1475 = vpow.pop %v1474
    %v1476 = vmul.f32 %v1471, 1.442695
    %v1477 = vpow.pop %v1476
    %v1478 = vadd.f32 %v1473, 1.0
    %v1479 = vadd.f32 %v1475, 1.0
    %v1480 = vadd.f32 %v1477, 1.0
    %v1481 = vrcp.pop %v1478
    %v1482 = vmul.f32 1.0, %v1481
    %v1483 = vrcp.pop %v1479
    %v1484 = vmul.f32 1.0, %v1483
    %v1485 = vrcp.pop %v1480
    %v1486 = vmul.f32 1.0, %v1485
    %v1487 = vtanh.pop %v1468
    %v1488 = vmul.f32 %v1484, %v1178
    %v1489 = vmul.f32 %v1482, %v1487
    %v1490 = vadd.f32 %v1488, %v1489
    %v1491 = vtanh.pop %v1490
    %v1492 = vmul.f32 %v1486, %v1491
    %s1493 = scalar_lea.vmem [#allocation3], 16
    %1494 = vst [vmem:[%s1493] sm:$0xff] %v1492
    %s1495 = smul.u32 3, 4
    %s1496 = smul.addr %s1495, 8
    %s1497 = scalar_lea.vmem [#allocation2], %s1496
    %v1498 = vld [vmem:[%s1497] sm:$0xff]
    %v1499 = vld [vmem:[%s1497 + $0x8] sm:$0xff]
    %v1500 = vld [vmem:[%s1497 + $0x10] sm:$0xff]
    %v1501 = vld [vmem:[%s1497 + $0x18] sm:$0xff]
    %v1502 = vpack.c.bf16 %v1492, %v1492
    %v1503 = vld [vmem:[#allocation9] sm:$0xff]
    %v1504 = vld [vmem:[#allocation9 + $0x8] sm:$0xff]
    %v1505 = vld [vmem:[#allocation9 + $0x10] sm:$0xff]
    %v1506 = vld [vmem:[#allocation9 + $0x18] sm:$0xff]
    %v1507 = vld [vmem:[#allocation9 + $0x20] sm:$0xff]
    %v1508 = vld [vmem:[#allocation9 + $0x28] sm:$0xff]
    %v1509 = vld [vmem:[#allocation9 + $0x30] sm:$0xff]
    %v1510 = vld [vmem:[#allocation9 + $0x38] sm:$0xff]
    %v1511 = vld [vmem:[#allocation9 + $0x40] sm:$0xff]
    %v1512 = vld [vmem:[#allocation9 + $0x48] sm:$0xff]
    %v1513 = vld [vmem:[#allocation9 + $0x50] sm:$0xff]
    %v1514 = vld [vmem:[#allocation9 + $0x58] sm:$0xff]
    %v1515 = vld [vmem:[#allocation9 + $0x60] sm:$0xff]
    %v1516 = vld [vmem:[#allocation9 + $0x68] sm:$0xff]
    %v1517 = vld [vmem:[#allocation9 + $0x70] sm:$0xff]
    %v1518 = vld [vmem:[#allocation9 + $0x78] sm:$0xff]
    %v1519 = vld [vmem:[#allocation9 + $0x80] sm:$0xff]
    %v1520 = vld [vmem:[#allocation9 + $0x88] sm:$0xff]
    %v1521 = vld [vmem:[#allocation9 + $0x90] sm:$0xff]
    %v1522 = vld [vmem:[#allocation9 + $0x98] sm:$0xff]
    %v1523 = vld [vmem:[#allocation9 + $0xa0] sm:$0xff]
    %v1524 = vld [vmem:[#allocation9 + $0xa8] sm:$0xff]
    %v1525 = vld [vmem:[#allocation9 + $0xb0] sm:$0xff]
    %v1526 = vld [vmem:[#allocation9 + $0xb8] sm:$0xff]
    %v1527 = vld [vmem:[#allocation9 + $0xc0] sm:$0xff]
    %v1528 = vld [vmem:[#allocation9 + $0xc8] sm:$0xff]
    %v1529 = vld [vmem:[#allocation9 + $0xd0] sm:$0xff]
    %v1530 = vld [vmem:[#allocation9 + $0xd8] sm:$0xff]
    %v1531 = vld [vmem:[#allocation9 + $0xe0] sm:$0xff]
    %v1532 = vld [vmem:[#allocation9 + $0xe8] sm:$0xff]
    %v1533 = vld [vmem:[#allocation9 + $0xf0] sm:$0xff]
    %v1534 = vld [vmem:[#allocation9 + $0xf8] sm:$0xff]
    %v1567 = vunpack.c.l.b16 %v1503
    %v1568 = vunpack.c.h.b16 %v1503
    %v1569 = vunpack.c.l.b16 %v1504
    %v1570 = vunpack.c.h.b16 %v1504
    %v1571 = vunpack.c.l.b16 %v1505
    %v1572 = vunpack.c.h.b16 %v1505
    %v1573 = vunpack.c.l.b16 %v1506
    %v1574 = vunpack.c.h.b16 %v1506
    %v1575 = vunpack.c.l.b16 %v1507
    %v1576 = vunpack.c.h.b16 %v1507
    %v1577 = vunpack.c.l.b16 %v1508
    %v1578 = vunpack.c.h.b16 %v1508
    %v1579 = vunpack.c.l.b16 %v1509
    %v1580 = vunpack.c.h.b16 %v1509
    %v1581 = vunpack.c.l.b16 %v1510
    %v1582 = vunpack.c.h.b16 %v1510
    %v1583 = vunpack.c.l.b16 %v1511
    %v1584 = vunpack.c.h.b16 %v1511
    %v1585 = vunpack.c.l.b16 %v1512
    %v1586 = vunpack.c.h.b16 %v1512
    %v1587 = vunpack.c.l.b16 %v1513
    %v1588 = vunpack.c.h.b16 %v1513
    %v1589 = vunpack.c.l.b16 %v1514
    %v1590 = vunpack.c.h.b16 %v1514
    %v1591 = vunpack.c.l.b16 %v1515
    %v1592 = vunpack.c.h.b16 %v1515
    %v1593 = vunpack.c.l.b16 %v1516
    %v1594 = vunpack.c.h.b16 %v1516
    %v1595 = vunpack.c.l.b16 %v1517
    %v1596 = vunpack.c.h.b16 %v1517
    %v1597 = vunpack.c.l.b16 %v1518
    %v1598 = vunpack.c.h.b16 %v1518
    %v1599 = vunpack.c.l.b16 %v1519
    %v1600 = vunpack.c.h.b16 %v1519
    %v1601 = vunpack.c.l.b16 %v1520
    %v1602 = vunpack.c.h.b16 %v1520
    %v1603 = vunpack.c.l.b16 %v1521
    %v1604 = vunpack.c.h.b16 %v1521
    %v1605 = vunpack.c.l.b16 %v1522
    %v1606 = vunpack.c.h.b16 %v1522
    %v1607 = vunpack.c.l.b16 %v1523
    %v1608 = vunpack.c.h.b16 %v1523
    %v1609 = vunpack.c.l.b16 %v1524
    %v1610 = vunpack.c.h.b16 %v1524
    %v1611 = vunpack.c.l.b16 %v1525
    %v1612 = vunpack.c.h.b16 %v1525
    %v1613 = vunpack.c.l.b16 %v1526
    %v1614 = vunpack.c.h.b16 %v1526
    %v1615 = vunpack.c.l.b16 %v1527
    %v1616 = vunpack.c.h.b16 %v1527
    %v1617 = vunpack.c.l.b16 %v1528
    %v1618 = vunpack.c.h.b16 %v1528
    %v1619 = vunpack.c.l.b16 %v1529
    %v1620 = vunpack.c.h.b16 %v1529
    %v1621 = vunpack.c.l.b16 %v1530
    %v1622 = vunpack.c.h.b16 %v1530
    %v1623 = vunpack.c.l.b16 %v1531
    %v1624 = vunpack.c.h.b16 %v1531
    %v1625 = vunpack.c.l.b16 %v1532
    %v1626 = vunpack.c.h.b16 %v1532
    %v1627 = vunpack.c.l.b16 %v1533
    %v1628 = vunpack.c.h.b16 %v1533
    %v1629 = vunpack.c.l.b16 %v1534
    %v1630 = vunpack.c.h.b16 %v1534
    %v1631 = vpack.c.b16 %v1571, %v1567
    %v1632 = vpack.c.b16 %v1572, %v1568
    %v1633 = vpack.c.b16 %v1573, %v1569
    %v1634 = vpack.c.b16 %v1574, %v1570
    %v1635 = vpack.c.b16 %v1579, %v1575
    %v1636 = vpack.c.b16 %v1580, %v1576
    %v1637 = vpack.c.b16 %v1581, %v1577
    %v1638 = vpack.c.b16 %v1582, %v1578
    %v1639 = vpack.c.b16 %v1587, %v1583
    %v1640 = vpack.c.b16 %v1588, %v1584
    %v1641 = vpack.c.b16 %v1589, %v1585
    %v1642 = vpack.c.b16 %v1590, %v1586
    %v1643 = vpack.c.b16 %v1595, %v1591
    %v1644 = vpack.c.b16 %v1596, %v1592
    %v1645 = vpack.c.b16 %v1597, %v1593
    %v1646 = vpack.c.b16 %v1598, %v1594
    %v1647 = vpack.c.b16 %v1603, %v1599
    %v1648 = vpack.c.b16 %v1604, %v1600
    %v1649 = vpack.c.b16 %v1605, %v1601
    %v1650 = vpack.c.b16 %v1606, %v1602
    %v1651 = vpack.c.b16 %v1611, %v1607
    %v1652 = vpack.c.b16 %v1612, %v1608
    %v1653 = vpack.c.b16 %v1613, %v1609
    %v1654 = vpack.c.b16 %v1614, %v1610
    %v1655 = vpack.c.b16 %v1619, %v1615
    %v1656 = vpack.c.b16 %v1620, %v1616
    %v1657 = vpack.c.b16 %v1621, %v1617
    %v1658 = vpack.c.b16 %v1622, %v1618
    %v1659 = vpack.c.b16 %v1627, %v1623
    %v1660 = vpack.c.b16 %v1628, %v1624
    %v1661 = vpack.c.b16 %v1629, %v1625
    %v1662 = vpack.c.b16 %v1630, %v1626
    %1695 = vmatprep.subr.bf16.mxu0 %v1632
    %1696 = vmatpush1.bf16.msra.mxu0 %v1631
    %1697 = vmatprep.subr.bf16.mxu0 %v1636
    %1698 = vmatpush1.bf16.msra.mxu0 %v1635
    %1699 = vmatprep.subr.bf16.mxu0 %v1640
    %1700 = vmatpush1.bf16.msra.mxu0 %v1639
    %1701 = vmatprep.subr.bf16.mxu0 %v1644
    %1702 = vmatpush1.bf16.msra.mxu0 %v1643
    %1703 = vmatprep.subr.bf16.mxu0 %v1648
    %1704 = vmatpush1.bf16.msra.mxu0 %v1647
    %1705 = vmatprep.subr.bf16.mxu0 %v1652
    %1706 = vmatpush1.bf16.msra.mxu0 %v1651
    %1707 = vmatprep.subr.bf16.mxu0 %v1656
    %1708 = vmatpush1.bf16.msra.mxu0 %v1655
    %1709 = vmatprep.subr.bf16.mxu0 %v1660
    %1710 = vmatpush1.bf16.msra.mxu0 %v1659
    %1711 = vmatprep.subr.bf16.mxu0 0
    %1712 = vmatpush1.bf16.msra.mxu0 0
    %1713 = vmatprep.subr.bf16.mxu0 0
    %1714 = vmatpush1.bf16.msra.mxu0 0
    %1715 = vmatprep.subr.bf16.mxu0 0
    %1716 = vmatpush1.bf16.msra.mxu0 0
    %1717 = vmatprep.subr.bf16.mxu0 0
    %1718 = vmatpush1.bf16.msra.mxu0 0
    %1719 = vmatprep.subr.bf16.mxu0 0
    %1720 = vmatpush1.bf16.msra.mxu0 0
    %1721 = vmatprep.subr.bf16.mxu0 0
    %1722 = vmatpush1.bf16.msra.mxu0 0
    %1723 = vmatprep.subr.bf16.mxu0 0
    %1724 = vmatpush1.bf16.msra.mxu0 0
    %1725 = vmatprep.subr.bf16.mxu0 0
    %1726 = vmatpush1.bf16.msra.mxu0 0
    %1727 = vmatprep.mubr.bf16.mxu0 0
    %1728 = vmatmul.mubr.bf16.gmra.mrb[0].mxu0 %v1502
    %v1729 = vpop.f32.mrb[0].mxu0
    %v1730 = vadd.f32 0.0, %v1729
    %v1731 = vpop.f32.mrb[0].mxu0
    %v1732 = vadd.f32 0.0, %v1731
    %v1733 = vpop.f32.mrb[0].mxu0
    %v1734 = vpop.f32.mrb[0].mxu0
    %1735 = vdwg.mxu0
    %1736 = vmatprep.subr.bf16.mxu0 %v1634
    %1737 = vmatpush1.bf16.msra.mxu0 %v1633
    %1738 = vmatprep.subr.bf16.mxu0 %v1638
    %1739 = vmatpush1.bf16.msra.mxu0 %v1637
    %1740 = vmatprep.subr.bf16.mxu0 %v1642
    %1741 = vmatpush1.bf16.msra.mxu0 %v1641
    %1742 = vmatprep.subr.bf16.mxu0 %v1646
    %1743 = vmatpush1.bf16.msra.mxu0 %v1645
    %1744 = vmatprep.subr.bf16.mxu0 %v1650
    %1745 = vmatpush1.bf16.msra.mxu0 %v1649
    %1746 = vmatprep.subr.bf16.mxu0 %v1654
    %1747 = vmatpush1.bf16.msra.mxu0 %v1653
    %1748 = vmatprep.subr.bf16.mxu0 %v1658
    %1749 = vmatpush1.bf16.msra.mxu0 %v1657
    %1750 = vmatprep.subr.bf16.mxu0 %v1662
    %1751 = vmatpush1.bf16.msra.mxu0 %v1661
    %1752 = vmatprep.subr.bf16.mxu0 0
    %1753 = vmatpush1.bf16.msra.mxu0 0
    %1754 = vmatprep.subr.bf16.mxu0 0
    %1755 = vmatpush1.bf16.msra.mxu0 0
    %1756 = vmatprep.subr.bf16.mxu0 0
    %1757 = vmatpush1.bf16.msra.mxu0 0
    %1758 = vmatprep.subr.bf16.mxu0 0
    %1759 = vmatpush1.bf16.msra.mxu0 0
    %1760 = vmatprep.subr.bf16.mxu0 0
    %1761 = vmatpush1.bf16.msra.mxu0 0
    %1762 = vmatprep.subr.bf16.mxu0 0
    %1763 = vmatpush1.bf16.msra.mxu0 0
    %1764 = vmatprep.subr.bf16.mxu0 0
    %1765 = vmatpush1.bf16.msra.mxu0 0
    %1766 = vmatprep.subr.bf16.mxu0 0
    %1767 = vmatpush1.bf16.msra.mxu0 0
    %1768 = vmatprep.mubr.bf16.mxu0 0
    %1769 = vmatmul.mubr.bf16.gmra.mrb[0].mxu0 %v1502
    %v1770 = vpop.f32.mrb[0].mxu0
    %v1771 = vadd.f32 0.0, %v1770
    %v1772 = vpop.f32.mrb[0].mxu0
    %v1773 = vadd.f32 0.0, %v1772
    %v1774 = vpop.f32.mrb[0].mxu0
    %v1775 = vpop.f32.mrb[0].mxu0
    %1776 = vdwg.mxu0
    %v1777 = vadd.f32 %v1498, %v1730
    %v1778 = vadd.f32 %v1499, %v1732
    %v1779 = vadd.f32 %v1500, %v1771
    %v1780 = vadd.f32 %v1501, %v1773
    %v1781 = vxor.u32 %v1777, 2147483648
    %v1782 = vxor.u32 %v1778, 2147483648
    %v1783 = vxor.u32 %v1779, 2147483648
    %v1784 = vmul.f32 %v1781, 1.442695
    %v1785 = vpow.pop %v1784
    %v1786 = vmul.f32 %v1782, 1.442695
    %v1787 = vpow.pop %v1786
    %v1788 = vmul.f32 %v1783, 1.442695
    %v1789 = vpow.pop %v1788
    %v1790 = vadd.f32 %v1785, 1.0
    %v1791 = vadd.f32 %v1787, 1.0
    %v1792 = vadd.f32 %v1789, 1.0
    %v1793 = vrcp.pop %v1790
    %v1794 = vmul.f32 1.0, %v1793
    %v1795 = vrcp.pop %v1791
    %v1796 = vmul.f32 1.0, %v1795
    %v1797 = vrcp.pop %v1792
    %v1798 = vmul.f32 1.0, %v1797
    %v1799 = vtanh.pop %v1780
    %v1800 = vmul.f32 %v1796, %v1490
    %v1801 = vmul.f32 %v1794, %v1799
    %v1802 = vadd.f32 %v1800, %v1801
    %v1803 = vtanh.pop %v1802
    %v1804 = vmul.f32 %v1798, %v1803
    %s1805 = scalar_lea.vmem [#allocation3], 24
    %1806 = vst [vmem:[%s1805] sm:$0xff] %v1804
    %s1807 = smul.u32 4, 4
    %s1808 = smul.addr %s1807, 8
    %s1809 = scalar_lea.vmem [#allocation2], %s1808
    %v1810 = vld [vmem:[%s1809] sm:$0xff]
    %v1811 = vld [vmem:[%s1809 + $0x8] sm:$0xff]
    %v1812 = vld [vmem:[%s1809 + $0x10] sm:$0xff]
    %v1813 = vld [vmem:[%s1809 + $0x18] sm:$0xff]
    %v1814 = vpack.c.bf16 %v1804, %v1804
    %v1815 = vld [vmem:[#allocation9] sm:$0xff]
    %v1816 = vld [vmem:[#allocation9 + $0x8] sm:$0xff]
    %v1817 = vld [vmem:[#allocation9 + $0x10] sm:$0xff]
    %v1818 = vld [vmem:[#allocation9 + $0x18] sm:$0xff]
    %v1819 = vld [vmem:[#allocation9 + $0x20] sm:$0xff]
    %v1820 = vld [vmem:[#allocation9 + $0x28] sm:$0xff]
    %v1821 = vld [vmem:[#allocation9 + $0x30] sm:$0xff]
    %v1822 = vld [vmem:[#allocation9 + $0x38] sm:$0xff]
    %v1823 = vld [vmem:[#allocation9 + $0x40] sm:$0xff]
    %v1824 = vld [vmem:[#allocation9 + $0x48] sm:$0xff]
    %v1825 = vld [vmem:[#allocation9 + $0x50] sm:$0xff]
    %v1826 = vld [vmem:[#allocation9 + $0x58] sm:$0xff]
    %v1827 = vld [vmem:[#allocation9 + $0x60] sm:$0xff]
    %v1828 = vld [vmem:[#allocation9 + $0x68] sm:$0xff]
    %v1829 = vld [vmem:[#allocation9 + $0x70] sm:$0xff]
    %v1830 = vld [vmem:[#allocation9 + $0x78] sm:$0xff]
    %v1831 = vld [vmem:[#allocation9 + $0x80] sm:$0xff]
    %v1832 = vld [vmem:[#allocation9 + $0x88] sm:$0xff]
    %v1833 = vld [vmem:[#allocation9 + $0x90] sm:$0xff]
    %v1834 = vld [vmem:[#allocation9 + $0x98] sm:$0xff]
    %v1835 = vld [vmem:[#allocation9 + $0xa0] sm:$0xff]
    %v1836 = vld [vmem:[#allocation9 + $0xa8] sm:$0xff]
    %v1837 = vld [vmem:[#allocation9 + $0xb0] sm:$0xff]
    %v1838 = vld [vmem:[#allocation9 + $0xb8] sm:$0xff]
    %v1839 = vld [vmem:[#allocation9 + $0xc0] sm:$0xff]
    %v1840 = vld [vmem:[#allocation9 + $0xc8] sm:$0xff]
    %v1841 = vld [vmem:[#allocation9 + $0xd0] sm:$0xff]
    %v1842 = vld [vmem:[#allocation9 + $0xd8] sm:$0xff]
    %v1843 = vld [vmem:[#allocation9 + $0xe0] sm:$0xff]
    %v1844 = vld [vmem:[#allocation9 + $0xe8] sm:$0xff]
    %v1845 = vld [vmem:[#allocation9 + $0xf0] sm:$0xff]
    %v1846 = vld [vmem:[#allocation9 + $0xf8] sm:$0xff]
    %v1879 = vunpack.c.l.b16 %v1815
    %v1880 = vunpack.c.h.b16 %v1815
    %v1881 = vunpack.c.l.b16 %v1816
    %v1882 = vunpack.c.h.b16 %v1816
    %v1883 = vunpack.c.l.b16 %v1817
    %v1884 = vunpack.c.h.b16 %v1817
    %v1885 = vunpack.c.l.b16 %v1818
    %v1886 = vunpack.c.h.b16 %v1818
    %v1887 = vunpack.c.l.b16 %v1819
    %v1888 = vunpack.c.h.b16 %v1819
    %v1889 = vunpack.c.l.b16 %v1820
    %v1890 = vunpack.c.h.b16 %v1820
    %v1891 = vunpack.c.l.b16 %v1821
    %v1892 = vunpack.c.h.b16 %v1821
    %v1893 = vunpack.c.l.b16 %v1822
    %v1894 = vunpack.c.h.b16 %v1822
    %v1895 = vunpack.c.l.b16 %v1823
    %v1896 = vunpack.c.h.b16 %v1823
    %v1897 = vunpack.c.l.b16 %v1824
    %v1898 = vunpack.c.h.b16 %v1824
    %v1899 = vunpack.c.l.b16 %v1825
    %v1900 = vunpack.c.h.b16 %v1825
    %v1901 = vunpack.c.l.b16 %v1826
    %v1902 = vunpack.c.h.b16 %v1826
    %v1903 = vunpack.c.l.b16 %v1827
    %v1904 = vunpack.c.h.b16 %v1827
    %v1905 = vunpack.c.l.b16 %v1828
    %v1906 = vunpack.c.h.b16 %v1828
    %v1907 = vunpack.c.l.b16 %v1829
    %v1908 = vunpack.c.h.b16 %v1829
    %v1909 = vunpack.c.l.b16 %v1830
    %v1910 = vunpack.c.h.b16 %v1830
    %v1911 = vunpack.c.l.b16 %v1831
    %v1912 = vunpack.c.h.b16 %v1831
    %v1913 = vunpack.c.l.b16 %v1832
    %v1914 = vunpack.c.h.b16 %v1832
    %v1915 = vunpack.c.l.b16 %v1833
    %v1916 = vunpack.c.h.b16 %v1833
    %v1917 = vunpack.c.l.b16 %v1834
    %v1918 = vunpack.c.h.b16 %v1834
    %v1919 = vunpack.c.l.b16 %v1835
    %v1920 = vunpack.c.h.b16 %v1835
    %v1921 = vunpack.c.l.b16 %v1836
    %v1922 = vunpack.c.h.b16 %v1836
    %v1923 = vunpack.c.l.b16 %v1837
    %v1924 = vunpack.c.h.b16 %v1837
    %v1925 = vunpack.c.l.b16 %v1838
    %v1926 = vunpack.c.h.b16 %v1838
    %v1927 = vunpack.c.l.b16 %v1839
    %v1928 = vunpack.c.h.b16 %v1839
    %v1929 = vunpack.c.l.b16 %v1840
    %v1930 = vunpack.c.h.b16 %v1840
    %v1931 = vunpack.c.l.b16 %v1841
    %v1932 = vunpack.c.h.b16 %v1841
    %v1933 = vunpack.c.l.b16 %v1842
    %v1934 = vunpack.c.h.b16 %v1842
    %v1935 = vunpack.c.l.b16 %v1843
    %v1936 = vunpack.c.h.b16 %v1843
    %v1937 = vunpack.c.l.b16 %v1844
    %v1938 = vunpack.c.h.b16 %v1844
    %v1939 = vunpack.c.l.b16 %v1845
    %v1940 = vunpack.c.h.b16 %v1845
    %v1941 = vunpack.c.l.b16 %v1846
    %v1942 = vunpack.c.h.b16 %v1846
    %v1943 = vpack.c.b16 %v1883, %v1879
    %v1944 = vpack.c.b16 %v1884, %v1880
    %v1945 = vpack.c.b16 %v1885, %v1881
    %v1946 = vpack.c.b16 %v1886, %v1882
    %v1947 = vpack.c.b16 %v1891, %v1887
    %v1948 = vpack.c.b16 %v1892, %v1888
    %v1949 = vpack.c.b16 %v1893, %v1889
    %v1950 = vpack.c.b16 %v1894, %v1890
    %v1951 = vpack.c.b16 %v1899, %v1895
    %v1952 = vpack.c.b16 %v1900, %v1896
    %v1953 = vpack.c.b16 %v1901, %v1897
    %v1954 = vpack.c.b16 %v1902, %v1898
    %v1955 = vpack.c.b16 %v1907, %v1903
    %v1956 = vpack.c.b16 %v1908, %v1904
    %v1957 = vpack.c.b16 %v1909, %v1905
    %v1958 = vpack.c.b16 %v1910, %v1906
    %v1959 = vpack.c.b16 %v1915, %v1911
    %v1960 = vpack.c.b16 %v1916, %v1912
    %v1961 = vpack.c.b16 %v1917, %v1913
    %v1962 = vpack.c.b16 %v1918, %v1914
    %v1963 = vpack.c.b16 %v1923, %v1919
    %v1964 = vpack.c.b16 %v1924, %v1920
    %v1965 = vpack.c.b16 %v1925, %v1921
    %v1966 = vpack.c.b16 %v1926, %v1922
    %v1967 = vpack.c.b16 %v1931, %v1927
    %v1968 = vpack.c.b16 %v1932, %v1928
    %v1969 = vpack.c.b16 %v1933, %v1929
    %v1970 = vpack.c.b16 %v1934, %v1930
    %v1971 = vpack.c.b16 %v1939, %v1935
    %v1972 = vpack.c.b16 %v1940, %v1936
    %v1973 = vpack.c.b16 %v1941, %v1937
    %v1974 = vpack.c.b16 %v1942, %v1938
    %2007 = vmatprep.subr.bf16.mxu0 %v1944
    %2008 = vmatpush1.bf16.msra.mxu0 %v1943
    %2009 = vmatprep.subr.bf16.mxu0 %v1948
    %2010 = vmatpush1.bf16.msra.mxu0 %v1947
    %2011 = vmatprep.subr.bf16.mxu0 %v1952
    %2012 = vmatpush1.bf16.msra.mxu0 %v1951
    %2013 = vmatprep.subr.bf16.mxu0 %v1956
    %2014 = vmatpush1.bf16.msra.mxu0 %v1955
    %2015 = vmatprep.subr.bf16.mxu0 %v1960
    %2016 = vmatpush1.bf16.msra.mxu0 %v1959
    %2017 = vmatprep.subr.bf16.mxu0 %v1964
    %2018 = vmatpush1.bf16.msra.mxu0 %v1963
    %2019 = vmatprep.subr.bf16.mxu0 %v1968
    %2020 = vmatpush1.bf16.msra.mxu0 %v1967
    %2021 = vmatprep.subr.bf16.mxu0 %v1972
    %2022 = vmatpush1.bf16.msra.mxu0 %v1971
    %2023 = vmatprep.subr.bf16.mxu0 0
    %2024 = vmatpush1.bf16.msra.mxu0 0
    %2025 = vmatprep.subr.bf16.mxu0 0
    %2026 = vmatpush1.bf16.msra.mxu0 0
    %2027 = vmatprep.subr.bf16.mxu0 0
    %2028 = vmatpush1.bf16.msra.mxu0 0
    %2029 = vmatprep.subr.bf16.mxu0 0
    %2030 = vmatpush1.bf16.msra.mxu0 0
    %2031 = vmatprep.subr.bf16.mxu0 0
    %2032 = vmatpush1.bf16.msra.mxu0 0
    %2033 = vmatprep.subr.bf16.mxu0 0
    %2034 = vmatpush1.bf16.msra.mxu0 0
    %2035 = vmatprep.subr.bf16.mxu0 0
    %2036 = vmatpush1.bf16.msra.mxu0 0
    %2037 = vmatprep.subr.bf16.mxu0 0
    %2038 = vmatpush1.bf16.msra.mxu0 0
    %2039 = vmatprep.mubr.bf16.mxu0 0
    %2040 = vmatmul.mubr.bf16.gmra.mrb[0].mxu0 %v1814
    %v2041 = vpop.f32.mrb[0].mxu0
    %v2042 = vadd.f32 0.0, %v2041
    %v2043 = vpop.f32.mrb[0].mxu0
    %v2044 = vadd.f32 0.0, %v2043
    %v2045 = vpop.f32.mrb[0].mxu0
    %v2046 = vpop.f32.mrb[0].mxu0
    %2047 = vdwg.mxu0
    %2048 = vmatprep.subr.bf16.mxu0 %v1946
    %2049 = vmatpush1.bf16.msra.mxu0 %v1945
    %2050 = vmatprep.subr.bf16.mxu0 %v1950
    %2051 = vmatpush1.bf16.msra.mxu0 %v1949
    %2052 = vmatprep.subr.bf16.mxu0 %v1954
    %2053 = vmatpush1.bf16.msra.mxu0 %v1953
    %2054 = vmatprep.subr.bf16.mxu0 %v1958
    %2055 = vmatpush1.bf16.msra.mxu0 %v1957
    %2056 = vmatprep.subr.bf16.mxu0 %v1962
    %2057 = vmatpush1.bf16.msra.mxu0 %v1961
    %2058 = vmatprep.subr.bf16.mxu0 %v1966
    %2059 = vmatpush1.bf16.msra.mxu0 %v1965
    %2060 = vmatprep.subr.bf16.mxu0 %v1970
    %2061 = vmatpush1.bf16.msra.mxu0 %v1969
    %2062 = vmatprep.subr.bf16.mxu0 %v1974
    %2063 = vmatpush1.bf16.msra.mxu0 %v1973
    %2064 = vmatprep.subr.bf16.mxu0 0
    %2065 = vmatpush1.bf16.msra.mxu0 0
    %2066 = vmatprep.subr.bf16.mxu0 0
    %2067 = vmatpush1.bf16.msra.mxu0 0
    %2068 = vmatprep.subr.bf16.mxu0 0
    %2069 = vmatpush1.bf16.msra.mxu0 0
    %2070 = vmatprep.subr.bf16.mxu0 0
    %2071 = vmatpush1.bf16.msra.mxu0 0
    %2072 = vmatprep.subr.bf16.mxu0 0
    %2073 = vmatpush1.bf16.msra.mxu0 0
    %2074 = vmatprep.subr.bf16.mxu0 0
    %2075 = vmatpush1.bf16.msra.mxu0 0
    %2076 = vmatprep.subr.bf16.mxu0 0
    %2077 = vmatpush1.bf16.msra.mxu0 0
    %2078 = vmatprep.subr.bf16.mxu0 0
    %2079 = vmatpush1.bf16.msra.mxu0 0
    %2080 = vmatprep.mubr.bf16.mxu0 0
    %2081 = vmatmul.mubr.bf16.gmra.mrb[0].mxu0 %v1814
    %v2082 = vpop.f32.mrb[0].mxu0
    %v2083 = vadd.f32 0.0, %v2082
    %v2084 = vpop.f32.mrb[0].mxu0
    %v2085 = vadd.f32 0.0, %v2084
    %v2086 = vpop.f32.mrb[0].mxu0
    %v2087 = vpop.f32.mrb[0].mxu0
    %2088 = vdwg.mxu0
    %v2089 = vadd.f32 %v1810, %v2042
    %v2090 = vadd.f32 %v1811, %v2044
    %v2091 = vadd.f32 %v1812, %v2083
    %v2092 = vadd.f32 %v1813, %v2085
    %v2093 = vxor.u32 %v2089, 2147483648
    %v2094 = vxor.u32 %v2090, 2147483648
    %v2095 = vxor.u32 %v2091, 2147483648
    %v2096 = vmul.f32 %v2093, 1.442695
    %v2097 = vpow.pop %v2096
    %v2098 = vmul.f32 %v2094, 1.442695
    %v2099 = vpow.pop %v2098
    %v2100 = vmul.f32 %v2095, 1.442695
    %v2101 = vpow.pop %v2100
    %v2102 = vadd.f32 %v2097, 1.0
    %v2103 = vadd.f32 %v2099, 1.0
    %v2104 = vadd.f32 %v2101, 1.0
    %v2105 = vrcp.pop %v2102
    %v2106 = vmul.f32 1.0, %v2105
    %v2107 = vrcp.pop %v2103
    %v2108 = vmul.f32 1.0, %v2107
    %v2109 = vrcp.pop %v2104
    %v2110 = vmul.f32 1.0, %v2109
    %v2111 = vtanh.pop %v2092
    %v2112 = vmul.f32 %v2108, %v1802
    %v2113 = vmul.f32 %v2106, %v2111
    %v2114 = vadd.f32 %v2112, %v2113
    %v2115 = vtanh.pop %v2114
    %v2116 = vmul.f32 %v2110, %v2115
    %s2117 = scalar_lea.vmem [#allocation3], 32
    %2118 = vst [vmem:[%s2117] sm:$0xff] %v2116
    %s2119 = smul.u32 5, 4
    %s2120 = smul.addr %s2119, 8
    %s2121 = scalar_lea.vmem [#allocation2], %s2120
    %v2122 = vld [vmem:[%s2121] sm:$0xff]
    %v2123 = vld [vmem:[%s2121 + $0x8] sm:$0xff]
    %v2124 = vld [vmem:[%s2121 + $0x10] sm:$0xff]
    %v2125 = vld [vmem:[%s2121 + $0x18] sm:$0xff]
    %v2126 = vpack.c.bf16 %v2116, %v2116
    %v2127 = vld [vmem:[#allocation9] sm:$0xff]
    %v2128 = vld [vmem:[#allocation9 + $0x8] sm:$0xff]
    %v2129 = vld [vmem:[#allocation9 + $0x10] sm:$0xff]
    %v2130 = vld [vmem:[#allocation9 + $0x18] sm:$0xff]
    %v2131 = vld [vmem:[#allocation9 + $0x20] sm:$0xff]
    %v2132 = vld [vmem:[#allocation9 + $0x28] sm:$0xff]
    %v2133 = vld [vmem:[#allocation9 + $0x30] sm:$0xff]
    %v2134 = vld [vmem:[#allocation9 + $0x38] sm:$0xff]
    %v2135 = vld [vmem:[#allocation9 + $0x40] sm:$0xff]
    %v2136 = vld [vmem:[#allocation9 + $0x48] sm:$0xff]
    %v2137 = vld [vmem:[#allocation9 + $0x50] sm:$0xff]
    %v2138 = vld [vmem:[#allocation9 + $0x58] sm:$0xff]
    %v2139 = vld [vmem:[#allocation9 + $0x60] sm:$0xff]
    %v2140 = vld [vmem:[#allocation9 + $0x68] sm:$0xff]
    %v2141 = vld [vmem:[#allocation9 + $0x70] sm:$0xff]
    %v2142 = vld [vmem:[#allocation9 + $0x78] sm:$0xff]
    %v2143 = vld [vmem:[#allocation9 + $0x80] sm:$0xff]
    %v2144 = vld [vmem:[#allocation9 + $0x88] sm:$0xff]
    %v2145 = vld [vmem:[#allocation9 + $0x90] sm:$0xff]
    %v2146 = vld [vmem:[#allocation9 + $0x98] sm:$0xff]
    %v2147 = vld [vmem:[#allocation9 + $0xa0] sm:$0xff]
    %v2148 = vld [vmem:[#allocation9 + $0xa8] sm:$0xff]
    %v2149 = vld [vmem:[#allocation9 + $0xb0] sm:$0xff]
    %v2150 = vld [vmem:[#allocation9 + $0xb8] sm:$0xff]
    %v2151 = vld [vmem:[#allocation9 + $0xc0] sm:$0xff]
    %v2152 = vld [vmem:[#allocation9 + $0xc8] sm:$0xff]
    %v2153 = vld [vmem:[#allocation9 + $0xd0] sm:$0xff]
    %v2154 = vld [vmem:[#allocation9 + $0xd8] sm:$0xff]
    %v2155 = vld [vmem:[#allocation9 + $0xe0] sm:$0xff]
    %v2156 = vld [vmem:[#allocation9 + $0xe8] sm:$0xff]
    %v2157 = vld [vmem:[#allocation9 + $0xf0] sm:$0xff]
    %v2158 = vld [vmem:[#allocation9 + $0xf8] sm:$0xff]
    %v2191 = vunpack.c.l.b16 %v2127
    %v2192 = vunpack.c.h.b16 %v2127
    %v2193 = vunpack.c.l.b16 %v2128
    %v2194 = vunpack.c.h.b16 %v2128
    %v2195 = vunpack.c.l.b16 %v2129
    %v2196 = vunpack.c.h.b16 %v2129
    %v2197 = vunpack.c.l.b16 %v2130
    %v2198 = vunpack.c.h.b16 %v2130
    %v2199 = vunpack.c.l.b16 %v2131
    %v2200 = vunpack.c.h.b16 %v2131
    %v2201 = vunpack.c.l.b16 %v2132
    %v2202 = vunpack.c.h.b16 %v2132
    %v2203 = vunpack.c.l.b16 %v2133
    %v2204 = vunpack.c.h.b16 %v2133
    %v2205 = vunpack.c.l.b16 %v2134
    %v2206 = vunpack.c.h.b16 %v2134
    %v2207 = vunpack.c.l.b16 %v2135
    %v2208 = vunpack.c.h.b16 %v2135
    %v2209 = vunpack.c.l.b16 %v2136
    %v2210 = vunpack.c.h.b16 %v2136
    %v2211 = vunpack.c.l.b16 %v2137
    %v2212 = vunpack.c.h.b16 %v2137
    %v2213 = vunpack.c.l.b16 %v2138
    %v2214 = vunpack.c.h.b16 %v2138
    %v2215 = vunpack.c.l.b16 %v2139
    %v2216 = vunpack.c.h.b16 %v2139
    %v2217 = vunpack.c.l.b16 %v2140
    %v2218 = vunpack.c.h.b16 %v2140
    %v2219 = vunpack.c.l.b16 %v2141
    %v2220 = vunpack.c.h.b16 %v2141
    %v2221 = vunpack.c.l.b16 %v2142
    %v2222 = vunpack.c.h.b16 %v2142
    %v2223 = vunpack.c.l.b16 %v2143
    %v2224 = vunpack.c.h.b16 %v2143
    %v2225 = vunpack.c.l.b16 %v2144
    %v2226 = vunpack.c.h.b16 %v2144
    %v2227 = vunpack.c.l.b16 %v2145
    %v2228 = vunpack.c.h.b16 %v2145
    %v2229 = vunpack.c.l.b16 %v2146
    %v2230 = vunpack.c.h.b16 %v2146
    %v2231 = vunpack.c.l.b16 %v2147
    %v2232 = vunpack.c.h.b16 %v2147
    %v2233 = vunpack.c.l.b16 %v2148
    %v2234 = vunpack.c.h.b16 %v2148
    %v2235 = vunpack.c.l.b16 %v2149
    %v2236 = vunpack.c.h.b16 %v2149
    %v2237 = vunpack.c.l.b16 %v2150
    %v2238 = vunpack.c.h.b16 %v2150
    %v2239 = vunpack.c.l.b16 %v2151
    %v2240 = vunpack.c.h.b16 %v2151
    %v2241 = vunpack.c.l.b16 %v2152
    %v2242 = vunpack.c.h.b16 %v2152
    %v2243 = vunpack.c.l.b16 %v2153
    %v2244 = vunpack.c.h.b16 %v2153
    %v2245 = vunpack.c.l.b16 %v2154
    %v2246 = vunpack.c.h.b16 %v2154
    %v2247 = vunpack.c.l.b16 %v2155
    %v2248 = vunpack.c.h.b16 %v2155
    %v2249 = vunpack.c.l.b16 %v2156
    %v2250 = vunpack.c.h.b16 %v2156
    %v2251 = vunpack.c.l.b16 %v2157
    %v2252 = vunpack.c.h.b16 %v2157
    %v2253 = vunpack.c.l.b16 %v2158
    %v2254 = vunpack.c.h.b16 %v2158
    %v2255 = vpack.c.b16 %v2195, %v2191
    %v2256 = vpack.c.b16 %v2196, %v2192
    %v2257 = vpack.c.b16 %v2197, %v2193
    %v2258 = vpack.c.b16 %v2198, %v2194
    %v2259 = vpack.c.b16 %v2203, %v2199
    %v2260 = vpack.c.b16 %v2204, %v2200
    %v2261 = vpack.c.b16 %v2205, %v2201
    %v2262 = vpack.c.b16 %v2206, %v2202
    %v2263 = vpack.c.b16 %v2211, %v2207
    %v2264 = vpack.c.b16 %v2212, %v2208
    %v2265 = vpack.c.b16 %v2213, %v2209
    %v2266 = vpack.c.b16 %v2214, %v2210
    %v2267 = vpack.c.b16 %v2219, %v2215
    %v2268 = vpack.c.b16 %v2220, %v2216
    %v2269 = vpack.c.b16 %v2221, %v2217
    %v2270 = vpack.c.b16 %v2222, %v2218
    %v2271 = vpack.c.b16 %v2227, %v2223
    %v2272 = vpack.c.b16 %v2228, %v2224
    %v2273 = vpack.c.b16 %v2229, %v2225
    %v2274 = vpack.c.b16 %v2230, %v2226
    %v2275 = vpack.c.b16 %v2235, %v2231
    %v2276 = vpack.c.b16 %v2236, %v2232
    %v2277 = vpack.c.b16 %v2237, %v2233
    %v2278 = vpack.c.b16 %v2238, %v2234
    %v2279 = vpack.c.b16 %v2243, %v2239
    %v2280 = vpack.c.b16 %v2244, %v2240
    %v2281 = vpack.c.b16 %v2245, %v2241
    %v2282 = vpack.c.b16 %v2246, %v2242
    %v2283 = vpack.c.b16 %v2251, %v2247
    %v2284 = vpack.c.b16 %v2252, %v2248
    %v2285 = vpack.c.b16 %v2253, %v2249
    %v2286 = vpack.c.b16 %v2254, %v2250
    %2319 = vmatprep.subr.bf16.mxu0 %v2256
    %2320 = vmatpush1.bf16.msra.mxu0 %v2255
    %2321 = vmatprep.subr.bf16.mxu0 %v2260
    %2322 = vmatpush1.bf16.msra.mxu0 %v2259
    %2323 = vmatprep.subr.bf16.mxu0 %v2264
    %2324 = vmatpush1.bf16.msra.mxu0 %v2263
    %2325 = vmatprep.subr.bf16.mxu0 %v2268
    %2326 = vmatpush1.bf16.msra.mxu0 %v2267
    %2327 = vmatprep.subr.bf16.mxu0 %v2272
    %2328 = vmatpush1.bf16.msra.mxu0 %v2271
    %2329 = vmatprep.subr.bf16.mxu0 %v2276
    %2330 = vmatpush1.bf16.msra.mxu0 %v2275
    %2331 = vmatprep.subr.bf16.mxu0 %v2280
    %2332 = vmatpush1.bf16.msra.mxu0 %v2279
    %2333 = vmatprep.subr.bf16.mxu0 %v2284
    %2334 = vmatpush1.bf16.msra.mxu0 %v2283
    %2335 = vmatprep.subr.bf16.mxu0 0
    %2336 = vmatpush1.bf16.msra.mxu0 0
    %2337 = vmatprep.subr.bf16.mxu0 0
    %2338 = vmatpush1.bf16.msra.mxu0 0
    %2339 = vmatprep.subr.bf16.mxu0 0
    %2340 = vmatpush1.bf16.msra.mxu0 0
    %2341 = vmatprep.subr.bf16.mxu0 0
    %2342 = vmatpush1.bf16.msra.mxu0 0
    %2343 = vmatprep.subr.bf16.mxu0 0
    %2344 = vmatpush1.bf16.msra.mxu0 0
    %2345 = vmatprep.subr.bf16.mxu0 0
    %2346 = vmatpush1.bf16.msra.mxu0 0
    %2347 = vmatprep.subr.bf16.mxu0 0
    %2348 = vmatpush1.bf16.msra.mxu0 0
    %2349 = vmatprep.subr.bf16.mxu0 0
    %2350 = vmatpush1.bf16.msra.mxu0 0
    %2351 = vmatprep.mubr.bf16.mxu0 0
    %2352 = vmatmul.mubr.bf16.gmra.mrb[0].mxu0 %v2126
    %v2353 = vpop.f32.mrb[0].mxu0
    %v2354 = vadd.f32 0.0, %v2353
    %v2355 = vpop.f32.mrb[0].mxu0
    %v2356 = vadd.f32 0.0, %v2355
    %v2357 = vpop.f32.mrb[0].mxu0
    %v2358 = vpop.f32.mrb[0].mxu0
    %2359 = vdwg.mxu0
    %2360 = vmatprep.subr.bf16.mxu0 %v2258
    %2361 = vmatpush1.bf16.msra.mxu0 %v2257
    %2362 = vmatprep.subr.bf16.mxu0 %v2262
    %2363 = vmatpush1.bf16.msra.mxu0 %v2261
    %2364 = vmatprep.subr.bf16.mxu0 %v2266
    %2365 = vmatpush1.bf16.msra.mxu0 %v2265
    %2366 = vmatprep.subr.bf16.mxu0 %v2270
    %2367 = vmatpush1.bf16.msra.mxu0 %v2269
    %2368 = vmatprep.subr.bf16.mxu0 %v2274
    %2369 = vmatpush1.bf16.msra.mxu0 %v2273
    %2370 = vmatprep.subr.bf16.mxu0 %v2278
    %2371 = vmatpush1.bf16.msra.mxu0 %v2277
    %2372 = vmatprep.subr.bf16.mxu0 %v2282
    %2373 = vmatpush1.bf16.msra.mxu0 %v2281
    %2374 = vmatprep.subr.bf16.mxu0 %v2286
    %2375 = vmatpush1.bf16.msra.mxu0 %v2285
    %2376 = vmatprep.subr.bf16.mxu0 0
    %2377 = vmatpush1.bf16.msra.mxu0 0
    %2378 = vmatprep.subr.bf16.mxu0 0
    %2379 = vmatpush1.bf16.msra.mxu0 0
    %2380 = vmatprep.subr.bf16.mxu0 0
    %2381 = vmatpush1.bf16.msra.mxu0 0
    %2382 = vmatprep.subr.bf16.mxu0 0
    %2383 = vmatpush1.bf16.msra.mxu0 0
    %2384 = vmatprep.subr.bf16.mxu0 0
    %2385 = vmatpush1.bf16.msra.mxu0 0
    %2386 = vmatprep.subr.bf16.mxu0 0
    %2387 = vmatpush1.bf16.msra.mxu0 0
    %2388 = vmatprep.subr.bf16.mxu0 0
    %2389 = vmatpush1.bf16.msra.mxu0 0
    %2390 = vmatprep.subr.bf16.mxu0 0
    %2391 = vmatpush1.bf16.msra.mxu0 0
    %2392 = vmatprep.mubr.bf16.mxu0 0
    %2393 = vmatmul.mubr.bf16.gmra.mrb[0].mxu0 %v2126
    %v2394 = vpop.f32.mrb[0].mxu0
    %v2395 = vadd.f32 0.0, %v2394
    %v2396 = vpop.f32.mrb[0].mxu0
    %v2397 = vadd.f32 0.0, %v2396
    %v2398 = vpop.f32.mrb[0].mxu0
    %v2399 = vpop.f32.mrb[0].mxu0
    %2400 = vdwg.mxu0
    %v2401 = vadd.f32 %v2122, %v2354
    %v2402 = vadd.f32 %v2123, %v2356
    %v2403 = vadd.f32 %v2124, %v2395
    %v2404 = vadd.f32 %v2125, %v2397
    %v2405 = vxor.u32 %v2401, 2147483648
    %v2406 = vxor.u32 %v2402, 2147483648
    %v2407 = vxor.u32 %v2403, 2147483648
    %v2408 = vmul.f32 %v2405, 1.442695
    %v2409 = vpow.pop %v2408
    %v2410 = vmul.f32 %v2406, 1.442695
    %v2411 = vpow.pop %v2410
    %v2412 = vmul.f32 %v2407, 1.442695
    %v2413 = vpow.pop %v2412
    %v2414 = vadd.f32 %v2409, 1.0
    %v2415 = vadd.f32 %v2411, 1.0
    %v2416 = vadd.f32 %v2413, 1.0
    %v2417 = vrcp.pop %v2414
    %v2418 = vmul.f32 1.0, %v2417
    %v2419 = vrcp.pop %v2415
    %v2420 = vmul.f32 1.0, %v2419
    %v2421 = vrcp.pop %v2416
    %v2422 = vmul.f32 1.0, %v2421
    %v2423 = vtanh.pop %v2404
    %v2424 = vmul.f32 %v2420, %v2114
    %v2425 = vmul.f32 %v2418, %v2423
    %v2426 = vadd.f32 %v2424, %v2425
    %v2427 = vtanh.pop %v2426
    %v2428 = vmul.f32 %v2422, %v2427
    %s2429 = scalar_lea.vmem [#allocation3], 40
    %2430 = vst [vmem:[%s2429] sm:$0xff] %v2428
    %s2431 = smul.u32 6, 4
    %s2432 = smul.addr %s2431, 8
    %s2433 = scalar_lea.vmem [#allocation2], %s2432
    %v2434 = vld [vmem:[%s2433] sm:$0xff]
    %v2435 = vld [vmem:[%s2433 + $0x8] sm:$0xff]
    %v2436 = vld [vmem:[%s2433 + $0x10] sm:$0xff]
    %v2437 = vld [vmem:[%s2433 + $0x18] sm:$0xff]
    %v2438 = vpack.c.bf16 %v2428, %v2428
    %v2439 = vld [vmem:[#allocation9] sm:$0xff]
    %v2440 = vld [vmem:[#allocation9 + $0x8] sm:$0xff]
    %v2441 = vld [vmem:[#allocation9 + $0x10] sm:$0xff]
    %v2442 = vld [vmem:[#allocation9 + $0x18] sm:$0xff]
    %v2443 = vld [vmem:[#allocation9 + $0x20] sm:$0xff]
    %v2444 = vld [vmem:[#allocation9 + $0x28] sm:$0xff]
    %v2445 = vld [vmem:[#allocation9 + $0x30] sm:$0xff]
    %v2446 = vld [vmem:[#allocation9 + $0x38] sm:$0xff]
    %v2447 = vld [vmem:[#allocation9 + $0x40] sm:$0xff]
    %v2448 = vld [vmem:[#allocation9 + $0x48] sm:$0xff]
    %v2449 = vld [vmem:[#allocation9 + $0x50] sm:$0xff]
    %v2450 = vld [vmem:[#allocation9 + $0x58] sm:$0xff]
    %v2451 = vld [vmem:[#allocation9 + $0x60] sm:$0xff]
    %v2452 = vld [vmem:[#allocation9 + $0x68] sm:$0xff]
    %v2453 = vld [vmem:[#allocation9 + $0x70] sm:$0xff]
    %v2454 = vld [vmem:[#allocation9 + $0x78] sm:$0xff]
    %v2455 = vld [vmem:[#allocation9 + $0x80] sm:$0xff]
    %v2456 = vld [vmem:[#allocation9 + $0x88] sm:$0xff]
    %v2457 = vld [vmem:[#allocation9 + $0x90] sm:$0xff]
    %v2458 = vld [vmem:[#allocation9 + $0x98] sm:$0xff]
    %v2459 = vld [vmem:[#allocation9 + $0xa0] sm:$0xff]
    %v2460 = vld [vmem:[#allocation9 + $0xa8] sm:$0xff]
    %v2461 = vld [vmem:[#allocation9 + $0xb0] sm:$0xff]
    %v2462 = vld [vmem:[#allocation9 + $0xb8] sm:$0xff]
    %v2463 = vld [vmem:[#allocation9 + $0xc0] sm:$0xff]
    %v2464 = vld [vmem:[#allocation9 + $0xc8] sm:$0xff]
    %v2465 = vld [vmem:[#allocation9 + $0xd0] sm:$0xff]
    %v2466 = vld [vmem:[#allocation9 + $0xd8] sm:$0xff]
    %v2467 = vld [vmem:[#allocation9 + $0xe0] sm:$0xff]
    %v2468 = vld [vmem:[#allocation9 + $0xe8] sm:$0xff]
    %v2469 = vld [vmem:[#allocation9 + $0xf0] sm:$0xff]
    %v2470 = vld [vmem:[#allocation9 + $0xf8] sm:$0xff]
    %v2503 = vunpack.c.l.b16 %v2439
    %v2504 = vunpack.c.h.b16 %v2439
    %v2505 = vunpack.c.l.b16 %v2440
    %v2506 = vunpack.c.h.b16 %v2440
    %v2507 = vunpack.c.l.b16 %v2441
    %v2508 = vunpack.c.h.b16 %v2441
    %v2509 = vunpack.c.l.b16 %v2442
    %v2510 = vunpack.c.h.b16 %v2442
    %v2511 = vunpack.c.l.b16 %v2443
    %v2512 = vunpack.c.h.b16 %v2443
    %v2513 = vunpack.c.l.b16 %v2444
    %v2514 = vunpack.c.h.b16 %v2444
    %v2515 = vunpack.c.l.b16 %v2445
    %v2516 = vunpack.c.h.b16 %v2445
    %v2517 = vunpack.c.l.b16 %v2446
    %v2518 = vunpack.c.h.b16 %v2446
    %v2519 = vunpack.c.l.b16 %v2447
    %v2520 = vunpack.c.h.b16 %v2447
    %v2521 = vunpack.c.l.b16 %v2448
    %v2522 = vunpack.c.h.b16 %v2448
    %v2523 = vunpack.c.l.b16 %v2449
    %v2524 = vunpack.c.h.b16 %v2449
    %v2525 = vunpack.c.l.b16 %v2450
    %v2526 = vunpack.c.h.b16 %v2450
    %v2527 = vunpack.c.l.b16 %v2451
    %v2528 = vunpack.c.h.b16 %v2451
    %v2529 = vunpack.c.l.b16 %v2452
    %v2530 = vunpack.c.h.b16 %v2452
    %v2531 = vunpack.c.l.b16 %v2453
    %v2532 = vunpack.c.h.b16 %v2453
    %v2533 = vunpack.c.l.b16 %v2454
    %v2534 = vunpack.c.h.b16 %v2454
    %v2535 = vunpack.c.l.b16 %v2455
    %v2536 = vunpack.c.h.b16 %v2455
    %v2537 = vunpack.c.l.b16 %v2456
    %v2538 = vunpack.c.h.b16 %v2456
    %v2539 = vunpack.c.l.b16 %v2457
    %v2540 = vunpack.c.h.b16 %v2457
    %v2541 = vunpack.c.l.b16 %v2458
    %v2542 = vunpack.c.h.b16 %v2458
    %v2543 = vunpack.c.l.b16 %v2459
    %v2544 = vunpack.c.h.b16 %v2459
    %v2545 = vunpack.c.l.b16 %v2460
    %v2546 = vunpack.c.h.b16 %v2460
    %v2547 = vunpack.c.l.b16 %v2461
    %v2548 = vunpack.c.h.b16 %v2461
    %v2549 = vunpack.c.l.b16 %v2462
    %v2550 = vunpack.c.h.b16 %v2462
    %v2551 = vunpack.c.l.b16 %v2463
    %v2552 = vunpack.c.h.b16 %v2463
    %v2553 = vunpack.c.l.b16 %v2464
    %v2554 = vunpack.c.h.b16 %v2464
    %v2555 = vunpack.c.l.b16 %v2465
    %v2556 = vunpack.c.h.b16 %v2465
    %v2557 = vunpack.c.l.b16 %v2466
    %v2558 = vunpack.c.h.b16 %v2466
    %v2559 = vunpack.c.l.b16 %v2467
    %v2560 = vunpack.c.h.b16 %v2467
    %v2561 = vunpack.c.l.b16 %v2468
    %v2562 = vunpack.c.h.b16 %v2468
    %v2563 = vunpack.c.l.b16 %v2469
    %v2564 = vunpack.c.h.b16 %v2469
    %v2565 = vunpack.c.l.b16 %v2470
    %v2566 = vunpack.c.h.b16 %v2470
    %v2567 = vpack.c.b16 %v2507, %v2503
    %v2568 = vpack.c.b16 %v2508, %v2504
    %v2569 = vpack.c.b16 %v2509, %v2505
    %v2570 = vpack.c.b16 %v2510, %v2506
    %v2571 = vpack.c.b16 %v2515, %v2511
    %v2572 = vpack.c.b16 %v2516, %v2512
    %v2573 = vpack.c.b16 %v2517, %v2513
    %v2574 = vpack.c.b16 %v2518, %v2514
    %v2575 = vpack.c.b16 %v2523, %v2519
    %v2576 = vpack.c.b16 %v2524, %v2520
    %v2577 = vpack.c.b16 %v2525, %v2521
    %v2578 = vpack.c.b16 %v2526, %v2522
    %v2579 = vpack.c.b16 %v2531, %v2527
    %v2580 = vpack.c.b16 %v2532, %v2528
    %v2581 = vpack.c.b16 %v2533, %v2529
    %v2582 = vpack.c.b16 %v2534, %v2530
    %v2583 = vpack.c.b16 %v2539, %v2535
    %v2584 = vpack.c.b16 %v2540, %v2536
    %v2585 = vpack.c.b16 %v2541, %v2537
    %v2586 = vpack.c.b16 %v2542, %v2538
    %v2587 = vpack.c.b16 %v2547, %v2543
    %v2588 = vpack.c.b16 %v2548, %v2544
    %v2589 = vpack.c.b16 %v2549, %v2545
    %v2590 = vpack.c.b16 %v2550, %v2546
    %v2591 = vpack.c.b16 %v2555, %v2551
    %v2592 = vpack.c.b16 %v2556, %v2552
    %v2593 = vpack.c.b16 %v2557, %v2553
    %v2594 = vpack.c.b16 %v2558, %v2554
    %v2595 = vpack.c.b16 %v2563, %v2559
    %v2596 = vpack.c.b16 %v2564, %v2560
    %v2597 = vpack.c.b16 %v2565, %v2561
    %v2598 = vpack.c.b16 %v2566, %v2562
    %2631 = vmatprep.subr.bf16.mxu0 %v2568
    %2632 = vmatpush1.bf16.msra.mxu0 %v2567
    %2633 = vmatprep.subr.bf16.mxu0 %v2572
    %2634 = vmatpush1.bf16.msra.mxu0 %v2571
    %2635 = vmatprep.subr.bf16.mxu0 %v2576
    %2636 = vmatpush1.bf16.msra.mxu0 %v2575
    %2637 = vmatprep.subr.bf16.mxu0 %v2580
    %2638 = vmatpush1.bf16.msra.mxu0 %v2579
    %2639 = vmatprep.subr.bf16.mxu0 %v2584
    %2640 = vmatpush1.bf16.msra.mxu0 %v2583
    %2641 = vmatprep.subr.bf16.mxu0 %v2588
    %2642 = vmatpush1.bf16.msra.mxu0 %v2587
    %2643 = vmatprep.subr.bf16.mxu0 %v2592
    %2644 = vmatpush1.bf16.msra.mxu0 %v2591
    %2645 = vmatprep.subr.bf16.mxu0 %v2596
    %2646 = vmatpush1.bf16.msra.mxu0 %v2595
    %2647 = vmatprep.subr.bf16.mxu0 0
    %2648 = vmatpush1.bf16.msra.mxu0 0
    %2649 = vmatprep.subr.bf16.mxu0 0
    %2650 = vmatpush1.bf16.msra.mxu0 0
    %2651 = vmatprep.subr.bf16.mxu0 0
    %2652 = vmatpush1.bf16.msra.mxu0 0
    %2653 = vmatprep.subr.bf16.mxu0 0
    %2654 = vmatpush1.bf16.msra.mxu0 0
    %2655 = vmatprep.subr.bf16.mxu0 0
    %2656 = vmatpush1.bf16.msra.mxu0 0
    %2657 = vmatprep.subr.bf16.mxu0 0
    %2658 = vmatpush1.bf16.msra.mxu0 0
    %2659 = vmatprep.subr.bf16.mxu0 0
    %2660 = vmatpush1.bf16.msra.mxu0 0
    %2661 = vmatprep.subr.bf16.mxu0 0
    %2662 = vmatpush1.bf16.msra.mxu0 0
    %2663 = vmatprep.mubr.bf16.mxu0 0
    %2664 = vmatmul.mubr.bf16.gmra.mrb[0].mxu0 %v2438
    %v2665 = vpop.f32.mrb[0].mxu0
    %v2666 = vadd.f32 0.0, %v2665
    %v2667 = vpop.f32.mrb[0].mxu0
    %v2668 = vadd.f32 0.0, %v2667
    %v2669 = vpop.f32.mrb[0].mxu0
    %v2670 = vpop.f32.mrb[0].mxu0
    %2671 = vdwg.mxu0
    %2672 = vmatprep.subr.bf16.mxu0 %v2570
    %2673 = vmatpush1.bf16.msra.mxu0 %v2569
    %2674 = vmatprep.subr.bf16.mxu0 %v2574
    %2675 = vmatpush1.bf16.msra.mxu0 %v2573
    %2676 = vmatprep.subr.bf16.mxu0 %v2578
    %2677 = vmatpush1.bf16.msra.mxu0 %v2577
    %2678 = vmatprep.subr.bf16.mxu0 %v2582
    %2679 = vmatpush1.bf16.msra.mxu0 %v2581
    %2680 = vmatprep.subr.bf16.mxu0 %v2586
    %2681 = vmatpush1.bf16.msra.mxu0 %v2585
    %2682 = vmatprep.subr.bf16.mxu0 %v2590
    %2683 = vmatpush1.bf16.msra.mxu0 %v2589
    %2684 = vmatprep.subr.bf16.mxu0 %v2594
    %2685 = vmatpush1.bf16.msra.mxu0 %v2593
    %2686 = vmatprep.subr.bf16.mxu0 %v2598
    %2687 = vmatpush1.bf16.msra.mxu0 %v2597
    %2688 = vmatprep.subr.bf16.mxu0 0
    %2689 = vmatpush1.bf16.msra.mxu0 0
    %2690 = vmatprep.subr.bf16.mxu0 0
    %2691 = vmatpush1.bf16.msra.mxu0 0
    %2692 = vmatprep.subr.bf16.mxu0 0
    %2693 = vmatpush1.bf16.msra.mxu0 0
    %2694 = vmatprep.subr.bf16.mxu0 0
    %2695 = vmatpush1.bf16.msra.mxu0 0
    %2696 = vmatprep.subr.bf16.mxu0 0
    %2697 = vmatpush1.bf16.msra.mxu0 0
    %2698 = vmatprep.subr.bf16.mxu0 0
    %2699 = vmatpush1.bf16.msra.mxu0 0
    %2700 = vmatprep.subr.bf16.mxu0 0
    %2701 = vmatpush1.bf16.msra.mxu0 0
    %2702 = vmatprep.subr.bf16.mxu0 0
    %2703 = vmatpush1.bf16.msra.mxu0 0
    %2704 = vmatprep.mubr.bf16.mxu0 0
    %2705 = vmatmul.mubr.bf16.gmra.mrb[0].mxu0 %v2438
    %v2706 = vpop.f32.mrb[0].mxu0
    %v2707 = vadd.f32 0.0, %v2706
    %v2708 = vpop.f32.mrb[0].mxu0
    %v2709 = vadd.f32 0.0, %v2708
    %v2710 = vpop.f32.mrb[0].mxu0
    %v2711 = vpop.f32.mrb[0].mxu0
    %2712 = vdwg.mxu0
    %v2713 = vadd.f32 %v2434, %v2666
    %v2714 = vadd.f32 %v2435, %v2668
    %v2715 = vadd.f32 %v2436, %v2707
    %v2716 = vadd.f32 %v2437, %v2709
    %v2717 = vxor.u32 %v2713, 2147483648
    %v2718 = vxor.u32 %v2714, 2147483648
    %v2719 = vxor.u32 %v2715, 2147483648
    %v2720 = vmul.f32 %v2717, 1.442695
    %v2721 = vpow.pop %v2720
    %v2722 = vmul.f32 %v2718, 1.442695
    %v2723 = vpow.pop %v2722
    %v2724 = vmul.f32 %v2719, 1.442695
    %v2725 = vpow.pop %v2724
    %v2726 = vadd.f32 %v2721, 1.0
    %v2727 = vadd.f32 %v2723, 1.0
    %v2728 = vadd.f32 %v2725, 1.0
    %v2729 = vrcp.pop %v2726
    %v2730 = vmul.f32 1.0, %v2729
    %v2731 = vrcp.pop %v2727
    %v2732 = vmul.f32 1.0, %v2731
    %v2733 = vrcp.pop %v2728
    %v2734 = vmul.f32 1.0, %v2733
    %v2735 = vtanh.pop %v2716
    %v2736 = vmul.f32 %v2732, %v2426
    %v2737 = vmul.f32 %v2730, %v2735
    %v2738 = vadd.f32 %v2736, %v2737
    %v2739 = vtanh.pop %v2738
    %v2740 = vmul.f32 %v2734, %v2739
    %s2741 = scalar_lea.vmem [#allocation3], 48
    %2742 = vst [vmem:[%s2741] sm:$0xff] %v2740
    %s2743 = smul.u32 7, 4
    %s2744 = smul.addr %s2743, 8
    %s2745 = scalar_lea.vmem [#allocation2], %s2744
    %v2746 = vld [vmem:[%s2745] sm:$0xff]
    %v2747 = vld [vmem:[%s2745 + $0x8] sm:$0xff]
    %v2748 = vld [vmem:[%s2745 + $0x10] sm:$0xff]
    %v2749 = vld [vmem:[%s2745 + $0x18] sm:$0xff]
    %v2750 = vpack.c.bf16 %v2740, %v2740
    %v2751 = vld [vmem:[#allocation9] sm:$0xff]
    %v2752 = vld [vmem:[#allocation9 + $0x8] sm:$0xff]
    %v2753 = vld [vmem:[#allocation9 + $0x10] sm:$0xff]
    %v2754 = vld [vmem:[#allocation9 + $0x18] sm:$0xff]
    %v2755 = vld [vmem:[#allocation9 + $0x20] sm:$0xff]
    %v2756 = vld [vmem:[#allocation9 + $0x28] sm:$0xff]
    %v2757 = vld [vmem:[#allocation9 + $0x30] sm:$0xff]
    %v2758 = vld [vmem:[#allocation9 + $0x38] sm:$0xff]
    %v2759 = vld [vmem:[#allocation9 + $0x40] sm:$0xff]
    %v2760 = vld [vmem:[#allocation9 + $0x48] sm:$0xff]
    %v2761 = vld [vmem:[#allocation9 + $0x50] sm:$0xff]
    %v2762 = vld [vmem:[#allocation9 + $0x58] sm:$0xff]
    %v2763 = vld [vmem:[#allocation9 + $0x60] sm:$0xff]
    %v2764 = vld [vmem:[#allocation9 + $0x68] sm:$0xff]
    %v2765 = vld [vmem:[#allocation9 + $0x70] sm:$0xff]
    %v2766 = vld [vmem:[#allocation9 + $0x78] sm:$0xff]
    %v2767 = vld [vmem:[#allocation9 + $0x80] sm:$0xff]
    %v2768 = vld [vmem:[#allocation9 + $0x88] sm:$0xff]
    %v2769 = vld [vmem:[#allocation9 + $0x90] sm:$0xff]
    %v2770 = vld [vmem:[#allocation9 + $0x98] sm:$0xff]
    %v2771 = vld [vmem:[#allocation9 + $0xa0] sm:$0xff]
    %v2772 = vld [vmem:[#allocation9 + $0xa8] sm:$0xff]
    %v2773 = vld [vmem:[#allocation9 + $0xb0] sm:$0xff]
    %v2774 = vld [vmem:[#allocation9 + $0xb8] sm:$0xff]
    %v2775 = vld [vmem:[#allocation9 + $0xc0] sm:$0xff]
    %v2776 = vld [vmem:[#allocation9 + $0xc8] sm:$0xff]
    %v2777 = vld [vmem:[#allocation9 + $0xd0] sm:$0xff]
    %v2778 = vld [vmem:[#allocation9 + $0xd8] sm:$0xff]
    %v2779 = vld [vmem:[#allocation9 + $0xe0] sm:$0xff]
    %v2780 = vld [vmem:[#allocation9 + $0xe8] sm:$0xff]
    %v2781 = vld [vmem:[#allocation9 + $0xf0] sm:$0xff]
    %v2782 = vld [vmem:[#allocation9 + $0xf8] sm:$0xff]
    %v2815 = vunpack.c.l.b16 %v2751
    %v2816 = vunpack.c.h.b16 %v2751
    %v2817 = vunpack.c.l.b16 %v2752
    %v2818 = vunpack.c.h.b16 %v2752
    %v2819 = vunpack.c.l.b16 %v2753
    %v2820 = vunpack.c.h.b16 %v2753
    %v2821 = vunpack.c.l.b16 %v2754
    %v2822 = vunpack.c.h.b16 %v2754
    %v2823 = vunpack.c.l.b16 %v2755
    %v2824 = vunpack.c.h.b16 %v2755
    %v2825 = vunpack.c.l.b16 %v2756
    %v2826 = vunpack.c.h.b16 %v2756
    %v2827 = vunpack.c.l.b16 %v2757
    %v2828 = vunpack.c.h.b16 %v2757
    %v2829 = vunpack.c.l.b16 %v2758
    %v2830 = vunpack.c.h.b16 %v2758
    %v2831 = vunpack.c.l.b16 %v2759
    %v2832 = vunpack.c.h.b16 %v2759
    %v2833 = vunpack.c.l.b16 %v2760
    %v2834 = vunpack.c.h.b16 %v2760
    %v2835 = vunpack.c.l.b16 %v2761
    %v2836 = vunpack.c.h.b16 %v2761
    %v2837 = vunpack.c.l.b16 %v2762
    %v2838 = vunpack.c.h.b16 %v2762
    %v2839 = vunpack.c.l.b16 %v2763
    %v2840 = vunpack.c.h.b16 %v2763
    %v2841 = vunpack.c.l.b16 %v2764
    %v2842 = vunpack.c.h.b16 %v2764
    %v2843 = vunpack.c.l.b16 %v2765
    %v2844 = vunpack.c.h.b16 %v2765
    %v2845 = vunpack.c.l.b16 %v2766
    %v2846 = vunpack.c.h.b16 %v2766
    %v2847 = vunpack.c.l.b16 %v2767
    %v2848 = vunpack.c.h.b16 %v2767
    %v2849 = vunpack.c.l.b16 %v2768
    %v2850 = vunpack.c.h.b16 %v2768
    %v2851 = vunpack.c.l.b16 %v2769
    %v2852 = vunpack.c.h.b16 %v2769
    %v2853 = vunpack.c.l.b16 %v2770
    %v2854 = vunpack.c.h.b16 %v2770
    %v2855 = vunpack.c.l.b16 %v2771
    %v2856 = vunpack.c.h.b16 %v2771
    %v2857 = vunpack.c.l.b16 %v2772
    %v2858 = vunpack.c.h.b16 %v2772
    %v2859 = vunpack.c.l.b16 %v2773
    %v2860 = vunpack.c.h.b16 %v2773
    %v2861 = vunpack.c.l.b16 %v2774
    %v2862 = vunpack.c.h.b16 %v2774
    %v2863 = vunpack.c.l.b16 %v2775
    %v2864 = vunpack.c.h.b16 %v2775
    %v2865 = vunpack.c.l.b16 %v2776
    %v2866 = vunpack.c.h.b16 %v2776
    %v2867 = vunpack.c.l.b16 %v2777
    %v2868 = vunpack.c.h.b16 %v2777
    %v2869 = vunpack.c.l.b16 %v2778
    %v2870 = vunpack.c.h.b16 %v2778
    %v2871 = vunpack.c.l.b16 %v2779
    %v2872 = vunpack.c.h.b16 %v2779
    %v2873 = vunpack.c.l.b16 %v2780
    %v2874 = vunpack.c.h.b16 %v2780
    %v2875 = vunpack.c.l.b16 %v2781
    %v2876 = vunpack.c.h.b16 %v2781
    %v2877 = vunpack.c.l.b16 %v2782
    %v2878 = vunpack.c.h.b16 %v2782
    %v2879 = vpack.c.b16 %v2819, %v2815
    %v2880 = vpack.c.b16 %v2820, %v2816
    %v2881 = vpack.c.b16 %v2821, %v2817
    %v2882 = vpack.c.b16 %v2822, %v2818
    %v2883 = vpack.c.b16 %v2827, %v2823
    %v2884 = vpack.c.b16 %v2828, %v2824
    %v2885 = vpack.c.b16 %v2829, %v2825
    %v2886 = vpack.c.b16 %v2830, %v2826
    %v2887 = vpack.c.b16 %v2835, %v2831
    %v2888 = vpack.c.b16 %v2836, %v2832
    %v2889 = vpack.c.b16 %v2837, %v2833
    %v2890 = vpack.c.b16 %v2838, %v2834
    %v2891 = vpack.c.b16 %v2843, %v2839
    %v2892 = vpack.c.b16 %v2844, %v2840
    %v2893 = vpack.c.b16 %v2845, %v2841
    %v2894 = vpack.c.b16 %v2846, %v2842
    %v2895 = vpack.c.b16 %v2851, %v2847
    %v2896 = vpack.c.b16 %v2852, %v2848
    %v2897 = vpack.c.b16 %v2853, %v2849
    %v2898 = vpack.c.b16 %v2854, %v2850
    %v2899 = vpack.c.b16 %v2859, %v2855
    %v2900 = vpack.c.b16 %v2860, %v2856
    %v2901 = vpack.c.b16 %v2861, %v2857
    %v2902 = vpack.c.b16 %v2862, %v2858
    %v2903 = vpack.c.b16 %v2867, %v2863
    %v2904 = vpack.c.b16 %v2868, %v2864
    %v2905 = vpack.c.b16 %v2869, %v2865
    %v2906 = vpack.c.b16 %v2870, %v2866
    %v2907 = vpack.c.b16 %v2875, %v2871
    %v2908 = vpack.c.b16 %v2876, %v2872
    %v2909 = vpack.c.b16 %v2877, %v2873
    %v2910 = vpack.c.b16 %v2878, %v2874
    %2943 = vmatprep.subr.bf16.mxu0 %v2880
    %2944 = vmatpush1.bf16.msra.mxu0 %v2879
    %2945 = vmatprep.subr.bf16.mxu0 %v2884
    %2946 = vmatpush1.bf16.msra.mxu0 %v2883
    %2947 = vmatprep.subr.bf16.mxu0 %v2888
    %2948 = vmatpush1.bf16.msra.mxu0 %v2887
    %2949 = vmatprep.subr.bf16.mxu0 %v2892
    %2950 = vmatpush1.bf16.msra.mxu0 %v2891
    %2951 = vmatprep.subr.bf16.mxu0 %v2896
    %2952 = vmatpush1.bf16.msra.mxu0 %v2895
    %2953 = vmatprep.subr.bf16.mxu0 %v2900
    %2954 = vmatpush1.bf16.msra.mxu0 %v2899
    %2955 = vmatprep.subr.bf16.mxu0 %v2904
    %2956 = vmatpush1.bf16.msra.mxu0 %v2903
    %2957 = vmatprep.subr.bf16.mxu0 %v2908
    %2958 = vmatpush1.bf16.msra.mxu0 %v2907
    %2959 = vmatprep.subr.bf16.mxu0 0
    %2960 = vmatpush1.bf16.msra.mxu0 0
    %2961 = vmatprep.subr.bf16.mxu0 0
    %2962 = vmatpush1.bf16.msra.mxu0 0
    %2963 = vmatprep.subr.bf16.mxu0 0
    %2964 = vmatpush1.bf16.msra.mxu0 0
    %2965 = vmatprep.subr.bf16.mxu0 0
    %2966 = vmatpush1.bf16.msra.mxu0 0
    %2967 = vmatprep.subr.bf16.mxu0 0
    %2968 = vmatpush1.bf16.msra.mxu0 0
    %2969 = vmatprep.subr.bf16.mxu0 0
    %2970 = vmatpush1.bf16.msra.mxu0 0
    %2971 = vmatprep.subr.bf16.mxu0 0
    %2972 = vmatpush1.bf16.msra.mxu0 0
    %2973 = vmatprep.subr.bf16.mxu0 0
    %2974 = vmatpush1.bf16.msra.mxu0 0
    %2975 = vmatprep.mubr.bf16.mxu0 0
    %2976 = vmatmul.mubr.bf16.gmra.mrb[0].mxu0 %v2750
    %v2977 = vpop.f32.mrb[0].mxu0
    %v2978 = vadd.f32 0.0, %v2977
    %v2979 = vpop.f32.mrb[0].mxu0
    %v2980 = vadd.f32 0.0, %v2979
    %v2981 = vpop.f32.mrb[0].mxu0
    %v2982 = vpop.f32.mrb[0].mxu0
    %2983 = vdwg.mxu0
    %2984 = vmatprep.subr.bf16.mxu0 %v2882
    %2985 = vmatpush1.bf16.msra.mxu0 %v2881
    %2986 = vmatprep.subr.bf16.mxu0 %v2886
    %2987 = vmatpush1.bf16.msra.mxu0 %v2885
    %2988 = vmatprep.subr.bf16.mxu0 %v2890
    %2989 = vmatpush1.bf16.msra.mxu0 %v2889
    %2990 = vmatprep.subr.bf16.mxu0 %v2894
    %2991 = vmatpush1.bf16.msra.mxu0 %v2893
    %2992 = vmatprep.subr.bf16.mxu0 %v2898
    %2993 = vmatpush1.bf16.msra.mxu0 %v2897
    %2994 = vmatprep.subr.bf16.mxu0 %v2902
    %2995 = vmatpush1.bf16.msra.mxu0 %v2901
    %2996 = vmatprep.subr.bf16.mxu0 %v2906
    %2997 = vmatpush1.bf16.msra.mxu0 %v2905
    %2998 = vmatprep.subr.bf16.mxu0 %v2910
    %2999 = vmatpush1.bf16.msra.mxu0 %v2909
    %3000 = vmatprep.subr.bf16.mxu0 0
    %3001 = vmatpush1.bf16.msra.mxu0 0
    %3002 = vmatprep.subr.bf16.mxu0 0
    %3003 = vmatpush1.bf16.msra.mxu0 0
    %3004 = vmatprep.subr.bf16.mxu0 0
    %3005 = vmatpush1.bf16.msra.mxu0 0
    %3006 = vmatprep.subr.bf16.mxu0 0
    %3007 = vmatpush1.bf16.msra.mxu0 0
    %3008 = vmatprep.subr.bf16.mxu0 0
    %3009 = vmatpush1.bf16.msra.mxu0 0
    %3010 = vmatprep.subr.bf16.mxu0 0
    %3011 = vmatpush1.bf16.msra.mxu0 0
    %3012 = vmatprep.subr.bf16.mxu0 0
    %3013 = vmatpush1.bf16.msra.mxu0 0
    %3014 = vmatprep.subr.bf16.mxu0 0
    %3015 = vmatpush1.bf16.msra.mxu0 0
    %3016 = vmatprep.mubr.bf16.mxu0 0
    %3017 = vmatmul.mubr.bf16.gmra.mrb[0].mxu0 %v2750
    %v3018 = vpop.f32.mrb[0].mxu0
    %v3019 = vadd.f32 0.0, %v3018
    %v3020 = vpop.f32.mrb[0].mxu0
    %v3021 = vadd.f32 0.0, %v3020
    %v3022 = vpop.f32.mrb[0].mxu0
    %v3023 = vpop.f32.mrb[0].mxu0
    %3024 = vdwg.mxu0
    %v3025 = vadd.f32 %v2746, %v2978
    %v3026 = vadd.f32 %v2747, %v2980
    %v3027 = vadd.f32 %v2748, %v3019
    %v3028 = vadd.f32 %v2749, %v3021
    %v3029 = vxor.u32 %v3025, 2147483648
    %v3030 = vxor.u32 %v3026, 2147483648
    %v3031 = vxor.u32 %v3027, 2147483648
    %v3032 = vmul.f32 %v3029, 1.442695
    %v3033 = vpow.pop %v3032
    %v3034 = vmul.f32 %v3030, 1.442695
    %v3035 = vpow.pop %v3034
    %v3036 = vmul.f32 %v3031, 1.442695
    %v3037 = vpow.pop %v3036
    %v3038 = vadd.f32 %v3033, 1.0
    %v3039 = vadd.f32 %v3035, 1.0
    %v3040 = vadd.f32 %v3037, 1.0
    %v3041 = vrcp.pop %v3038
    %v3042 = vmul.f32 1.0, %v3041
    %v3043 = vrcp.pop %v3039
    %v3044 = vmul.f32 1.0, %v3043
    %v3045 = vrcp.pop %v3040
    %v3046 = vmul.f32 1.0, %v3045
    %v3047 = vtanh.pop %v3028
    %v3048 = vmul.f32 %v3044, %v2738
    %v3049 = vmul.f32 %v3042, %v3047
    %v3050 = vadd.f32 %v3048, %v3049
    %v3051 = vtanh.pop %v3050
    %v3052 = vmul.f32 %v3046, %v3051
    %s3053 = scalar_lea.vmem [#allocation3], 56
    %3054 = vst [vmem:[%s3053] sm:$0xff] %v3052
    %v3055 = vld [vmem:[#allocation3] sm:$0xff]
    %v3056 = vld [vmem:[#allocation3 + $0x8] sm:$0xff]
    %v3057 = vld [vmem:[#allocation3 + $0x10] sm:$0xff]
    %v3058 = vld [vmem:[#allocation3 + $0x18] sm:$0xff]
    %v3059 = vld [vmem:[#allocation3 + $0x20] sm:$0xff]
    %v3060 = vld [vmem:[#allocation3 + $0x28] sm:$0xff]
    %v3061 = vld [vmem:[#allocation3 + $0x30] sm:$0xff]
    %v3062 = vld [vmem:[#allocation3 + $0x38] sm:$0xff]
    %v3063 = vpack.c.bf16 %v3056, %v3055
    %v3064 = vpack.c.bf16 %v3058, %v3057
    %v3065 = vpack.c.bf16 %v3060, %v3059
    %v3066 = vpack.c.bf16 %v3062, %v3061
    %v3067 = vld [vmem:[%s7] sm:$0xf]
    %v3068 = vld [vmem:[%s7 + $0x4] sm:$0xf]
    %v3069 = vld [vmem:[%s7 + $0x8] sm:$0xf]
    %v3070 = vld [vmem:[%s7 + $0xc] sm:$0xf]
    %v3071 = vld [vmem:[%s7 + $0x10] sm:$0xf]
    %v3072 = vld [vmem:[%s7 + $0x14] sm:$0xf]
    %v3073 = vld [vmem:[%s7 + $0x18] sm:$0xf]
    %v3074 = vld [vmem:[%s7 + $0x1c] sm:$0xf]
    %v3075 = vld [vmem:[%s7 + $0x20] sm:$0xf]
    %v3076 = vld [vmem:[%s7 + $0x24] sm:$0xf]
    %v3077 = vld [vmem:[%s7 + $0x28] sm:$0xf]
    %v3078 = vld [vmem:[%s7 + $0x2c] sm:$0xf]
    %v3079 = vld [vmem:[%s7 + $0x30] sm:$0xf]
    %v3080 = vld [vmem:[%s7 + $0x34] sm:$0xf]
    %v3081 = vld [vmem:[%s7 + $0x38] sm:$0xf]
    %v3082 = vld [vmem:[%s7 + $0x3c] sm:$0xf]
    %v3083 = vld [vmem:[%s8] sm:$0x1]
    %v3085 = vlaneseq
    %v3086 = vshrl.u32 %v3085, 7
    %v3087 = vsub.s32 0, %v3086
    %v3088 = vrot.slane %v3083, %v3087
    %v3106 = vunpack.c.l.b16 %v3067
    %v3107 = vunpack.c.l.b16 %v3068
    %v3108 = vunpack.c.l.b16 %v3069
    %v3109 = vunpack.c.l.b16 %v3070
    %v3110 = vunpack.c.l.b16 %v3071
    %v3111 = vunpack.c.l.b16 %v3072
    %v3112 = vunpack.c.l.b16 %v3073
    %v3113 = vunpack.c.l.b16 %v3074
    %v3114 = vunpack.c.l.b16 %v3075
    %v3115 = vunpack.c.l.b16 %v3076
    %v3116 = vunpack.c.l.b16 %v3077
    %v3117 = vunpack.c.l.b16 %v3078
    %v3118 = vunpack.c.l.b16 %v3079
    %v3119 = vunpack.c.l.b16 %v3080
    %v3120 = vunpack.c.l.b16 %v3081
    %v3121 = vunpack.c.l.b16 %v3082
    %v3122 = vpack.c.b16 %v3107, %v3106
    %v3123 = vpack.c.b16 %v3109, %v3108
    %v3124 = vpack.c.b16 %v3111, %v3110
    %v3125 = vpack.c.b16 %v3113, %v3112
    %v3126 = vpack.c.b16 %v3115, %v3114
    %v3127 = vpack.c.b16 %v3117, %v3116
    %v3128 = vpack.c.b16 %v3119, %v3118
    %v3129 = vpack.c.b16 %v3121, %v3120
    %3138 = vmatprep.subr.bf16.mxu0 0
    %3139 = vmatpush1.bf16.msra.mxu0 %v3122
    %3140 = vmatprep.subr.bf16.mxu0 0
    %3141 = vmatpush1.bf16.msra.mxu0 %v3123
    %3142 = vmatprep.subr.bf16.mxu0 0
    %3143 = vmatpush1.bf16.msra.mxu0 %v3124
    %3144 = vmatprep.subr.bf16.mxu0 0
    %3145 = vmatpush1.bf16.msra.mxu0 %v3125
    %3146 = vmatprep.subr.bf16.mxu0 0
    %3147 = vmatpush1.bf16.msra.mxu0 %v3126
    %3148 = vmatprep.subr.bf16.mxu0 0
    %3149 = vmatpush1.bf16.msra.mxu0 %v3127
    %3150 = vmatprep.subr.bf16.mxu0 0
    %3151 = vmatpush1.bf16.msra.mxu0 %v3128
    %3152 = vmatprep.subr.bf16.mxu0 0
    %3153 = vmatpush1.bf16.msra.mxu0 %v3129
    %3154 = vmatprep.subr.bf16.mxu0 0
    %3155 = vmatpush1.bf16.msra.mxu0 0
    %3156 = vmatprep.subr.bf16.mxu0 0
    %3157 = vmatpush1.bf16.msra.mxu0 0
    %3158 = vmatprep.subr.bf16.mxu0 0
    %3159 = vmatpush1.bf16.msra.mxu0 0
    %3160 = vmatprep.subr.bf16.mxu0 0
    %3161 = vmatpush1.bf16.msra.mxu0 0
    %3162 = vmatprep.subr.bf16.mxu0 0
    %3163 = vmatpush1.bf16.msra.mxu0 0
    %3164 = vmatprep.subr.bf16.mxu0 0
    %3165 = vmatpush1.bf16.msra.mxu0 0
    %3166 = vmatprep.subr.bf16.mxu0 0
    %3167 = vmatpush1.bf16.msra.mxu0 0
    %3168 = vmatprep.subr.bf16.mxu0 0
    %3169 = vmatpush1.bf16.msra.mxu0 0
    %3170 = vmatprep.mubr.bf16.mxu0 0
    %3171 = vmatmul.mubr.bf16.gmra.mrb[0].mxu0 %v3063
    %v3172 = vpop.f32.mrb[0].mxu0
    %v3173 = vadd.f32 %v3088, %v3172
    %v3174 = vpop.f32.mrb[0].mxu0
    %v3175 = vpop.f32.mrb[0].mxu0
    %v3176 = vadd.f32 %v3088, %v3175
    %v3177 = vpop.f32.mrb[0].mxu0
    %3178 = vmatprep.mubr.bf16.mxu0 0
    %3179 = vmatmul.mubr.bf16.gmra.mrb[0].mxu0 %v3064
    %v3180 = vpop.f32.mrb[0].mxu0
    %v3181 = vadd.f32 %v3088, %v3180
    %v3182 = vpop.f32.mrb[0].mxu0
    %v3183 = vpop.f32.mrb[0].mxu0
    %v3184 = vadd.f32 %v3088, %v3183
    %v3185 = vpop.f32.mrb[0].mxu0
    %3186 = vmatprep.mubr.bf16.mxu0 0
    %3187 = vmatmul.mubr.bf16.gmra.mrb[0].mxu0 %v3065
    %v3188 = vpop.f32.mrb[0].mxu0
    %v3189 = vadd.f32 %v3088, %v3188
    %v3190 = vpop.f32.mrb[0].mxu0
    %v3191 = vpop.f32.mrb[0].mxu0
    %v3192 = vadd.f32 %v3088, %v3191
    %v3193 = vpop.f32.mrb[0].mxu0
    %3194 = vmatprep.mubr.bf16.mxu0 0
    %3195 = vmatmul.mubr.bf16.gmra.mrb[0].mxu0 %v3066
    %v3196 = vpop.f32.mrb[0].mxu0
    %v3197 = vadd.f32 %v3088, %v3196
    %v3198 = vpop.f32.mrb[0].mxu0
    %v3199 = vpop.f32.mrb[0].mxu0
    %v3200 = vadd.f32 %v3088, %v3199
    %v3201 = vpop.f32.mrb[0].mxu0
    %3202 = vdwg.mxu0
    %3203 = vst [vmem:[#allocation12] sm:$0xff] %v3173
    %3204 = vst [vmem:[#allocation12 + $0x8] sm:$0xff] %v3176
    %3205 = vst [vmem:[#allocation12 + $0x10] sm:$0xff] %v3181
    %3206 = vst [vmem:[#allocation12 + $0x18] sm:$0xff] %v3184
    %3207 = vst [vmem:[#allocation12 + $0x20] sm:$0xff] %v3189
    %3208 = vst [vmem:[#allocation12 + $0x28] sm:$0xff] %v3192
    %3209 = vst [vmem:[#allocation12 + $0x30] sm:$0xff] %v3197
    %3210 = vst [vmem:[#allocation12 + $0x38] sm:$0xff] %v3200
    %3211 = vst [vmem:[#allocation13] sm:$0xff] %v3052
    %3212 = vst [vmem:[#allocation15] sm:$0xff] %v3050
    // Predicated region
    $region54: #{tpu_custom_call.1} parent=1 // pred_check
      _
    $region55: #{tpu_custom_call.1} parent=1 // pred_check_branch
      %3214 = sbr.rel (0) target = $region57
    $region56: #{tpu_custom_call.1} parent=1 // pred_region
      %s3216 = ssub.s32 1024, 1024
      %3217 = vsyncadd [#allocation6], %s3216
      %s3218 = sshll.u32 [#allocation12], 4
      %s3219 = int_to_ptr.vmem [resolvable:$true] %s3218
      %3224 = dma.vmem_to_hbm [thread:$0]  %s3219, 1024, %s9, [#allocation6], 128, 128, 8
    $region57: #{tpu_custom_call.1} parent=1 // pred_fallthru
      _
    // Predicated region
    $region58: #{tpu_custom_call.1} parent=1 // pred_check
      _
    $region59: #{tpu_custom_call.1} parent=1 // pred_check_branch
      %3226 = sbr.rel (0) target = $region61
    $region60: #{tpu_custom_call.1} parent=1 // pred_region
      %s3228 = ssub.s32 128, 128
      %3229 = vsyncadd [#allocation14], %s3228
      %s3231 = sshll.u32 [#allocation13], 4
      %s3232 = int_to_ptr.vmem [resolvable:$true] %s3231
      %3234 = dma.vmem_to_hbm [thread:$0]  %s3232, 128, %s10, [#allocation14]
    $region61: #{tpu_custom_call.1} parent=1 // pred_fallthru
      _
    // Predicated region
    $region62: #{tpu_custom_call.1} parent=1 // pred_check
      _
    $region63: #{tpu_custom_call.1} parent=1 // pred_check_branch
      %3236 = sbr.rel (0) target = $region65
    $region64: #{tpu_custom_call.1} parent=1 // pred_region
      %s3238 = ssub.s32 128, 128
      %3239 = vsyncadd [#allocation14], %s3238
      %s3241 = sshll.u32 [#allocation15], 4
      %s3242 = int_to_ptr.vmem [resolvable:$true] %s3241
      %3244 = dma.vmem_to_hbm [thread:$0]  %s3242, 128, %s11, [#allocation14]
    $region65: #{tpu_custom_call.1} parent=1 // pred_fallthru
      _
    // Predicated region
    $region66: #{tpu_custom_call.1} parent=1 // pred_check
      _
    $region67: #{tpu_custom_call.1} parent=1 // pred_check_branch
      %3246 = sbr.rel (0) target = $region69
    $region68: #{tpu_custom_call.1} parent=1 // pred_region
      %3247 = dma.done [#allocation6], 1024
    $region69: #{tpu_custom_call.1} parent=1 // pred_fallthru
      _
    // Predicated region
    $region70: #{tpu_custom_call.1} parent=1 // pred_check
      _
    $region71: #{tpu_custom_call.1} parent=1 // pred_check_branch
      %3249 = sbr.rel (0) target = $region73
    $region72: #{tpu_custom_call.1} parent=1 // pred_region
      %3250 = dma.done [#allocation14], 128
    $region73: #{tpu_custom_call.1} parent=1 // pred_fallthru
      _
    // Predicated region
    $region74: #{tpu_custom_call.1} parent=1 // pred_check
      _
    $region75: #{tpu_custom_call.1} parent=1 // pred_check_branch
      %3252 = sbr.rel (0) target = $region77
    $region76: #{tpu_custom_call.1} parent=1 // pred_region
      %3253 = dma.done [#allocation14], 128
    $region77: #{tpu_custom_call.1} parent=1 // pred_fallthru
      _
    %3254 = vsyncpa [#allocation5], 1
    %3255 = vsyncpa [#allocation8], 1
    %3256 = vsyncpa [#allocation11], 1
    %3257 = vsyncpa [#allocation6], 1
    %3258 = vsyncpa [#allocation14], 1

</llo_original>
